<compile_context>
chip_gen: v7x
topology: tpu7x:2x2x1
jax: 0.10.0
libtpu: 0.0.40
codegen_flags: <defaults>
</compile_context>

<pallas_src>
import functools

import jax
import jax.numpy as jnp
from jax import lax
from jax.experimental import pallas as pl
from jax.experimental.pallas import tpu as pltpu


# ---------------------------------------------------------------------------
# Weight packing (trace-time JAX, tiny).
# ---------------------------------------------------------------------------
def _build_packed_weights(w, pack):
    """(Cout, Cin, 3, 3) PyTorch weights -> (w_al, w_sh).

    w_al / w_sh: (3, pack*Cin, (pack//2)*Cout) bf16.  Slab s of the leading dim
    matches the kernel's three row operands (kh = 1, 2, 0).  w_al holds taps
    whose input column lies inside the same column group as the output; w_sh
    holds the single tap (kw == 0 of a group's first output column) that comes
    from the previous column group (applied with a one-group shift in-kernel).
    """
    c_out, c_in = w.shape[0], w.shape[1]
    q_out = pack // 2
    wt = jnp.transpose(w, (2, 3, 1, 0))                 # (kh, kw, Cin, Cout)
    w_al = jnp.zeros((3, pack * c_in, q_out * c_out), w.dtype)
    w_sh = jnp.zeros((3, pack * c_in, q_out * c_out), w.dtype)
    for s, kh in enumerate((1, 2, 0)):                  # slab -> kernel-row tap
        for q in range(q_out):
            for kw in range(3):
                p = 2 * q + kw - 1                      # input col phase in group
                blk = wt[kh, kw]
                if 0 <= p < pack:
                    w_al = w_al.at[s, p * c_in:(p + 1) * c_in,
                                   q * c_out:(q + 1) * c_out].set(blk)
                else:                                   # p == -1: previous group
                    w_sh = w_sh.at[s, (pack - 1) * c_in:pack * c_in,
                                   q * c_out:(q + 1) * c_out].set(blk)
    return w_al.astype(jnp.bfloat16), w_sh.astype(jnp.bfloat16)


# ---------------------------------------------------------------------------
# Pallas kernel: fused 3x3 / stride-2 / pad-1 conv  +  BN affine  +  ReLU
# for one (batch, output-row-tile) grid step.
# ---------------------------------------------------------------------------
def _conv3x3s2_bn_relu_kernel(xm_ref, xh_ref, wal_ref, wsh_ref, sb_ref, o_ref,
                              acc_a, acc_b, *, r_tile, wp, kp, nq):
    """Refs (batch dim squeezed by BlockSpec):

    xm_ref : (R, 2, Wp, KP) bf16   input row pairs [R*t, R*t + R)
    xh_ref : (1, 2, Wp, KP) bf16   input row pair  R*t - 1 (halo; unused at t=0)
    wal_ref: (3, KP, NQ)    bf16   column-aligned taps per row slab
    wsh_ref: (3, KP, NQ)    bf16   column-shifted tap  per row slab
    sb_ref : (2, NQ)        f32    row 0 = BN scale, row 1 = folded bias
    o_ref  : (R*Wp, NQ)     bf16   output rows [R*t, R*t + R), column-packed
    acc_a/b: (R*Wp, NQ)     f32    VMEM scratch accumulators
    """
    R, Wp = r_tile, wp

    x0 = xm_ref[:, 0, :, :].reshape(R * Wp, kp)         # input rows 2r   (kh=1)
    x1 = xm_ref[:, 1, :, :].reshape(R * Wp, kp)         # input rows 2r+1 (kh=2)

    acc_a[...] = jnp.dot(x0, wal_ref[0], preferred_element_type=jnp.float32)
    acc_b[...] = jnp.dot(x0, wsh_ref[0], preferred_element_type=jnp.float32)
    acc_a[...] += jnp.dot(x1, wal_ref[1], preferred_element_type=jnp.float32)
    acc_b[...] += jnp.dot(x1, wsh_ref[1], preferred_element_type=jnp.float32)

    if R > 1:                                           # rows 2r-1, r=1..R-1 (kh=0)
        x2 = xm_ref[0:R - 1, 1, :, :].reshape((R - 1) * Wp, kp)
        acc_a[Wp:, :] += jnp.dot(x2, wal_ref[2], preferred_element_type=jnp.float32)
        acc_b[Wp:, :] += jnp.dot(x2, wsh_ref[2], preferred_element_type=jnp.float32)

    @pl.when(pl.program_id(1) > 0)                      # row 2r-1 for r=0 (kh=0)
    def _():
        xh = xh_ref[0, 1, :, :]
        acc_a[0:Wp, :] += jnp.dot(xh, wal_ref[2], preferred_element_type=jnp.float32)
        acc_b[0:Wp, :] += jnp.dot(xh, wsh_ref[2], preferred_element_type=jnp.float32)

    # acc_b at column group j belongs to group j+1: shift by one group and drop
    # the carry across output rows (the left conv pad is zero).
    a = acc_a[...]
    b = acc_b[...]
    b_shift = jnp.concatenate(
        [jnp.zeros((1, nq), jnp.float32), b[:-1, :]], axis=0)
    col = lax.broadcasted_iota(jnp.int32, (R * Wp, nq), 0) % Wp
    y = a + jnp.where(col == 0, 0.0, b_shift)
    y = y * sb_ref[0:1, :] + sb_ref[1:2, :]             # folded conv-bias + BN
    o_ref[...] = jnp.maximum(y, 0.0).astype(o_ref.dtype)


# ---------------------------------------------------------------------------
# ConvBlock wrapper: free reshapes + weight folding only; all conv/BN/ReLU math
# is inside the Pallas kernel.
# ---------------------------------------------------------------------------
def conv_block(x_nhwc, params, *, row_tile=16, eps=1e-5):
    """Conv2d(3x3, stride 2, pad 1) + eval-mode BN + ReLU.  NHWC in, NHWC out."""
    x_nhwc = x_nhwc.astype(jnp.bfloat16)
    N, Hi, Wi, Cin = x_nhwc.shape
    assert Hi % 2 == 0 and Wi % 2 == 0, "spatial dims must be even for stride 2"

    w = params["w"]                                     # (Cout, Cin, 3, 3)
    Cout = w.shape[0]
    Ho, Wo = Hi // 2, Wi // 2

    # Column packing factor: P//2 output columns share one store group.  P=4
    # makes 64-channel outputs 128-lane dense; P=2 for >=128-channel outputs.
    P = 4 if (Cout % 128 != 0 and Wi % 4 == 0) else 2
    Q = P // 2
    Wp = Wi // P                                        # packed column groups
    KP = P * Cin                                        # contraction width
    NQ = Q * Cout                                       # output lanes per group

    # Output-row tile: largest divisor of Ho <= row_tile with an 8-sublane
    # aligned flattened store block.  Re-sweep per TPU generation.
    R = Ho
    for cand in range(min(row_tile, Ho), 0, -1):
        if Ho % cand == 0 and ((cand * Wp) % 8 == 0 or cand == Ho):
            R = cand
            break

    # Free reshape: row-pair split + column-group packing (same HBM bytes).
    xv = x_nhwc.reshape(N, Hi // 2, 2, Wp, KP)

    w_al, w_sh = _build_packed_weights(w, P)
    scale = params["gamma"] / jnp.sqrt(params["running_var"] + eps)
    bias = scale * (params["b"] - params["running_mean"]) + params["beta"]
    sb = jnp.stack([jnp.tile(scale, Q), jnp.tile(bias, Q)]).astype(jnp.float32)

    grid = (N, Ho // R)
    kernel = functools.partial(_conv3x3s2_bn_relu_kernel,
                               r_tile=R, wp=Wp, kp=KP, nq=NQ)

    # Rough VMEM budget (tile-padded) for the explicit limit hint.
    def rup(v, m):
        return (v + m - 1) // m * m
    lane_in, lane_out = rup(KP, 128), rup(NQ, 128)
    b_main = R * 2 * rup(Wp, 16) * lane_in * 2
    b_halo = 2 * rup(Wp, 16) * lane_in * 2
    b_out = rup(R * Wp, 16) * lane_out * 2
    b_wts = 2 * 3 * rup(KP, 16) * lane_out * 2
    b_scr = 2 * rup(R * Wp, 8) * lane_out * 4
    vmem_need = 2 * (b_main + b_halo + b_out + b_wts) + b_scr + (1 << 20)
    vmem_limit = int(min(max(2 * vmem_need, 8 << 20), 60 << 20))

    flops = 2 * N * Ho * Wo * 9 * Cin * Cout
    bytes_accessed = (xv.size * 2 + (Ho // R) * N * 2 * Wp * KP * 2
                      + N * Ho * Wo * Cout * 2
                      + (w_al.size + w_sh.size) * 2 + sb.size * 4)

    out = pl.pallas_call(
        kernel,
        out_shape=jax.ShapeDtypeStruct((N, Ho * Wp, NQ), jnp.bfloat16),
        grid=grid,
        in_specs=[
            # main input rows: pairs [R*t, R*t + R)
            pl.BlockSpec((None, R, 2, Wp, KP), lambda n, t: (n, t, 0, 0, 0)),
            # one-pair top halo: pair R*t - 1 (clamped; unused when t == 0)
            pl.BlockSpec((None, 1, 2, Wp, KP),
                         lambda n, t: (n, jnp.maximum(t * R - 1, 0), 0, 0, 0)),
            # weights / scale-bias: constant index maps -> VMEM resident
            pl.BlockSpec((3, KP, NQ), lambda n, t: (0, 0, 0)),
            pl.BlockSpec((3, KP, NQ), lambda n, t: (0, 0, 0)),
            pl.BlockSpec((2, NQ), lambda n, t: (0, 0)),
        ],
        out_specs=pl.BlockSpec((None, R * Wp, NQ), lambda n, t: (n, t, 0)),
        scratch_shapes=[pltpu.VMEM((R * Wp, NQ), jnp.float32),
                        pltpu.VMEM((R * Wp, NQ), jnp.float32)],
        compiler_params=pltpu.CompilerParams(
            dimension_semantics=("parallel", "parallel"),
            vmem_limit_bytes=vmem_limit),
        cost_estimate=pl.CostEstimate(flops=flops, transcendentals=0,
                                      bytes_accessed=bytes_accessed),
    )(xv, xv, w_al, w_sh, sb)

    # Free reshape back to plain NHWC (identical HBM byte ordering).
    return out.reshape(N, Ho, Wo, Cout)


# ---------------------------------------------------------------------------
# Parameter construction (deterministic, synthetic)
# ---------------------------------------------------------------------------
def make_convblock_params(key, in_channels, out_channels, kernel_size=3):
    kw_, kb_, kg_, kbeta_ = jax.random.split(key, 4)
    fan_in = in_channels * kernel_size * kernel_size
    w = jax.random.normal(
        kw_, (out_channels, in_channels, kernel_size, kernel_size), jnp.float32
    ) * (1.0 / jnp.sqrt(fan_in))
    b = jax.random.normal(kb_, (out_channels,), jnp.float32) * 0.01
    gamma = 1.0 + 0.1 * jax.random.normal(kg_, (out_channels,), jnp.float32)
    beta = 0.1 * jax.random.normal(kbeta_, (out_channels,), jnp.float32)
    return {
        "w": w,
        "b": b,
        "gamma": gamma,
        "beta": beta,
        "running_mean": jnp.zeros((out_channels,), jnp.float32),
        "running_var": jnp.ones((out_channels,), jnp.float32),
    }


def spatial_path_init(key):
    k1, k2, k3 = jax.random.split(key, 3)
    return {
        "block1": make_convblock_params(k1, 3, 64),
        "block2": make_convblock_params(k2, 64, 128),
        "block3": make_convblock_params(k3, 128, 256),
    }


@functools.partial(jax.jit, static_argnames=("row_tile",))
def spatial_path_forward(x_nchw, params, row_tile=16):
    # NCHW -> NHWC at the boundary (PyTorch parity).  Inter-layer tensors stay
    # NHWC bf16 and are consumed via free reshapes (no pad / copy between layers).
    x = jnp.transpose(x_nchw, (0, 2, 3, 1))
    x = conv_block(x, params["block1"], row_tile=row_tile)
    x = conv_block(x, params["block2"], row_tile=row_tile)
    x = conv_block(x, params["block3"], row_tile=row_tile)
    return jnp.transpose(x, (0, 3, 1, 2)).astype(jnp.float32)


@jax.jit
def spatial_path_reference(x_nchw, params):
    """Pure-JAX reference with matching bf16 operand quantization."""
    eps = 1e-5
    x = jnp.transpose(x_nchw, (0, 2, 3, 1))
    for name in ("block1", "block2", "block3"):
        p = params[name]
        xq = x.astype(jnp.bfloat16).astype(jnp.float32)
        wq = p["w"].astype(jnp.bfloat16).astype(jnp.float32)
        y = lax.conv_general_dilated(
            xq, jnp.transpose(wq, (2, 3, 1, 0)), (2, 2), ((1, 1), (1, 1)),
            dimension_numbers=("NHWC", "HWIO", "NHWC"),
            precision=lax.Precision.HIGHEST)
        scale = p["gamma"] / jnp.sqrt(p["running_var"] + eps)
        bias = scale * (p["b"] - p["running_mean"]) + p["beta"]
        x = jnp.maximum(y * scale + bias, 0.0).astype(jnp.bfloat16)
    return jnp.transpose(x, (0, 3, 1, 2)).astype(jnp.float32)


# ---------------------------------------------------------------------------
if __name__ == "__main__":
    key = jax.random.PRNGKey(0)
    k_params, k_x = jax.random.split(key)

    params = spatial_path_init(k_params)

    # Small input consistent with the module: NCHW, 3 input channels.
    x = jax.random.normal(k_x, (2, 3, 32, 32), jnp.float32)

    # row_tile=4 exercises multi-tile grids (halo path); row_tile=16 is the
    # production-style single/large-tile configuration.
    out = jax.block_until_ready(spatial_path_forward(x, params, row_tile=4))
    out_big = jax.block_until_ready(spatial_path_forward(x, params, row_tile=16))
    ref = jax.block_until_ready(spatial_path_reference(x, params))

    expected_shape = (2, 256, 4, 4)   # 32 -> 16 -> 8 -> 4 (three stride-2 convs)
    assert out.shape == expected_shape, (out.shape, expected_shape)
    assert bool(jnp.all(jnp.isfinite(out)))
    assert bool(jnp.all(out >= 0.0))  # ReLU output
    assert bool(jnp.allclose(out, ref, atol=0.05, rtol=0.05)), \
        float(jnp.max(jnp.abs(out - ref)))
    assert bool(jnp.allclose(out_big, ref, atol=0.05, rtol=0.05)), \
        float(jnp.max(jnp.abs(out_big - ref)))

    print("KERNEL_OK")
</pallas_src>

<mosaic_0001>
module attributes {stable_mosaic.version = 11 : i64} {
  func.func @_conv3x3s2_bn_relu_kernel(%arg0: i32, %arg1: i32, %arg2: memref<1x4x2x8x12xbf16, #tpu.memory_space<vmem>>, %arg3: memref<1x1x2x8x12xbf16, #tpu.memory_space<vmem>>, %arg4: memref<3x12x128xbf16, #tpu.memory_space<vmem>>, %arg5: memref<3x12x128xbf16, #tpu.memory_space<vmem>>, %arg6: memref<2x128xf32, #tpu.memory_space<vmem>>, %arg7: memref<1x32x128xbf16, #tpu.memory_space<vmem>>, %arg8: memref<32x128xf32, #tpu.memory_space<vmem>>, %arg9: memref<32x128xf32, #tpu.memory_space<vmem>>) attributes {dimension_semantics = [#tpu.dimension_semantics<parallel>, #tpu.dimension_semantics<parallel>], iteration_bounds = array<i64: 2, 4>, scalar_prefetch = 0 : i64, scratch_operands = 2 : i64, tpu.core_type = #tpu.core_type<tc>, window_params = [{transform_indices = @transform_0, window_bounds = array<i64: 1, 4, 2, 8, 12>}, {transform_indices = @transform_1, window_bounds = array<i64: 1, 1, 2, 8, 12>}, {pipeline_mode = #tpu.pipeline_mode<synchronous>, transform_indices = @transform_2, window_bounds = array<i64: 3, 12, 128>}, {pipeline_mode = #tpu.pipeline_mode<synchronous>, transform_indices = @transform_3, window_bounds = array<i64: 3, 12, 128>}, {pipeline_mode = #tpu.pipeline_mode<synchronous>, transform_indices = @transform_4, window_bounds = array<i64: 2, 128>}, {transform_indices = @transform_5, window_bounds = array<i64: 1, 32, 128>}]} {
    %c0 = arith.constant 0 : index
    %c0_0 = arith.constant 0 : index
    %c0_1 = arith.constant 0 : index
    %c0_2 = arith.constant 0 : index
    %c0_3 = arith.constant 0 : index
    %0 = vector.load %arg2[%c0, %c0_0, %c0_1, %c0_2, %c0_3] : memref<1x4x2x8x12xbf16, #tpu.memory_space<vmem>>, vector<1x4x1x8x12xbf16>
    %1 = vector.shape_cast %0 : vector<1x4x1x8x12xbf16> to vector<4x8x12xbf16>
    %2 = vector.shape_cast %1 : vector<4x8x12xbf16> to vector<32x12xbf16>
    %c0_4 = arith.constant 0 : index
    %c0_5 = arith.constant 0 : index
    %c1 = arith.constant 1 : index
    %c0_6 = arith.constant 0 : index
    %c0_7 = arith.constant 0 : index
    %3 = vector.load %arg2[%c0_4, %c0_5, %c1, %c0_6, %c0_7] : memref<1x4x2x8x12xbf16, #tpu.memory_space<vmem>>, vector<1x4x1x8x12xbf16>
    %4 = vector.shape_cast %3 : vector<1x4x1x8x12xbf16> to vector<4x8x12xbf16>
    %5 = vector.shape_cast %4 : vector<4x8x12xbf16> to vector<32x12xbf16>
    %c0_8 = arith.constant 0 : index
    %c0_9 = arith.constant 0 : index
    %c0_10 = arith.constant 0 : index
    %6 = vector.load %arg4[%c0_8, %c0_9, %c0_10] : memref<3x12x128xbf16, #tpu.memory_space<vmem>>, vector<1x12x128xbf16>
    %7 = vector.shape_cast %6 : vector<1x12x128xbf16> to vector<12x128xbf16>
    %cst = arith.constant dense<0.000000e+00> : vector<32x128xf32>
    %8 = tpu.matmul %2, %7, %cst {dimension_numbers = #tpu.dot_dimension_numbers<[1], [0], [0], [1], [0, 0, 1, 1], [], []>} : vector<32x12xbf16>, vector<12x128xbf16>, vector<32x128xf32> -> vector<32x128xf32>
    %c0_11 = arith.constant 0 : index
    %c0_12 = arith.constant 0 : index
    %9 = vector.load %arg8[%c0_11, %c0_12] : memref<32x128xf32, #tpu.memory_space<vmem>>, vector<32x128xf32>
    tpu.vector_store %arg8[%c0_11, %c0_12], %8 {strides = array<i32>} : memref<32x128xf32, #tpu.memory_space<vmem>>, vector<32x128xf32>,
    %c0_13 = arith.constant 0 : index
    %c0_14 = arith.constant 0 : index
    %c0_15 = arith.constant 0 : index
    %10 = vector.load %arg5[%c0_13, %c0_14, %c0_15] : memref<3x12x128xbf16, #tpu.memory_space<vmem>>, vector<1x12x128xbf16>
    %11 = vector.shape_cast %10 : vector<1x12x128xbf16> to vector<12x128xbf16>
    %cst_16 = arith.constant dense<0.000000e+00> : vector<32x128xf32>
    %12 = tpu.matmul %2, %11, %cst_16 {dimension_numbers = #tpu.dot_dimension_numbers<[1], [0], [0], [1], [0, 0, 1, 1], [], []>} : vector<32x12xbf16>, vector<12x128xbf16>, vector<32x128xf32> -> vector<32x128xf32>
    %c0_17 = arith.constant 0 : index
    %c0_18 = arith.constant 0 : index
    %13 = vector.load %arg9[%c0_17, %c0_18] : memref<32x128xf32, #tpu.memory_space<vmem>>, vector<32x128xf32>
    tpu.vector_store %arg9[%c0_17, %c0_18], %12 {strides = array<i32>} : memref<32x128xf32, #tpu.memory_space<vmem>>, vector<32x128xf32>,
    %c0_19 = arith.constant 0 : index
    %c0_20 = arith.constant 0 : index
    %14 = vector.load %arg8[%c0_19, %c0_20] : memref<32x128xf32, #tpu.memory_space<vmem>>, vector<32x128xf32>
    %c1_21 = arith.constant 1 : index
    %c0_22 = arith.constant 0 : index
    %c0_23 = arith.constant 0 : index
    %15 = vector.load %arg4[%c1_21, %c0_22, %c0_23] : memref<3x12x128xbf16, #tpu.memory_space<vmem>>, vector<1x12x128xbf16>
    %16 = vector.shape_cast %15 : vector<1x12x128xbf16> to vector<12x128xbf16>
    %cst_24 = arith.constant dense<0.000000e+00> : vector<32x128xf32>
    %17 = tpu.matmul %5, %16, %cst_24 {dimension_numbers = #tpu.dot_dimension_numbers<[1], [0], [0], [1], [0, 0, 1, 1], [], []>} : vector<32x12xbf16>, vector<12x128xbf16>, vector<32x128xf32> -> vector<32x128xf32>
    %18 = arith.addf %14, %17 : vector<32x128xf32>
    %c0_25 = arith.constant 0 : index
    %c0_26 = arith.constant 0 : index
    %19 = vector.load %arg8[%c0_25, %c0_26] : memref<32x128xf32, #tpu.memory_space<vmem>>, vector<32x128xf32>
    tpu.vector_store %arg8[%c0_25, %c0_26], %18 {strides = array<i32>} : memref<32x128xf32, #tpu.memory_space<vmem>>, vector<32x128xf32>,
    %c0_27 = arith.constant 0 : index
    %c0_28 = arith.constant 0 : index
    %20 = vector.load %arg9[%c0_27, %c0_28] : memref<32x128xf32, #tpu.memory_space<vmem>>, vector<32x128xf32>
    %c1_29 = arith.constant 1 : index
    %c0_30 = arith.constant 0 : index
    %c0_31 = arith.constant 0 : index
    %21 = vector.load %arg5[%c1_29, %c0_30, %c0_31] : memref<3x12x128xbf16, #tpu.memory_space<vmem>>, vector<1x12x128xbf16>
    %22 = vector.shape_cast %21 : vector<1x12x128xbf16> to vector<12x128xbf16>
    %cst_32 = arith.constant dense<0.000000e+00> : vector<32x128xf32>
    %23 = tpu.matmul %5, %22, %cst_32 {dimension_numbers = #tpu.dot_dimension_numbers<[1], [0], [0], [1], [0, 0, 1, 1], [], []>} : vector<32x12xbf16>, vector<12x128xbf16>, vector<32x128xf32> -> vector<32x128xf32>
    %24 = arith.addf %20, %23 : vector<32x128xf32>
    %c0_33 = arith.constant 0 : index
    %c0_34 = arith.constant 0 : index
    %25 = vector.load %arg9[%c0_33, %c0_34] : memref<32x128xf32, #tpu.memory_space<vmem>>, vector<32x128xf32>
    tpu.vector_store %arg9[%c0_33, %c0_34], %24 {strides = array<i32>} : memref<32x128xf32, #tpu.memory_space<vmem>>, vector<32x128xf32>,
    %c0_35 = arith.constant 0 : index
    %c0_36 = arith.constant 0 : index
    %c1_37 = arith.constant 1 : index
    %c0_38 = arith.constant 0 : index
    %c0_39 = arith.constant 0 : index
    %26 = vector.load %arg2[%c0_35, %c0_36, %c1_37, %c0_38, %c0_39] : memref<1x4x2x8x12xbf16, #tpu.memory_space<vmem>>, vector<1x3x1x8x12xbf16>
    %27 = vector.shape_cast %26 : vector<1x3x1x8x12xbf16> to vector<3x8x12xbf16>
    %28 = vector.shape_cast %27 : vector<3x8x12xbf16> to vector<24x12xbf16>
    %c8 = arith.constant 8 : index
    %c0_40 = arith.constant 0 : index
    %29 = vector.load %arg8[%c8, %c0_40] : memref<32x128xf32, #tpu.memory_space<vmem>>, vector<24x128xf32>
    %c2 = arith.constant 2 : index
    %c0_41 = arith.constant 0 : index
    %c0_42 = arith.constant 0 : index
    %30 = vector.load %arg4[%c2, %c0_41, %c0_42] : memref<3x12x128xbf16, #tpu.memory_space<vmem>>, vector<1x12x128xbf16>
    %31 = vector.shape_cast %30 : vector<1x12x128xbf16> to vector<12x128xbf16>
    %cst_43 = arith.constant dense<0.000000e+00> : vector<24x128xf32>
    %32 = tpu.matmul %28, %31, %cst_43 {dimension_numbers = #tpu.dot_dimension_numbers<[1], [0], [0], [1], [0, 0, 1, 1], [], []>} : vector<24x12xbf16>, vector<12x128xbf16>, vector<24x128xf32> -> vector<24x128xf32>
    %33 = arith.addf %29, %32 : vector<24x128xf32>
    %c8_44 = arith.constant 8 : index
    %c0_45 = arith.constant 0 : index
    %34 = vector.load %arg8[%c8_44, %c0_45] : memref<32x128xf32, #tpu.memory_space<vmem>>, vector<24x128xf32>
    tpu.vector_store %arg8[%c8_44, %c0_45], %33 {strides = array<i32>} : memref<32x128xf32, #tpu.memory_space<vmem>>, vector<24x128xf32>,
    %c8_46 = arith.constant 8 : index
    %c0_47 = arith.constant 0 : index
    %35 = vector.load %arg9[%c8_46, %c0_47] : memref<32x128xf32, #tpu.memory_space<vmem>>, vector<24x128xf32>
    %c2_48 = arith.constant 2 : index
    %c0_49 = arith.constant 0 : index
    %c0_50 = arith.constant 0 : index
    %36 = vector.load %arg5[%c2_48, %c0_49, %c0_50] : memref<3x12x128xbf16, #tpu.memory_space<vmem>>, vector<1x12x128xbf16>
    %37 = vector.shape_cast %36 : vector<1x12x128xbf16> to vector<12x128xbf16>
    %cst_51 = arith.constant dense<0.000000e+00> : vector<24x128xf32>
    %38 = tpu.matmul %28, %37, %cst_51 {dimension_numbers = #tpu.dot_dimension_numbers<[1], [0], [0], [1], [0, 0, 1, 1], [], []>} : vector<24x12xbf16>, vector<12x128xbf16>, vector<24x128xf32> -> vector<24x128xf32>
    %39 = arith.addf %35, %38 : vector<24x128xf32>
    %c8_52 = arith.constant 8 : index
    %c0_53 = arith.constant 0 : index
    %40 = vector.load %arg9[%c8_52, %c0_53] : memref<32x128xf32, #tpu.memory_space<vmem>>, vector<24x128xf32>
    tpu.vector_store %arg9[%c8_52, %c0_53], %39 {strides = array<i32>} : memref<32x128xf32, #tpu.memory_space<vmem>>, vector<24x128xf32>,
    %c0_i32 = arith.constant 0 : i32
    %41 = arith.cmpi sgt, %arg1, %c0_i32 : i32
    %42 = arith.extui %41 : i1 to i32
    %c0_i32_54 = arith.constant 0 : i32
    %43 = arith.cmpi ne, %42, %c0_i32_54 : i32
    scf.if %43 {
      %c0_74 = arith.constant 0 : index
      %c0_75 = arith.constant 0 : index
      %c1_76 = arith.constant 1 : index
      %c0_77 = arith.constant 0 : index
      %c0_78 = arith.constant 0 : index
      %83 = vector.load %arg3[%c0_74, %c0_75, %c1_76, %c0_77, %c0_78] : memref<1x1x2x8x12xbf16, #tpu.memory_space<vmem>>, vector<1x1x1x8x12xbf16>
      %84 = vector.shape_cast %83 : vector<1x1x1x8x12xbf16> to vector<8x12xbf16>
      %c0_79 = arith.constant 0 : index
      %c0_80 = arith.constant 0 : index
      %85 = vector.load %arg8[%c0_79, %c0_80] : memref<32x128xf32, #tpu.memory_space<vmem>>, vector<8x128xf32>
      %c2_81 = arith.constant 2 : index
      %c0_82 = arith.constant 0 : index
      %c0_83 = arith.constant 0 : index
      %86 = vector.load %arg4[%c2_81, %c0_82, %c0_83] : memref<3x12x128xbf16, #tpu.memory_space<vmem>>, vector<1x12x128xbf16>
      %87 = vector.shape_cast %86 : vector<1x12x128xbf16> to vector<12x128xbf16>
      %cst_84 = arith.constant dense<0.000000e+00> : vector<8x128xf32>
      %88 = tpu.matmul %84, %87, %cst_84 {dimension_numbers = #tpu.dot_dimension_numbers<[1], [0], [0], [1], [0, 0, 1, 1], [], []>} : vector<8x12xbf16>, vector<12x128xbf16>, vector<8x128xf32> -> vector<8x128xf32>
      %89 = arith.addf %85, %88 : vector<8x128xf32>
      %c0_85 = arith.constant 0 : index
      %c0_86 = arith.constant 0 : index
      %90 = vector.load %arg8[%c0_85, %c0_86] : memref<32x128xf32, #tpu.memory_space<vmem>>, vector<8x128xf32>
      tpu.vector_store %arg8[%c0_85, %c0_86], %89 {strides = array<i32>} : memref<32x128xf32, #tpu.memory_space<vmem>>, vector<8x128xf32>,
      %c0_87 = arith.constant 0 : index
      %c0_88 = arith.constant 0 : index
      %91 = vector.load %arg9[%c0_87, %c0_88] : memref<32x128xf32, #tpu.memory_space<vmem>>, vector<8x128xf32>
      %c2_89 = arith.constant 2 : index
      %c0_90 = arith.constant 0 : index
      %c0_91 = arith.constant 0 : index
      %92 = vector.load %arg5[%c2_89, %c0_90, %c0_91] : memref<3x12x128xbf16, #tpu.memory_space<vmem>>, vector<1x12x128xbf16>
      %93 = vector.shape_cast %92 : vector<1x12x128xbf16> to vector<12x128xbf16>
      %cst_92 = arith.constant dense<0.000000e+00> : vector<8x128xf32>
      %94 = tpu.matmul %84, %93, %cst_92 {dimension_numbers = #tpu.dot_dimension_numbers<[1], [0], [0], [1], [0, 0, 1, 1], [], []>} : vector<8x12xbf16>, vector<12x128xbf16>, vector<8x128xf32> -> vector<8x128xf32>
      %95 = arith.addf %91, %94 : vector<8x128xf32>
      %c0_93 = arith.constant 0 : index
      %c0_94 = arith.constant 0 : index
      %96 = vector.load %arg9[%c0_93, %c0_94] : memref<32x128xf32, #tpu.memory_space<vmem>>, vector<8x128xf32>
      tpu.vector_store %arg9[%c0_93, %c0_94], %95 {strides = array<i32>} : memref<32x128xf32, #tpu.memory_space<vmem>>, vector<8x128xf32>,
    } else {
    }
    %c0_55 = arith.constant 0 : index
    %c0_56 = arith.constant 0 : index
    %44 = vector.load %arg8[%c0_55, %c0_56] : memref<32x128xf32, #tpu.memory_space<vmem>>, vector<32x128xf32>
    %c0_57 = arith.constant 0 : index
    %c0_58 = arith.constant 0 : index
    %45 = vector.load %arg9[%c0_57, %c0_58] : memref<32x128xf32, #tpu.memory_space<vmem>>, vector<32x128xf32>
    %cst_59 = arith.constant 0.000000e+00 : f32
    %46 = vector.broadcast %cst_59 : f32 to vector<1x128xf32>
    %47 = vector.extract_strided_slice %45 {offsets = [0, 0], sizes = [31, 128], strides = [1, 1]} : vector<32x128xf32> to vector<31x128xf32>
    %48 = tpu.concatenate %46, %47 in 0 : vector<1x128xf32>, vector<31x128xf32> -> vector<32x128xf32>
    %49 = tpu.iota {dimensions = array<i32: 0>} : vector<32x128xi32>
    %c8_i32 = arith.constant 8 : i32
    %c0_i32_60 = arith.constant 0 : i32
    %50 = arith.cmpi eq, %c8_i32, %c0_i32_60 : i32
    %c1_i32 = arith.constant 1 : i32
    %51 = arith.select %50, %c1_i32, %c8_i32 : i32
    %52 = vector.broadcast %51 : i32 to vector<32x128xi32>
    %53 = arith.remsi %49, %52 : vector<32x128xi32>
    %c0_i32_61 = arith.constant 0 : i32
    %54 = vector.broadcast %c0_i32_61 : i32 to vector<32x128xi32>
    %55 = arith.cmpi ne, %53, %54 : vector<32x128xi32>
    %c0_i32_62 = arith.constant 0 : i32
    %56 = vector.broadcast %c0_i32_62 : i32 to vector<32x128xi32>
    %57 = arith.cmpi slt, %53, %56 : vector<32x128xi32>
    %c0_i32_63 = arith.constant 0 : i32
    %58 = arith.cmpi slt, %51, %c0_i32_63 : i32
    %59 = vector.broadcast %58 : i1 to vector<32x128xi1>
    %60 = vector.broadcast %59 : vector<32x128xi1> to vector<32x128xi1>
    %61 = arith.xori %57, %60 : vector<32x128xi1>
    %62 = arith.andi %61, %55 : vector<32x128xi1>
    %63 = vector.broadcast %51 : i32 to vector<32x128xi32>
    %64 = arith.addi %53, %63 : vector<32x128xi32>
    %65 = arith.select %62, %64, %53 : vector<32x128xi1>, vector<32x128xi32>
    %c0_i32_64 = arith.constant 0 : i32
    %66 = vector.broadcast %c0_i32_64 : i32 to vector<32x128xi32>
    %67 = arith.cmpi eq, %65, %66 : vector<32x128xi32>
    %cst_65 = arith.constant 0.000000e+00 : f32
    %68 = vector.broadcast %cst_65 : f32 to vector<32x128xf32>
    %69 = arith.select %67, %68, %48 : vector<32x128xi1>, vector<32x128xf32>
    %70 = arith.addf %44, %69 : vector<32x128xf32>
    %c0_66 = arith.constant 0 : index
    %c0_67 = arith.constant 0 : index
    %71 = vector.load %arg6[%c0_66, %c0_67] : memref<2x128xf32, #tpu.memory_space<vmem>>, vector<1x128xf32>
    %72 = vector.broadcast %71 : vector<1x128xf32> to vector<32x128xf32>
    %73 = arith.mulf %70, %72 : vector<32x128xf32>
    %c1_68 = arith.constant 1 : index
    %c0_69 = arith.constant 0 : index
    %74 = vector.load %arg6[%c1_68, %c0_69] : memref<2x128xf32, #tpu.memory_space<vmem>>, vector<1x128xf32>
    %75 = vector.broadcast %74 : vector<1x128xf32> to vector<32x128xf32>
    %76 = arith.addf %73, %75 : vector<32x128xf32>
    %cst_70 = arith.constant 0.000000e+00 : f32
    %77 = vector.broadcast %cst_70 : f32 to vector<32x128xf32>
    %78 = arith.maximumf %76, %77 : vector<32x128xf32>
    %79 = arith.truncf %78 : vector<32x128xf32> to vector<32x128xbf16>
    %c0_71 = arith.constant 0 : index
    %c0_72 = arith.constant 0 : index
    %c0_73 = arith.constant 0 : index
    %80 = vector.load %arg7[%c0_71, %c0_72, %c0_73] : memref<1x32x128xbf16, #tpu.memory_space<vmem>>, vector<1x32x128xbf16>
    %81 = vector.shape_cast %80 : vector<1x32x128xbf16> to vector<32x128xbf16>
    %82 = vector.shape_cast %79 : vector<32x128xbf16> to vector<1x32x128xbf16>
    tpu.vector_store %arg7[%c0_71, %c0_72, %c0_73], %82 {strides = array<i32>} : memref<1x32x128xbf16, #tpu.memory_space<vmem>>, vector<1x32x128xbf16>,
    return
  }
  func.func @transform_0(%arg0: i32, %arg1: i32) -> (i32, i32, i32, i32, i32) {
    %c0_i32 = arith.constant 0 : i32
    %c0_i32_0 = arith.constant 0 : i32
    %c0_i32_1 = arith.constant 0 : i32
    %c0_i32_2 = arith.constant 0 : i32
    return %arg0, %arg1, %c0_i32, %c0_i32_0, %c0_i32_1 : i32, i32, i32, i32, i32
  }
  func.func @transform_1(%arg0: i32, %arg1: i32) -> (i32, i32, i32, i32, i32) {
    %c4_i32 = arith.constant 4 : i32
    %0 = arith.muli %arg1, %c4_i32 : i32
    %c1_i32 = arith.constant 1 : i32
    %1 = arith.subi %0, %c1_i32 : i32
    %c0_i32 = arith.constant 0 : i32
    %2 = arith.maxsi %1, %c0_i32 : i32
    %c0_i32_0 = arith.constant 0 : i32
    %c0_i32_1 = arith.constant 0 : i32
    %c0_i32_2 = arith.constant 0 : i32
    %c0_i32_3 = arith.constant 0 : i32
    return %arg0, %2, %c0_i32_0, %c0_i32_1, %c0_i32_2 : i32, i32, i32, i32, i32
  }
  func.func @transform_2(%arg0: i32, %arg1: i32) -> (i32, i32, i32) {
    %c0_i32 = arith.constant 0 : i32
    %c0_i32_0 = arith.constant 0 : i32
    %c0_i32_1 = arith.constant 0 : i32
    %c0_i32_2 = arith.constant 0 : i32
    return %c0_i32, %c0_i32_0, %c0_i32_1 : i32, i32, i32
  }
  func.func @transform_3(%arg0: i32, %arg1: i32) -> (i32, i32, i32) {
    %c0_i32 = arith.constant 0 : i32
    %c0_i32_0 = arith.constant 0 : i32
    %c0_i32_1 = arith.constant 0 : i32
    %c0_i32_2 = arith.constant 0 : i32
    return %c0_i32, %c0_i32_0, %c0_i32_1 : i32, i32, i32
  }
  func.func @transform_4(%arg0: i32, %arg1: i32) -> (i32, i32) {
    %c0_i32 = arith.constant 0 : i32
    %c0_i32_0 = arith.constant 0 : i32
    %c0_i32_1 = arith.constant 0 : i32
    return %c0_i32, %c0_i32_0 : i32, i32
  }
  func.func @transform_5(%arg0: i32, %arg1: i32) -> (i32, i32, i32) {
    %c0_i32 = arith.constant 0 : i32
    %c0_i32_0 = arith.constant 0 : i32
    return %arg0, %arg1, %c0_i32 : i32, i32, i32
  }
}

module attributes {stable_mosaic.version = 11 : i64} {
  func.func @_conv3x3s2_bn_relu_kernel(%arg0: i32, %arg1: i32, %arg2: memref<1x4x2x8x128xbf16, #tpu.memory_space<vmem>>, %arg3: memref<1x1x2x8x128xbf16, #tpu.memory_space<vmem>>, %arg4: memref<3x128x128xbf16, #tpu.memory_space<vmem>>, %arg5: memref<3x128x128xbf16, #tpu.memory_space<vmem>>, %arg6: memref<2x128xf32, #tpu.memory_space<vmem>>, %arg7: memref<1x32x128xbf16, #tpu.memory_space<vmem>>, %arg8: memref<32x128xf32, #tpu.memory_space<vmem>>, %arg9: memref<32x128xf32, #tpu.memory_space<vmem>>) attributes {dimension_semantics = [#tpu.dimension_semantics<parallel>, #tpu.dimension_semantics<parallel>], iteration_bounds = array<i64: 2, 2>, scalar_prefetch = 0 : i64, scratch_operands = 2 : i64, tpu.core_type = #tpu.core_type<tc>, window_params = [{transform_indices = @transform_0, window_bounds = array<i64: 1, 4, 2, 8, 128>}, {transform_indices = @transform_1, window_bounds = array<i64: 1, 1, 2, 8, 128>}, {pipeline_mode = #tpu.pipeline_mode<synchronous>, transform_indices = @transform_2, window_bounds = array<i64: 3, 128, 128>}, {pipeline_mode = #tpu.pipeline_mode<synchronous>, transform_indices = @transform_3, window_bounds = array<i64: 3, 128, 128>}, {pipeline_mode = #tpu.pipeline_mode<synchronous>, transform_indices = @transform_4, window_bounds = array<i64: 2, 128>}, {transform_indices = @transform_5, window_bounds = array<i64: 1, 32, 128>}]} {
    %c0 = arith.constant 0 : index
    %c0_0 = arith.constant 0 : index
    %c0_1 = arith.constant 0 : index
    %c0_2 = arith.constant 0 : index
    %c0_3 = arith.constant 0 : index
    %0 = vector.load %arg2[%c0, %c0_0, %c0_1, %c0_2, %c0_3] : memref<1x4x2x8x128xbf16, #tpu.memory_space<vmem>>, vector<1x4x1x8x128xbf16>
    %1 = vector.shape_cast %0 : vector<1x4x1x8x128xbf16> to vector<4x8x128xbf16>
    %2 = vector.shape_cast %1 : vector<4x8x128xbf16> to vector<32x128xbf16>
    %c0_4 = arith.constant 0 : index
    %c0_5 = arith.constant 0 : index
    %c1 = arith.constant 1 : index
    %c0_6 = arith.constant 0 : index
    %c0_7 = arith.constant 0 : index
    %3 = vector.load %arg2[%c0_4, %c0_5, %c1, %c0_6, %c0_7] : memref<1x4x2x8x128xbf16, #tpu.memory_space<vmem>>, vector<1x4x1x8x128xbf16>
    %4 = vector.shape_cast %3 : vector<1x4x1x8x128xbf16> to vector<4x8x128xbf16>
    %5 = vector.shape_cast %4 : vector<4x8x128xbf16> to vector<32x128xbf16>
    %c0_8 = arith.constant 0 : index
    %c0_9 = arith.constant 0 : index
    %c0_10 = arith.constant 0 : index
    %6 = vector.load %arg4[%c0_8, %c0_9, %c0_10] : memref<3x128x128xbf16, #tpu.memory_space<vmem>>, vector<1x128x128xbf16>
    %7 = vector.shape_cast %6 : vector<1x128x128xbf16> to vector<128x128xbf16>
    %cst = arith.constant dense<0.000000e+00> : vector<32x128xf32>
    %8 = tpu.matmul %2, %7, %cst {dimension_numbers = #tpu.dot_dimension_numbers<[1], [0], [0], [1], [0, 0, 1, 1], [], []>} : vector<32x128xbf16>, vector<128x128xbf16>, vector<32x128xf32> -> vector<32x128xf32>
    %c0_11 = arith.constant 0 : index
    %c0_12 = arith.constant 0 : index
    %9 = vector.load %arg8[%c0_11, %c0_12] : memref<32x128xf32, #tpu.memory_space<vmem>>, vector<32x128xf32>
    tpu.vector_store %arg8[%c0_11, %c0_12], %8 {strides = array<i32>} : memref<32x128xf32, #tpu.memory_space<vmem>>, vector<32x128xf32>,
    %c0_13 = arith.constant 0 : index
    %c0_14 = arith.constant 0 : index
    %c0_15 = arith.constant 0 : index
    %10 = vector.load %arg5[%c0_13, %c0_14, %c0_15] : memref<3x128x128xbf16, #tpu.memory_space<vmem>>, vector<1x128x128xbf16>
    %11 = vector.shape_cast %10 : vector<1x128x128xbf16> to vector<128x128xbf16>
    %cst_16 = arith.constant dense<0.000000e+00> : vector<32x128xf32>
    %12 = tpu.matmul %2, %11, %cst_16 {dimension_numbers = #tpu.dot_dimension_numbers<[1], [0], [0], [1], [0, 0, 1, 1], [], []>} : vector<32x128xbf16>, vector<128x128xbf16>, vector<32x128xf32> -> vector<32x128xf32>
    %c0_17 = arith.constant 0 : index
    %c0_18 = arith.constant 0 : index
    %13 = vector.load %arg9[%c0_17, %c0_18] : memref<32x128xf32, #tpu.memory_space<vmem>>, vector<32x128xf32>
    tpu.vector_store %arg9[%c0_17, %c0_18], %12 {strides = array<i32>} : memref<32x128xf32, #tpu.memory_space<vmem>>, vector<32x128xf32>,
    %c0_19 = arith.constant 0 : index
    %c0_20 = arith.constant 0 : index
    %14 = vector.load %arg8[%c0_19, %c0_20] : memref<32x128xf32, #tpu.memory_space<vmem>>, vector<32x128xf32>
    %c1_21 = arith.constant 1 : index
    %c0_22 = arith.constant 0 : index
    %c0_23 = arith.constant 0 : index
    %15 = vector.load %arg4[%c1_21, %c0_22, %c0_23] : memref<3x128x128xbf16, #tpu.memory_space<vmem>>, vector<1x128x128xbf16>
    %16 = vector.shape_cast %15 : vector<1x128x128xbf16> to vector<128x128xbf16>
    %cst_24 = arith.constant dense<0.000000e+00> : vector<32x128xf32>
    %17 = tpu.matmul %5, %16, %cst_24 {dimension_numbers = #tpu.dot_dimension_numbers<[1], [0], [0], [1], [0, 0, 1, 1], [], []>} : vector<32x128xbf16>, vector<128x128xbf16>, vector<32x128xf32> -> vector<32x128xf32>
    %18 = arith.addf %14, %17 : vector<32x128xf32>
    %c0_25 = arith.constant 0 : index
    %c0_26 = arith.constant 0 : index
    %19 = vector.load %arg8[%c0_25, %c0_26] : memref<32x128xf32, #tpu.memory_space<vmem>>, vector<32x128xf32>
    tpu.vector_store %arg8[%c0_25, %c0_26], %18 {strides = array<i32>} : memref<32x128xf32, #tpu.memory_space<vmem>>, vector<32x128xf32>,
    %c0_27 = arith.constant 0 : index
    %c0_28 = arith.constant 0 : index
    %20 = vector.load %arg9[%c0_27, %c0_28] : memref<32x128xf32, #tpu.memory_space<vmem>>, vector<32x128xf32>
    %c1_29 = arith.constant 1 : index
    %c0_30 = arith.constant 0 : index
    %c0_31 = arith.constant 0 : index
    %21 = vector.load %arg5[%c1_29, %c0_30, %c0_31] : memref<3x128x128xbf16, #tpu.memory_space<vmem>>, vector<1x128x128xbf16>
    %22 = vector.shape_cast %21 : vector<1x128x128xbf16> to vector<128x128xbf16>
    %cst_32 = arith.constant dense<0.000000e+00> : vector<32x128xf32>
    %23 = tpu.matmul %5, %22, %cst_32 {dimension_numbers = #tpu.dot_dimension_numbers<[1], [0], [0], [1], [0, 0, 1, 1], [], []>} : vector<32x128xbf16>, vector<128x128xbf16>, vector<32x128xf32> -> vector<32x128xf32>
    %24 = arith.addf %20, %23 : vector<32x128xf32>
    %c0_33 = arith.constant 0 : index
    %c0_34 = arith.constant 0 : index
    %25 = vector.load %arg9[%c0_33, %c0_34] : memref<32x128xf32, #tpu.memory_space<vmem>>, vector<32x128xf32>
    tpu.vector_store %arg9[%c0_33, %c0_34], %24 {strides = array<i32>} : memref<32x128xf32, #tpu.memory_space<vmem>>, vector<32x128xf32>,
    %c0_35 = arith.constant 0 : index
    %c0_36 = arith.constant 0 : index
    %c1_37 = arith.constant 1 : index
    %c0_38 = arith.constant 0 : index
    %c0_39 = arith.constant 0 : index
    %26 = vector.load %arg2[%c0_35, %c0_36, %c1_37, %c0_38, %c0_39] : memref<1x4x2x8x128xbf16, #tpu.memory_space<vmem>>, vector<1x3x1x8x128xbf16>
    %27 = vector.shape_cast %26 : vector<1x3x1x8x128xbf16> to vector<3x8x128xbf16>
    %28 = vector.shape_cast %27 : vector<3x8x128xbf16> to vector<24x128xbf16>
    %c8 = arith.constant 8 : index
    %c0_40 = arith.constant 0 : index
    %29 = vector.load %arg8[%c8, %c0_40] : memref<32x128xf32, #tpu.memory_space<vmem>>, vector<24x128xf32>
    %c2 = arith.constant 2 : index
    %c0_41 = arith.constant 0 : index
    %c0_42 = arith.constant 0 : index
    %30 = vector.load %arg4[%c2, %c0_41, %c0_42] : memref<3x128x128xbf16, #tpu.memory_space<vmem>>, vector<1x128x128xbf16>
    %31 = vector.shape_cast %30 : vector<1x128x128xbf16> to vector<128x128xbf16>
    %cst_43 = arith.constant dense<0.000000e+00> : vector<24x128xf32>
    %32 = tpu.matmul %28, %31, %cst_43 {dimension_numbers = #tpu.dot_dimension_numbers<[1], [0], [0], [1], [0, 0, 1, 1], [], []>} : vector<24x128xbf16>, vector<128x128xbf16>, vector<24x128xf32> -> vector<24x128xf32>
    %33 = arith.addf %29, %32 : vector<24x128xf32>
    %c8_44 = arith.constant 8 : index
    %c0_45 = arith.constant 0 : index
    %34 = vector.load %arg8[%c8_44, %c0_45] : memref<32x128xf32, #tpu.memory_space<vmem>>, vector<24x128xf32>
    tpu.vector_store %arg8[%c8_44, %c0_45], %33 {strides = array<i32>} : memref<32x128xf32, #tpu.memory_space<vmem>>, vector<24x128xf32>,
    %c8_46 = arith.constant 8 : index
    %c0_47 = arith.constant 0 : index
    %35 = vector.load %arg9[%c8_46, %c0_47] : memref<32x128xf32, #tpu.memory_space<vmem>>, vector<24x128xf32>
    %c2_48 = arith.constant 2 : index
    %c0_49 = arith.constant 0 : index
    %c0_50 = arith.constant 0 : index
    %36 = vector.load %arg5[%c2_48, %c0_49, %c0_50] : memref<3x128x128xbf16, #tpu.memory_space<vmem>>, vector<1x128x128xbf16>
    %37 = vector.shape_cast %36 : vector<1x128x128xbf16> to vector<128x128xbf16>
    %cst_51 = arith.constant dense<0.000000e+00> : vector<24x128xf32>
    %38 = tpu.matmul %28, %37, %cst_51 {dimension_numbers = #tpu.dot_dimension_numbers<[1], [0], [0], [1], [0, 0, 1, 1], [], []>} : vector<24x128xbf16>, vector<128x128xbf16>, vector<24x128xf32> -> vector<24x128xf32>
    %39 = arith.addf %35, %38 : vector<24x128xf32>
    %c8_52 = arith.constant 8 : index
    %c0_53 = arith.constant 0 : index
    %40 = vector.load %arg9[%c8_52, %c0_53] : memref<32x128xf32, #tpu.memory_space<vmem>>, vector<24x128xf32>
    tpu.vector_store %arg9[%c8_52, %c0_53], %39 {strides = array<i32>} : memref<32x128xf32, #tpu.memory_space<vmem>>, vector<24x128xf32>,
    %c0_i32 = arith.constant 0 : i32
    %41 = arith.cmpi sgt, %arg1, %c0_i32 : i32
    %42 = arith.extui %41 : i1 to i32
    %c0_i32_54 = arith.constant 0 : i32
    %43 = arith.cmpi ne, %42, %c0_i32_54 : i32
    scf.if %43 {
      %c0_74 = arith.constant 0 : index
      %c0_75 = arith.constant 0 : index
      %c1_76 = arith.constant 1 : index
      %c0_77 = arith.constant 0 : index
      %c0_78 = arith.constant 0 : index
      %83 = vector.load %arg3[%c0_74, %c0_75, %c1_76, %c0_77, %c0_78] : memref<1x1x2x8x128xbf16, #tpu.memory_space<vmem>>, vector<1x1x1x8x128xbf16>
      %84 = vector.shape_cast %83 : vector<1x1x1x8x128xbf16> to vector<8x128xbf16>
      %c0_79 = arith.constant 0 : index
      %c0_80 = arith.constant 0 : index
      %85 = vector.load %arg8[%c0_79, %c0_80] : memref<32x128xf32, #tpu.memory_space<vmem>>, vector<8x128xf32>
      %c2_81 = arith.constant 2 : index
      %c0_82 = arith.constant 0 : index
      %c0_83 = arith.constant 0 : index
      %86 = vector.load %arg4[%c2_81, %c0_82, %c0_83] : memref<3x128x128xbf16, #tpu.memory_space<vmem>>, vector<1x128x128xbf16>
      %87 = vector.shape_cast %86 : vector<1x128x128xbf16> to vector<128x128xbf16>
      %cst_84 = arith.constant dense<0.000000e+00> : vector<8x128xf32>
      %88 = tpu.matmul %84, %87, %cst_84 {dimension_numbers = #tpu.dot_dimension_numbers<[1], [0], [0], [1], [0, 0, 1, 1], [], []>} : vector<8x128xbf16>, vector<128x128xbf16>, vector<8x128xf32> -> vector<8x128xf32>
      %89 = arith.addf %85, %88 : vector<8x128xf32>
      %c0_85 = arith.constant 0 : index
      %c0_86 = arith.constant 0 : index
      %90 = vector.load %arg8[%c0_85, %c0_86] : memref<32x128xf32, #tpu.memory_space<vmem>>, vector<8x128xf32>
      tpu.vector_store %arg8[%c0_85, %c0_86], %89 {strides = array<i32>} : memref<32x128xf32, #tpu.memory_space<vmem>>, vector<8x128xf32>,
      %c0_87 = arith.constant 0 : index
      %c0_88 = arith.constant 0 : index
      %91 = vector.load %arg9[%c0_87, %c0_88] : memref<32x128xf32, #tpu.memory_space<vmem>>, vector<8x128xf32>
      %c2_89 = arith.constant 2 : index
      %c0_90 = arith.constant 0 : index
      %c0_91 = arith.constant 0 : index
      %92 = vector.load %arg5[%c2_89, %c0_90, %c0_91] : memref<3x128x128xbf16, #tpu.memory_space<vmem>>, vector<1x128x128xbf16>
      %93 = vector.shape_cast %92 : vector<1x128x128xbf16> to vector<128x128xbf16>
      %cst_92 = arith.constant dense<0.000000e+00> : vector<8x128xf32>
      %94 = tpu.matmul %84, %93, %cst_92 {dimension_numbers = #tpu.dot_dimension_numbers<[1], [0], [0], [1], [0, 0, 1, 1], [], []>} : vector<8x128xbf16>, vector<128x128xbf16>, vector<8x128xf32> -> vector<8x128xf32>
      %95 = arith.addf %91, %94 : vector<8x128xf32>
      %c0_93 = arith.constant 0 : index
      %c0_94 = arith.constant 0 : index
      %96 = vector.load %arg9[%c0_93, %c0_94] : memref<32x128xf32, #tpu.memory_space<vmem>>, vector<8x128xf32>
      tpu.vector_store %arg9[%c0_93, %c0_94], %95 {strides = array<i32>} : memref<32x128xf32, #tpu.memory_space<vmem>>, vector<8x128xf32>,
    } else {
    }
    %c0_55 = arith.constant 0 : index
    %c0_56 = arith.constant 0 : index
    %44 = vector.load %arg8[%c0_55, %c0_56] : memref<32x128xf32, #tpu.memory_space<vmem>>, vector<32x128xf32>
    %c0_57 = arith.constant 0 : index
    %c0_58 = arith.constant 0 : index
    %45 = vector.load %arg9[%c0_57, %c0_58] : memref<32x128xf32, #tpu.memory_space<vmem>>, vector<32x128xf32>
    %cst_59 = arith.constant 0.000000e+00 : f32
    %46 = vector.broadcast %cst_59 : f32 to vector<1x128xf32>
    %47 = vector.extract_strided_slice %45 {offsets = [0, 0], sizes = [31, 128], strides = [1, 1]} : vector<32x128xf32> to vector<31x128xf32>
    %48 = tpu.concatenate %46, %47 in 0 : vector<1x128xf32>, vector<31x128xf32> -> vector<32x128xf32>
    %49 = tpu.iota {dimensions = array<i32: 0>} : vector<32x128xi32>
    %c8_i32 = arith.constant 8 : i32
    %c0_i32_60 = arith.constant 0 : i32
    %50 = arith.cmpi eq, %c8_i32, %c0_i32_60 : i32
    %c1_i32 = arith.constant 1 : i32
    %51 = arith.select %50, %c1_i32, %c8_i32 : i32
    %52 = vector.broadcast %51 : i32 to vector<32x128xi32>
    %53 = arith.remsi %49, %52 : vector<32x128xi32>
    %c0_i32_61 = arith.constant 0 : i32
    %54 = vector.broadcast %c0_i32_61 : i32 to vector<32x128xi32>
    %55 = arith.cmpi ne, %53, %54 : vector<32x128xi32>
    %c0_i32_62 = arith.constant 0 : i32
    %56 = vector.broadcast %c0_i32_62 : i32 to vector<32x128xi32>
    %57 = arith.cmpi slt, %53, %56 : vector<32x128xi32>
    %c0_i32_63 = arith.constant 0 : i32
    %58 = arith.cmpi slt, %51, %c0_i32_63 : i32
    %59 = vector.broadcast %58 : i1 to vector<32x128xi1>
    %60 = vector.broadcast %59 : vector<32x128xi1> to vector<32x128xi1>
    %61 = arith.xori %57, %60 : vector<32x128xi1>
    %62 = arith.andi %61, %55 : vector<32x128xi1>
    %63 = vector.broadcast %51 : i32 to vector<32x128xi32>
    %64 = arith.addi %53, %63 : vector<32x128xi32>
    %65 = arith.select %62, %64, %53 : vector<32x128xi1>, vector<32x128xi32>
    %c0_i32_64 = arith.constant 0 : i32
    %66 = vector.broadcast %c0_i32_64 : i32 to vector<32x128xi32>
    %67 = arith.cmpi eq, %65, %66 : vector<32x128xi32>
    %cst_65 = arith.constant 0.000000e+00 : f32
    %68 = vector.broadcast %cst_65 : f32 to vector<32x128xf32>
    %69 = arith.select %67, %68, %48 : vector<32x128xi1>, vector<32x128xf32>
    %70 = arith.addf %44, %69 : vector<32x128xf32>
    %c0_66 = arith.constant 0 : index
    %c0_67 = arith.constant 0 : index
    %71 = vector.load %arg6[%c0_66, %c0_67] : memref<2x128xf32, #tpu.memory_space<vmem>>, vector<1x128xf32>
    %72 = vector.broadcast %71 : vector<1x128xf32> to vector<32x128xf32>
    %73 = arith.mulf %70, %72 : vector<32x128xf32>
    %c1_68 = arith.constant 1 : index
    %c0_69 = arith.constant 0 : index
    %74 = vector.load %arg6[%c1_68, %c0_69] : memref<2x128xf32, #tpu.memory_space<vmem>>, vector<1x128xf32>
    %75 = vector.broadcast %74 : vector<1x128xf32> to vector<32x128xf32>
    %76 = arith.addf %73, %75 : vector<32x128xf32>
    %cst_70 = arith.constant 0.000000e+00 : f32
    %77 = vector.broadcast %cst_70 : f32 to vector<32x128xf32>
    %78 = arith.maximumf %76, %77 : vector<32x128xf32>
    %79 = arith.truncf %78 : vector<32x128xf32> to vector<32x128xbf16>
    %c0_71 = arith.constant 0 : index
    %c0_72 = arith.constant 0 : index
    %c0_73 = arith.constant 0 : index
    %80 = vector.load %arg7[%c0_71, %c0_72, %c0_73] : memref<1x32x128xbf16, #tpu.memory_space<vmem>>, vector<1x32x128xbf16>
    %81 = vector.shape_cast %80 : vector<1x32x128xbf16> to vector<32x128xbf16>
    %82 = vector.shape_cast %79 : vector<32x128xbf16> to vector<1x32x128xbf16>
    tpu.vector_store %arg7[%c0_71, %c0_72, %c0_73], %82 {strides = array<i32>} : memref<1x32x128xbf16, #tpu.memory_space<vmem>>, vector<1x32x128xbf16>,
    return
  }
  func.func @transform_0(%arg0: i32, %arg1: i32) -> (i32, i32, i32, i32, i32) {
    %c0_i32 = arith.constant 0 : i32
    %c0_i32_0 = arith.constant 0 : i32
    %c0_i32_1 = arith.constant 0 : i32
    %c0_i32_2 = arith.constant 0 : i32
    return %arg0, %arg1, %c0_i32, %c0_i32_0, %c0_i32_1 : i32, i32, i32, i32, i32
  }
  func.func @transform_1(%arg0: i32, %arg1: i32) -> (i32, i32, i32, i32, i32) {
    %c4_i32 = arith.constant 4 : i32
    %0 = arith.muli %arg1, %c4_i32 : i32
    %c1_i32 = arith.constant 1 : i32
    %1 = arith.subi %0, %c1_i32 : i32
    %c0_i32 = arith.constant 0 : i32
    %2 = arith.maxsi %1, %c0_i32 : i32
    %c0_i32_0 = arith.constant 0 : i32
    %c0_i32_1 = arith.constant 0 : i32
    %c0_i32_2 = arith.constant 0 : i32
    %c0_i32_3 = arith.constant 0 : i32
    return %arg0, %2, %c0_i32_0, %c0_i32_1, %c0_i32_2 : i32, i32, i32, i32, i32
  }
  func.func @transform_2(%arg0: i32, %arg1: i32) -> (i32, i32, i32) {
    %c0_i32 = arith.constant 0 : i32
    %c0_i32_0 = arith.constant 0 : i32
    %c0_i32_1 = arith.constant 0 : i32
    %c0_i32_2 = arith.constant 0 : i32
    return %c0_i32, %c0_i32_0, %c0_i32_1 : i32, i32, i32
  }
  func.func @transform_3(%arg0: i32, %arg1: i32) -> (i32, i32, i32) {
    %c0_i32 = arith.constant 0 : i32
    %c0_i32_0 = arith.constant 0 : i32
    %c0_i32_1 = arith.constant 0 : i32
    %c0_i32_2 = arith.constant 0 : i32
    return %c0_i32, %c0_i32_0, %c0_i32_1 : i32, i32, i32
  }
  func.func @transform_4(%arg0: i32, %arg1: i32) -> (i32, i32) {
    %c0_i32 = arith.constant 0 : i32
    %c0_i32_0 = arith.constant 0 : i32
    %c0_i32_1 = arith.constant 0 : i32
    return %c0_i32, %c0_i32_0 : i32, i32
  }
  func.func @transform_5(%arg0: i32, %arg1: i32) -> (i32, i32, i32) {
    %c0_i32 = arith.constant 0 : i32
    %c0_i32_0 = arith.constant 0 : i32
    return %arg0, %arg1, %c0_i32 : i32, i32, i32
  }
}

module attributes {stable_mosaic.version = 11 : i64} {
  func.func @_conv3x3s2_bn_relu_kernel(%arg0: i32, %arg1: i32, %arg2: memref<1x4x2x4x256xbf16, #tpu.memory_space<vmem>>, %arg3: memref<1x1x2x4x256xbf16, #tpu.memory_space<vmem>>, %arg4: memref<3x256x256xbf16, #tpu.memory_space<vmem>>, %arg5: memref<3x256x256xbf16, #tpu.memory_space<vmem>>, %arg6: memref<2x256xf32, #tpu.memory_space<vmem>>, %arg7: memref<1x16x256xbf16, #tpu.memory_space<vmem>>, %arg8: memref<16x256xf32, #tpu.memory_space<vmem>>, %arg9: memref<16x256xf32, #tpu.memory_space<vmem>>) attributes {dimension_semantics = [#tpu.dimension_semantics<parallel>, #tpu.dimension_semantics<parallel>], iteration_bounds = array<i64: 2, 1>, scalar_prefetch = 0 : i64, scratch_operands = 2 : i64, tpu.core_type = #tpu.core_type<tc>, window_params = [{transform_indices = @transform_0, window_bounds = array<i64: 1, 4, 2, 4, 256>}, {transform_indices = @transform_1, window_bounds = array<i64: 1, 1, 2, 4, 256>}, {pipeline_mode = #tpu.pipeline_mode<synchronous>, transform_indices = @transform_2, window_bounds = array<i64: 3, 256, 256>}, {pipeline_mode = #tpu.pipeline_mode<synchronous>, transform_indices = @transform_3, window_bounds = array<i64: 3, 256, 256>}, {pipeline_mode = #tpu.pipeline_mode<synchronous>, transform_indices = @transform_4, window_bounds = array<i64: 2, 256>}, {transform_indices = @transform_5, window_bounds = array<i64: 1, 16, 256>}]} {
    %c0 = arith.constant 0 : index
    %c0_0 = arith.constant 0 : index
    %c0_1 = arith.constant 0 : index
    %c0_2 = arith.constant 0 : index
    %c0_3 = arith.constant 0 : index
    %0 = vector.load %arg2[%c0, %c0_0, %c0_1, %c0_2, %c0_3] : memref<1x4x2x4x256xbf16, #tpu.memory_space<vmem>>, vector<1x4x1x4x256xbf16>
    %1 = vector.shape_cast %0 : vector<1x4x1x4x256xbf16> to vector<4x4x256xbf16>
    %2 = vector.shape_cast %1 : vector<4x4x256xbf16> to vector<16x256xbf16>
    %c0_4 = arith.constant 0 : index
    %c0_5 = arith.constant 0 : index
    %c1 = arith.constant 1 : index
    %c0_6 = arith.constant 0 : index
    %c0_7 = arith.constant 0 : index
    %3 = vector.load %arg2[%c0_4, %c0_5, %c1, %c0_6, %c0_7] : memref<1x4x2x4x256xbf16, #tpu.memory_space<vmem>>, vector<1x4x1x4x256xbf16>
    %4 = vector.shape_cast %3 : vector<1x4x1x4x256xbf16> to vector<4x4x256xbf16>
    %5 = vector.shape_cast %4 : vector<4x4x256xbf16> to vector<16x256xbf16>
    %c0_8 = arith.constant 0 : index
    %c0_9 = arith.constant 0 : index
    %c0_10 = arith.constant 0 : index
    %6 = vector.load %arg4[%c0_8, %c0_9, %c0_10] : memref<3x256x256xbf16, #tpu.memory_space<vmem>>, vector<1x256x256xbf16>
    %7 = vector.shape_cast %6 : vector<1x256x256xbf16> to vector<256x256xbf16>
    %cst = arith.constant dense<0.000000e+00> : vector<16x256xf32>
    %8 = tpu.matmul %2, %7, %cst {dimension_numbers = #tpu.dot_dimension_numbers<[1], [0], [0], [1], [0, 0, 1, 1], [], []>} : vector<16x256xbf16>, vector<256x256xbf16>, vector<16x256xf32> -> vector<16x256xf32>
    %c0_11 = arith.constant 0 : index
    %c0_12 = arith.constant 0 : index
    %9 = vector.load %arg8[%c0_11, %c0_12] : memref<16x256xf32, #tpu.memory_space<vmem>>, vector<16x256xf32>
    tpu.vector_store %arg8[%c0_11, %c0_12], %8 {strides = array<i32>} : memref<16x256xf32, #tpu.memory_space<vmem>>, vector<16x256xf32>,
    %c0_13 = arith.constant 0 : index
    %c0_14 = arith.constant 0 : index
    %c0_15 = arith.constant 0 : index
    %10 = vector.load %arg5[%c0_13, %c0_14, %c0_15] : memref<3x256x256xbf16, #tpu.memory_space<vmem>>, vector<1x256x256xbf16>
    %11 = vector.shape_cast %10 : vector<1x256x256xbf16> to vector<256x256xbf16>
    %cst_16 = arith.constant dense<0.000000e+00> : vector<16x256xf32>
    %12 = tpu.matmul %2, %11, %cst_16 {dimension_numbers = #tpu.dot_dimension_numbers<[1], [0], [0], [1], [0, 0, 1, 1], [], []>} : vector<16x256xbf16>, vector<256x256xbf16>, vector<16x256xf32> -> vector<16x256xf32>
    %c0_17 = arith.constant 0 : index
    %c0_18 = arith.constant 0 : index
    %13 = vector.load %arg9[%c0_17, %c0_18] : memref<16x256xf32, #tpu.memory_space<vmem>>, vector<16x256xf32>
    tpu.vector_store %arg9[%c0_17, %c0_18], %12 {strides = array<i32>} : memref<16x256xf32, #tpu.memory_space<vmem>>, vector<16x256xf32>,
    %c0_19 = arith.constant 0 : index
    %c0_20 = arith.constant 0 : index
    %14 = vector.load %arg8[%c0_19, %c0_20] : memref<16x256xf32, #tpu.memory_space<vmem>>, vector<16x256xf32>
    %c1_21 = arith.constant 1 : index
    %c0_22 = arith.constant 0 : index
    %c0_23 = arith.constant 0 : index
    %15 = vector.load %arg4[%c1_21, %c0_22, %c0_23] : memref<3x256x256xbf16, #tpu.memory_space<vmem>>, vector<1x256x256xbf16>
    %16 = vector.shape_cast %15 : vector<1x256x256xbf16> to vector<256x256xbf16>
    %cst_24 = arith.constant dense<0.000000e+00> : vector<16x256xf32>
    %17 = tpu.matmul %5, %16, %cst_24 {dimension_numbers = #tpu.dot_dimension_numbers<[1], [0], [0], [1], [0, 0, 1, 1], [], []>} : vector<16x256xbf16>, vector<256x256xbf16>, vector<16x256xf32> -> vector<16x256xf32>
    %18 = arith.addf %14, %17 : vector<16x256xf32>
    %c0_25 = arith.constant 0 : index
    %c0_26 = arith.constant 0 : index
    %19 = vector.load %arg8[%c0_25, %c0_26] : memref<16x256xf32, #tpu.memory_space<vmem>>, vector<16x256xf32>
    tpu.vector_store %arg8[%c0_25, %c0_26], %18 {strides = array<i32>} : memref<16x256xf32, #tpu.memory_space<vmem>>, vector<16x256xf32>,
    %c0_27 = arith.constant 0 : index
    %c0_28 = arith.constant 0 : index
    %20 = vector.load %arg9[%c0_27, %c0_28] : memref<16x256xf32, #tpu.memory_space<vmem>>, vector<16x256xf32>
    %c1_29 = arith.constant 1 : index
    %c0_30 = arith.constant 0 : index
    %c0_31 = arith.constant 0 : index
    %21 = vector.load %arg5[%c1_29, %c0_30, %c0_31] : memref<3x256x256xbf16, #tpu.memory_space<vmem>>, vector<1x256x256xbf16>
    %22 = vector.shape_cast %21 : vector<1x256x256xbf16> to vector<256x256xbf16>
    %cst_32 = arith.constant dense<0.000000e+00> : vector<16x256xf32>
    %23 = tpu.matmul %5, %22, %cst_32 {dimension_numbers = #tpu.dot_dimension_numbers<[1], [0], [0], [1], [0, 0, 1, 1], [], []>} : vector<16x256xbf16>, vector<256x256xbf16>, vector<16x256xf32> -> vector<16x256xf32>
    %24 = arith.addf %20, %23 : vector<16x256xf32>
    %c0_33 = arith.constant 0 : index
    %c0_34 = arith.constant 0 : index
    %25 = vector.load %arg9[%c0_33, %c0_34] : memref<16x256xf32, #tpu.memory_space<vmem>>, vector<16x256xf32>
    tpu.vector_store %arg9[%c0_33, %c0_34], %24 {strides = array<i32>} : memref<16x256xf32, #tpu.memory_space<vmem>>, vector<16x256xf32>,
    %c0_35 = arith.constant 0 : index
    %c0_36 = arith.constant 0 : index
    %c1_37 = arith.constant 1 : index
    %c0_38 = arith.constant 0 : index
    %c0_39 = arith.constant 0 : index
    %26 = vector.load %arg2[%c0_35, %c0_36, %c1_37, %c0_38, %c0_39] : memref<1x4x2x4x256xbf16, #tpu.memory_space<vmem>>, vector<1x3x1x4x256xbf16>
    %27 = vector.shape_cast %26 : vector<1x3x1x4x256xbf16> to vector<3x4x256xbf16>
    %28 = vector.shape_cast %27 : vector<3x4x256xbf16> to vector<12x256xbf16>
    %c4 = arith.constant 4 : index
    %c0_40 = arith.constant 0 : index
    %29 = vector.load %arg8[%c4, %c0_40] : memref<16x256xf32, #tpu.memory_space<vmem>>, vector<12x256xf32>
    %c2 = arith.constant 2 : index
    %c0_41 = arith.constant 0 : index
    %c0_42 = arith.constant 0 : index
    %30 = vector.load %arg4[%c2, %c0_41, %c0_42] : memref<3x256x256xbf16, #tpu.memory_space<vmem>>, vector<1x256x256xbf16>
    %31 = vector.shape_cast %30 : vector<1x256x256xbf16> to vector<256x256xbf16>
    %cst_43 = arith.constant dense<0.000000e+00> : vector<12x256xf32>
    %32 = tpu.matmul %28, %31, %cst_43 {dimension_numbers = #tpu.dot_dimension_numbers<[1], [0], [0], [1], [0, 0, 1, 1], [], []>} : vector<12x256xbf16>, vector<256x256xbf16>, vector<12x256xf32> -> vector<12x256xf32>
    %33 = arith.addf %29, %32 : vector<12x256xf32>
    %c4_44 = arith.constant 4 : index
    %c0_45 = arith.constant 0 : index
    %34 = vector.load %arg8[%c4_44, %c0_45] : memref<16x256xf32, #tpu.memory_space<vmem>>, vector<12x256xf32>
    tpu.vector_store %arg8[%c4_44, %c0_45], %33 {strides = array<i32>} : memref<16x256xf32, #tpu.memory_space<vmem>>, vector<12x256xf32>,
    %c4_46 = arith.constant 4 : index
    %c0_47 = arith.constant 0 : index
    %35 = vector.load %arg9[%c4_46, %c0_47] : memref<16x256xf32, #tpu.memory_space<vmem>>, vector<12x256xf32>
    %c2_48 = arith.constant 2 : index
    %c0_49 = arith.constant 0 : index
    %c0_50 = arith.constant 0 : index
    %36 = vector.load %arg5[%c2_48, %c0_49, %c0_50] : memref<3x256x256xbf16, #tpu.memory_space<vmem>>, vector<1x256x256xbf16>
    %37 = vector.shape_cast %36 : vector<1x256x256xbf16> to vector<256x256xbf16>
    %cst_51 = arith.constant dense<0.000000e+00> : vector<12x256xf32>
    %38 = tpu.matmul %28, %37, %cst_51 {dimension_numbers = #tpu.dot_dimension_numbers<[1], [0], [0], [1], [0, 0, 1, 1], [], []>} : vector<12x256xbf16>, vector<256x256xbf16>, vector<12x256xf32> -> vector<12x256xf32>
    %39 = arith.addf %35, %38 : vector<12x256xf32>
    %c4_52 = arith.constant 4 : index
    %c0_53 = arith.constant 0 : index
    %40 = vector.load %arg9[%c4_52, %c0_53] : memref<16x256xf32, #tpu.memory_space<vmem>>, vector<12x256xf32>
    tpu.vector_store %arg9[%c4_52, %c0_53], %39 {strides = array<i32>} : memref<16x256xf32, #tpu.memory_space<vmem>>, vector<12x256xf32>,
    %c0_i32 = arith.constant 0 : i32
    %41 = arith.cmpi sgt, %arg1, %c0_i32 : i32
    %42 = arith.extui %41 : i1 to i32
    %c0_i32_54 = arith.constant 0 : i32
    %43 = arith.cmpi ne, %42, %c0_i32_54 : i32
    scf.if %43 {
      %c0_74 = arith.constant 0 : index
      %c0_75 = arith.constant 0 : index
      %c1_76 = arith.constant 1 : index
      %c0_77 = arith.constant 0 : index
      %c0_78 = arith.constant 0 : index
      %83 = vector.load %arg3[%c0_74, %c0_75, %c1_76, %c0_77, %c0_78] : memref<1x1x2x4x256xbf16, #tpu.memory_space<vmem>>, vector<1x1x1x4x256xbf16>
      %84 = vector.shape_cast %83 : vector<1x1x1x4x256xbf16> to vector<4x256xbf16>
      %c0_79 = arith.constant 0 : index
      %c0_80 = arith.constant 0 : index
      %85 = vector.load %arg8[%c0_79, %c0_80] : memref<16x256xf32, #tpu.memory_space<vmem>>, vector<4x256xf32>
      %c2_81 = arith.constant 2 : index
      %c0_82 = arith.constant 0 : index
      %c0_83 = arith.constant 0 : index
      %86 = vector.load %arg4[%c2_81, %c0_82, %c0_83] : memref<3x256x256xbf16, #tpu.memory_space<vmem>>, vector<1x256x256xbf16>
      %87 = vector.shape_cast %86 : vector<1x256x256xbf16> to vector<256x256xbf16>
      %cst_84 = arith.constant dense<0.000000e+00> : vector<4x256xf32>
      %88 = tpu.matmul %84, %87, %cst_84 {dimension_numbers = #tpu.dot_dimension_numbers<[1], [0], [0], [1], [0, 0, 1, 1], [], []>} : vector<4x256xbf16>, vector<256x256xbf16>, vector<4x256xf32> -> vector<4x256xf32>
      %89 = arith.addf %85, %88 : vector<4x256xf32>
      %c0_85 = arith.constant 0 : index
      %c0_86 = arith.constant 0 : index
      %90 = vector.load %arg8[%c0_85, %c0_86] : memref<16x256xf32, #tpu.memory_space<vmem>>, vector<4x256xf32>
      tpu.vector_store %arg8[%c0_85, %c0_86], %89 {strides = array<i32>} : memref<16x256xf32, #tpu.memory_space<vmem>>, vector<4x256xf32>,
      %c0_87 = arith.constant 0 : index
      %c0_88 = arith.constant 0 : index
      %91 = vector.load %arg9[%c0_87, %c0_88] : memref<16x256xf32, #tpu.memory_space<vmem>>, vector<4x256xf32>
      %c2_89 = arith.constant 2 : index
      %c0_90 = arith.constant 0 : index
      %c0_91 = arith.constant 0 : index
      %92 = vector.load %arg5[%c2_89, %c0_90, %c0_91] : memref<3x256x256xbf16, #tpu.memory_space<vmem>>, vector<1x256x256xbf16>
      %93 = vector.shape_cast %92 : vector<1x256x256xbf16> to vector<256x256xbf16>
      %cst_92 = arith.constant dense<0.000000e+00> : vector<4x256xf32>
      %94 = tpu.matmul %84, %93, %cst_92 {dimension_numbers = #tpu.dot_dimension_numbers<[1], [0], [0], [1], [0, 0, 1, 1], [], []>} : vector<4x256xbf16>, vector<256x256xbf16>, vector<4x256xf32> -> vector<4x256xf32>
      %95 = arith.addf %91, %94 : vector<4x256xf32>
      %c0_93 = arith.constant 0 : index
      %c0_94 = arith.constant 0 : index
      %96 = vector.load %arg9[%c0_93, %c0_94] : memref<16x256xf32, #tpu.memory_space<vmem>>, vector<4x256xf32>
      tpu.vector_store %arg9[%c0_93, %c0_94], %95 {strides = array<i32>} : memref<16x256xf32, #tpu.memory_space<vmem>>, vector<4x256xf32>,
    } else {
    }
    %c0_55 = arith.constant 0 : index
    %c0_56 = arith.constant 0 : index
    %44 = vector.load %arg8[%c0_55, %c0_56] : memref<16x256xf32, #tpu.memory_space<vmem>>, vector<16x256xf32>
    %c0_57 = arith.constant 0 : index
    %c0_58 = arith.constant 0 : index
    %45 = vector.load %arg9[%c0_57, %c0_58] : memref<16x256xf32, #tpu.memory_space<vmem>>, vector<16x256xf32>
    %cst_59 = arith.constant 0.000000e+00 : f32
    %46 = vector.broadcast %cst_59 : f32 to vector<1x256xf32>
    %47 = vector.extract_strided_slice %45 {offsets = [0, 0], sizes = [15, 256], strides = [1, 1]} : vector<16x256xf32> to vector<15x256xf32>
    %48 = tpu.concatenate %46, %47 in 0 : vector<1x256xf32>, vector<15x256xf32> -> vector<16x256xf32>
    %49 = tpu.iota {dimensions = array<i32: 0>} : vector<16x256xi32>
    %c4_i32 = arith.constant 4 : i32
    %c0_i32_60 = arith.constant 0 : i32
    %50 = arith.cmpi eq, %c4_i32, %c0_i32_60 : i32
    %c1_i32 = arith.constant 1 : i32
    %51 = arith.select %50, %c1_i32, %c4_i32 : i32
    %52 = vector.broadcast %51 : i32 to vector<16x256xi32>
    %53 = arith.remsi %49, %52 : vector<16x256xi32>
    %c0_i32_61 = arith.constant 0 : i32
    %54 = vector.broadcast %c0_i32_61 : i32 to vector<16x256xi32>
    %55 = arith.cmpi ne, %53, %54 : vector<16x256xi32>
    %c0_i32_62 = arith.constant 0 : i32
    %56 = vector.broadcast %c0_i32_62 : i32 to vector<16x256xi32>
    %57 = arith.cmpi slt, %53, %56 : vector<16x256xi32>
    %c0_i32_63 = arith.constant 0 : i32
    %58 = arith.cmpi slt, %51, %c0_i32_63 : i32
    %59 = vector.broadcast %58 : i1 to vector<16x256xi1>
    %60 = vector.broadcast %59 : vector<16x256xi1> to vector<16x256xi1>
    %61 = arith.xori %57, %60 : vector<16x256xi1>
    %62 = arith.andi %61, %55 : vector<16x256xi1>
    %63 = vector.broadcast %51 : i32 to vector<16x256xi32>
    %64 = arith.addi %53, %63 : vector<16x256xi32>
    %65 = arith.select %62, %64, %53 : vector<16x256xi1>, vector<16x256xi32>
    %c0_i32_64 = arith.constant 0 : i32
    %66 = vector.broadcast %c0_i32_64 : i32 to vector<16x256xi32>
    %67 = arith.cmpi eq, %65, %66 : vector<16x256xi32>
    %cst_65 = arith.constant 0.000000e+00 : f32
    %68 = vector.broadcast %cst_65 : f32 to vector<16x256xf32>
    %69 = arith.select %67, %68, %48 : vector<16x256xi1>, vector<16x256xf32>
    %70 = arith.addf %44, %69 : vector<16x256xf32>
    %c0_66 = arith.constant 0 : index
    %c0_67 = arith.constant 0 : index
    %71 = vector.load %arg6[%c0_66, %c0_67] : memref<2x256xf32, #tpu.memory_space<vmem>>, vector<1x256xf32>
    %72 = vector.broadcast %71 : vector<1x256xf32> to vector<16x256xf32>
    %73 = arith.mulf %70, %72 : vector<16x256xf32>
    %c1_68 = arith.constant 1 : index
    %c0_69 = arith.constant 0 : index
    %74 = vector.load %arg6[%c1_68, %c0_69] : memref<2x256xf32, #tpu.memory_space<vmem>>, vector<1x256xf32>
    %75 = vector.broadcast %74 : vector<1x256xf32> to vector<16x256xf32>
    %76 = arith.addf %73, %75 : vector<16x256xf32>
    %cst_70 = arith.constant 0.000000e+00 : f32
    %77 = vector.broadcast %cst_70 : f32 to vector<16x256xf32>
    %78 = arith.maximumf %76, %77 : vector<16x256xf32>
    %79 = arith.truncf %78 : vector<16x256xf32> to vector<16x256xbf16>
    %c0_71 = arith.constant 0 : index
    %c0_72 = arith.constant 0 : index
    %c0_73 = arith.constant 0 : index
    %80 = vector.load %arg7[%c0_71, %c0_72, %c0_73] : memref<1x16x256xbf16, #tpu.memory_space<vmem>>, vector<1x16x256xbf16>
    %81 = vector.shape_cast %80 : vector<1x16x256xbf16> to vector<16x256xbf16>
    %82 = vector.shape_cast %79 : vector<16x256xbf16> to vector<1x16x256xbf16>
    tpu.vector_store %arg7[%c0_71, %c0_72, %c0_73], %82 {strides = array<i32>} : memref<1x16x256xbf16, #tpu.memory_space<vmem>>, vector<1x16x256xbf16>,
    return
  }
  func.func @transform_0(%arg0: i32, %arg1: i32) -> (i32, i32, i32, i32, i32) {
    %c0_i32 = arith.constant 0 : i32
    %c0_i32_0 = arith.constant 0 : i32
    %c0_i32_1 = arith.constant 0 : i32
    %c0_i32_2 = arith.constant 0 : i32
    return %arg0, %arg1, %c0_i32, %c0_i32_0, %c0_i32_1 : i32, i32, i32, i32, i32
  }
  func.func @transform_1(%arg0: i32, %arg1: i32) -> (i32, i32, i32, i32, i32) {
    %c4_i32 = arith.constant 4 : i32
    %0 = arith.muli %arg1, %c4_i32 : i32
    %c1_i32 = arith.constant 1 : i32
    %1 = arith.subi %0, %c1_i32 : i32
    %c0_i32 = arith.constant 0 : i32
    %2 = arith.maxsi %1, %c0_i32 : i32
    %c0_i32_0 = arith.constant 0 : i32
    %c0_i32_1 = arith.constant 0 : i32
    %c0_i32_2 = arith.constant 0 : i32
    %c0_i32_3 = arith.constant 0 : i32
    return %arg0, %2, %c0_i32_0, %c0_i32_1, %c0_i32_2 : i32, i32, i32, i32, i32
  }
  func.func @transform_2(%arg0: i32, %arg1: i32) -> (i32, i32, i32) {
    %c0_i32 = arith.constant 0 : i32
    %c0_i32_0 = arith.constant 0 : i32
    %c0_i32_1 = arith.constant 0 : i32
    %c0_i32_2 = arith.constant 0 : i32
    return %c0_i32, %c0_i32_0, %c0_i32_1 : i32, i32, i32
  }
  func.func @transform_3(%arg0: i32, %arg1: i32) -> (i32, i32, i32) {
    %c0_i32 = arith.constant 0 : i32
    %c0_i32_0 = arith.constant 0 : i32
    %c0_i32_1 = arith.constant 0 : i32
    %c0_i32_2 = arith.constant 0 : i32
    return %c0_i32, %c0_i32_0, %c0_i32_1 : i32, i32, i32
  }
  func.func @transform_4(%arg0: i32, %arg1: i32) -> (i32, i32) {
    %c0_i32 = arith.constant 0 : i32
    %c0_i32_0 = arith.constant 0 : i32
    %c0_i32_1 = arith.constant 0 : i32
    return %c0_i32, %c0_i32_0 : i32, i32
  }
  func.func @transform_5(%arg0: i32, %arg1: i32) -> (i32, i32, i32) {
    %c0_i32 = arith.constant 0 : i32
    %c0_i32_0 = arith.constant 0 : i32
    return %arg0, %arg1, %c0_i32 : i32, i32, i32
  }
}

</mosaic_0001>

<llo_original>
// kernel: tile.17
$region0: #{tile.17}
  #allocation0 [shape = 's32[1]{0}', space=sflag, size = 0x4, scoped, tag = 'scoped memory for tile.17']
  %s0 = inlined_call_operand.vmem [shape: f32[64], index: 0, kind: input, shape index: {}]
  %s1 = inlined_call_operand.vmem [shape: f32[2,64], index: 1, kind: output, shape index: {}]
  // Predicated region
  $region2: #{tile.17} parent=0 // pred_check
    _
  $region3: #{tile.17} parent=0 // pred_check_branch
    %3 = sbr.rel (0) target = $region5
  $region4: #{tile.17} parent=0 // pred_region
    _
  $region5: #{tile.17} parent=0 // pred_fallthru
    _
  %v4 = vld [vmem:[%s0] ss:$0 sm:$0xff]
  %5 = vst [vmem:[%s1] sm:$0x3] %v4

// kernel: tile.22
$region0: #{tile.22}
  %s0 = inlined_call_operand.vmem [shape: f32[2,64], index: 0, kind: input, shape index: {}]
  %s1 = inlined_call_operand.vmem [shape: f32[1,128], index: 1, kind: output, shape index: {}]
  $region1: #{tile.22} parent=0
    #allocation0 [shape = 'u8[4096]{0}', space=vmem, size = 0x1000, scoped, tag = 'scoped mem for output reshape']
    #allocation1 [shape = 'u8[4096]{0}', space=vmem, size = 0x1000, scoped, tag = 'scoped mem for input reshape']
    %s3 = sshllo.u32 0, 2
    %v4 = vld [vmem:[%s0] sm:%s3]
    %5 = vst [vmem:[#allocation1] sm:%s3] %v4
    %v6 = vld [vmem:[#allocation1] sm:$0x1]
    %vm7 = vcmask 523264
    %8 = vst.msk [vmem:[#allocation0] sm:$0x1] %vm7, %v6
    %s9 = scalar_lea.vmem [#allocation1], 1
    %v10 = vld [vmem:[%s9] sm:$0x1]
    %11 = vrot.lane.b32.xlu0 %v10, 64
    %v12 = vpop.permute.xlu0 %11
    %vm13 = vcmask 1048064
    %14 = vst.msk [vmem:[#allocation0] sm:$0x1] %vm13, %v12
    %s16 = sshllo.u32 0, 1
    %v18 = vld [vmem:[#allocation0] sm:%s16]
    %s19 = sshllo.u32 0, 1
    %20 = vst [vmem:[%s1] sm:%s19] %v18

// kernel: spatial_path_forward.3
$region0: #{spatial_path_forward.3}
  #allocation0 [shape = 'u32[]', space=smem, size = 0x4, offset = 0x4, fixed_abs, tag = 'smem constant byte address 0x4 - core index']
  #allocation1 [shape = 'u32[144,128]{1,0:T(1,128)}', space=vmem, size = 0x12000, scoped, tag = 'internal scratch']
  #allocation2 [shape = 'f32[32,128]{1,0:T(8,128)}', space=vmem, size = 0x4000, scoped, tag = 'scratch operand']
  #allocation3 [shape = 'f32[32,128]{1,0:T(8,128)}', space=vmem, size = 0x4000, scoped, tag = 'scratch operand']
  %s0 = inlined_call_operand.vmem [shape: bf16[2,16,2,8,12], index: 0, kind: input, shape index: {}, may-alias: {0,1}]
  %s1 = inlined_call_operand.vmem [shape: bf16[2,16,2,8,12], index: 1, kind: input, shape index: {}, may-alias: {0,1}]
  %s2 = inlined_call_operand.vmem [shape: bf16[3,12,128], index: 2, kind: input, shape index: {}]
  %s3 = inlined_call_operand.vmem [shape: bf16[3,12,128], index: 3, kind: input, shape index: {}]
  %s4 = inlined_call_operand.vmem [shape: f32[2,128], index: 4, kind: input, shape index: {}]
  %s5 = inlined_call_operand.vmem [shape: bf16[2,128,128], index: 5, kind: output, shape index: {}]
  %s6 = sld [smem:[#allocation0]]
  $region57: #{spatial_path_forward.3} parent=0
    _
  %s8 = ssub.s32 1, %s6
  %s9 = scalar_select 0, %s8, %s6
  loop: start=0, step=1, limit=10
  $region2: #{spatial_path_forward.3} parent=0 // loop_pre_header
    _
  $region3: #{spatial_path_forward.3} parent=0 // loop_header
    %s11 = sphi 0, %s15
    %p12 = scmp.ge.s32.totalorder %s11, 10
    %s18 = sphi 0, %s30
    %s19 = sphi 0, %s26
    %s20 = sphi 0, %s18
    %s21 = sphi 0, %s19
    %s22 = sphi 0, %s20
    %s23 = sphi 0, %s21
    %s35 = sphi 0, %s37
    %s38 = sphi 0, %s35
    %s39 = sphi 0, %s38
    %s55 = sphi 0, %s39
    %s71 = sphi 0, %s73
    %s74 = sphi 0, %s71
    %s75 = sphi 0, %s74
    %s91 = sphi 0, %s75
    %s95 = sphi 0, %s95
    %s97 = sphi 0, %s95
    %s98 = sphi 0, %s97
    %s112 = sphi 0, %s98
    %s116 = sphi 0, %s116
    %s118 = sphi 0, %s116
    %s119 = sphi 0, %s118
    %s133 = sphi 0, %s119
    %s137 = sphi 0, %s137
    %s139 = sphi 0, %s137
    %s140 = sphi 0, %s139
    %s154 = sphi 0, %s140
    %s162 = sphi 0, %s164
    %s165 = sphi 0, %s162
    %s166 = sphi 0, %s165
    %s182 = sphi 0, %s166
  $region4: #{spatial_path_forward.3} parent=0 // loop_header_branch
    %14 = sbr.rel (%p12) target = $region8
  $region5: #{spatial_path_forward.3} parent=0 // loop_body
    %s16 = ssub.s32 %s11, 1
    %s17 = ssub.s32 %s11, 2
    %s24 = sadd.s32 1, %s19
    %p25 = scmp.ge.s32.totalorder %s24, 4
    %s26 = scalar_select %p25, 0, %s24
    %s27 = sadd.s32 1, %s18
    %s28 = scalar_select %p25, %s27, %s18
    %p29 = scmp.ge.s32.totalorder %s28, 2
    %s30 = scalar_select %p29, 0, %s28
    %s31 = ssub.s32 %s18, %s30
    %s32 = ssub.s32 %s19, %s26
    %s33 = sor.u32 %s31, %s32
    %p34 = scmp.eq.s32.totalorder %s33, 0
    %s36 = sadd.s32 %s35, 1
    %s37 = scalar_select %p34, %s35, %s36
    %p40 = pneg %p34
    %p41 = scmp.eq.s32.totalorder %s11, 7
    %p42 = por %p40, %p41
    %p43 = scmp.ne.s32.totalorder %s35, %s38
    %p44 = scmp.eq.s32.totalorder %s11, 0
    %p45 = por %p43, %p44
    %p46 = scmp.ne.s32.totalorder %s35, %s38
    %p47 = scmp.eq.s32.totalorder %s16, 7
    %p48 = por %p46, %p47
    %p49 = scmp.ne.s32.totalorder %s38, %s39
    %p50 = scmp.eq.s32.totalorder %s16, 0
    %p51 = por %p49, %p50
    %p52 = scmp.ne.s32.totalorder %s38, %s39
    %p53 = scmp.eq.s32.totalorder %s17, 7
    %p54 = por %p52, %p53
    %p56 = scmp.ne.s32.totalorder %s39, %s55
    %p57 = scmp.eq.s32.totalorder %s17, 0
    %p58 = por %p56, %p57
    %s59 = smul.u32 %s19, 4
    %s60 = ssub.s32 %s59, 1
    %p61 = scmp.gt.s32.totalorder %s60, 0
    %s62 = scalar_select %p61, %s60, 0
    %s63 = smul.u32 %s26, 4
    %s64 = ssub.s32 %s63, 1
    %p65 = scmp.gt.s32.totalorder %s64, 0
    %s66 = scalar_select %p65, %s64, 0
    %s67 = ssub.s32 %s18, %s30
    %s68 = ssub.s32 %s62, %s66
    %s69 = sor.u32 %s67, %s68
    %p70 = scmp.eq.s32.totalorder %s69, 0
    %s72 = sadd.s32 %s71, 1
    %s73 = scalar_select %p70, %s71, %s72
    %p76 = pneg %p70
    %p77 = scmp.eq.s32.totalorder %s11, 7
    %p78 = por %p76, %p77
    %p79 = scmp.ne.s32.totalorder %s71, %s74
    %p80 = scmp.eq.s32.totalorder %s11, 0
    %p81 = por %p79, %p80
    %p82 = scmp.ne.s32.totalorder %s71, %s74
    %p83 = scmp.eq.s32.totalorder %s16, 7
    %p84 = por %p82, %p83
    %p85 = scmp.ne.s32.totalorder %s74, %s75
    %p86 = scmp.eq.s32.totalorder %s16, 0
    %p87 = por %p85, %p86
    %p88 = scmp.ne.s32.totalorder %s74, %s75
    %p89 = scmp.eq.s32.totalorder %s17, 7
    %p90 = por %p88, %p89
    %p92 = scmp.ne.s32.totalorder %s75, %s91
    %p93 = scmp.eq.s32.totalorder %s17, 0
    %p94 = por %p92, %p93
    %s96 = sadd.s32 %s95, 1
    %p99 = scmp.eq.s32.totalorder %s11, 7
    %p100 = scmp.ne.s32.totalorder %s95, %s97
    %p101 = scmp.eq.s32.totalorder %s11, 0
    %p102 = por %p100, %p101
    %p103 = scmp.ne.s32.totalorder %s95, %s97
    %p104 = scmp.eq.s32.totalorder %s16, 7
    %p105 = por %p103, %p104
    %p106 = scmp.ne.s32.totalorder %s97, %s98
    %p107 = scmp.eq.s32.totalorder %s16, 0
    %p108 = por %p106, %p107
    %p109 = scmp.ne.s32.totalorder %s97, %s98
    %p110 = scmp.eq.s32.totalorder %s17, 7
    %p111 = por %p109, %p110
    %p113 = scmp.ne.s32.totalorder %s98, %s112
    %p114 = scmp.eq.s32.totalorder %s17, 0
    %p115 = por %p113, %p114
    %s117 = sadd.s32 %s116, 1
    %p120 = scmp.eq.s32.totalorder %s11, 7
    %p121 = scmp.ne.s32.totalorder %s116, %s118
    %p122 = scmp.eq.s32.totalorder %s11, 0
    %p123 = por %p121, %p122
    %p124 = scmp.ne.s32.totalorder %s116, %s118
    %p125 = scmp.eq.s32.totalorder %s16, 7
    %p126 = por %p124, %p125
    %p127 = scmp.ne.s32.totalorder %s118, %s119
    %p128 = scmp.eq.s32.totalorder %s16, 0
    %p129 = por %p127, %p128
    %p130 = scmp.ne.s32.totalorder %s118, %s119
    %p131 = scmp.eq.s32.totalorder %s17, 7
    %p132 = por %p130, %p131
    %p134 = scmp.ne.s32.totalorder %s119, %s133
    %p135 = scmp.eq.s32.totalorder %s17, 0
    %p136 = por %p134, %p135
    %s138 = sadd.s32 %s137, 1
    %p141 = scmp.eq.s32.totalorder %s11, 7
    %p142 = scmp.ne.s32.totalorder %s137, %s139
    %p143 = scmp.eq.s32.totalorder %s11, 0
    %p144 = por %p142, %p143
    %p145 = scmp.ne.s32.totalorder %s137, %s139
    %p146 = scmp.eq.s32.totalorder %s16, 7
    %p147 = por %p145, %p146
    %p148 = scmp.ne.s32.totalorder %s139, %s140
    %p149 = scmp.eq.s32.totalorder %s16, 0
    %p150 = por %p148, %p149
    %p151 = scmp.ne.s32.totalorder %s139, %s140
    %p152 = scmp.eq.s32.totalorder %s17, 7
    %p153 = por %p151, %p152
    %p155 = scmp.ne.s32.totalorder %s140, %s154
    %p156 = scmp.eq.s32.totalorder %s17, 0
    %p157 = por %p155, %p156
    %s158 = ssub.s32 %s18, %s30
    %s159 = ssub.s32 %s19, %s26
    %s160 = sor.u32 %s158, %s159
    %p161 = scmp.eq.s32.totalorder %s160, 0
    %s163 = sadd.s32 %s162, 1
    %s164 = scalar_select %p161, %s162, %s163
    %p167 = pneg %p161
    %p168 = scmp.eq.s32.totalorder %s11, 7
    %p169 = por %p167, %p168
    %p170 = scmp.ne.s32.totalorder %s162, %s165
    %p171 = scmp.eq.s32.totalorder %s11, 0
    %p172 = por %p170, %p171
    %p173 = scmp.ne.s32.totalorder %s162, %s165
    %p174 = scmp.eq.s32.totalorder %s16, 7
    %p175 = por %p173, %p174
    %p176 = scmp.ne.s32.totalorder %s165, %s166
    %p177 = scmp.eq.s32.totalorder %s16, 0
    %p178 = por %p176, %p177
    %p179 = scmp.ne.s32.totalorder %s165, %s166
    %p180 = scmp.eq.s32.totalorder %s17, 7
    %p181 = por %p179, %p180
    %p183 = scmp.ne.s32.totalorder %s166, %s182
    %p184 = scmp.eq.s32.totalorder %s17, 0
    %p185 = por %p183, %p184
    %p186 = scmp.le.s32.totalorder 1, %s11
    %p187 = scmp.lt.s32.totalorder %s11, 9
    %p188 = pnand %p186, %p187
    %p189 = pneg %p188
    // Predicated region
    $region9: #{spatial_path_forward.3} parent=5 // pred_check
      _
    $region10: #{spatial_path_forward.3} parent=5 // pred_check_branch
      %191 = sbr.rel (%p188) target = $region12
    $region11: #{spatial_path_forward.3} parent=5 // pred_region
      %s192 = ssub.s32 %s11, 1
      // Predicated region
      $region13: #{spatial_path_forward.3} parent=11 // pred_check
        %p193 = pneg %p108
      $region14: #{spatial_path_forward.3} parent=11 // pred_check_branch
        %195 = sbr.rel (%p193) target = $region16
      $region15: #{spatial_path_forward.3} parent=11 // pred_region
        _
      $region16: #{spatial_path_forward.3} parent=11 // pred_fallthru
        _
      // Predicated region
      $region17: #{spatial_path_forward.3} parent=11 // pred_check
        %p196 = pneg %p129
      $region18: #{spatial_path_forward.3} parent=11 // pred_check_branch
        %198 = sbr.rel (%p196) target = $region20
      $region19: #{spatial_path_forward.3} parent=11 // pred_region
        _
      $region20: #{spatial_path_forward.3} parent=11 // pred_fallthru
        _
      // Predicated region
      $region21: #{spatial_path_forward.3} parent=11 // pred_check
        %p199 = pneg %p150
      $region22: #{spatial_path_forward.3} parent=11 // pred_check_branch
        %201 = sbr.rel (%p199) target = $region24
      $region23: #{spatial_path_forward.3} parent=11 // pred_region
        _
      $region24: #{spatial_path_forward.3} parent=11 // pred_fallthru
        _
    $region12: #{spatial_path_forward.3} parent=5 // pred_fallthru
      _
    %p202 = scmp.lt.s32.totalorder %s11, 8
    // Predicated region
    $region25: #{spatial_path_forward.3} parent=5 // pred_check
      %p203 = pneg %p202
    $region26: #{spatial_path_forward.3} parent=5 // pred_check_branch
      %205 = sbr.rel (%p203) target = $region28
    $region27: #{spatial_path_forward.3} parent=5 // pred_region
      // Predicated region
      $region29: #{spatial_path_forward.3} parent=27 // pred_check
        %p206 = pneg %p45
      $region30: #{spatial_path_forward.3} parent=27 // pred_check_branch
        %208 = sbr.rel (%p206) target = $region32
      $region31: #{spatial_path_forward.3} parent=27 // pred_region
        %s209 = smul.u32 4, %s19
        %p210 = scmp.lt.s32.totalorder %s18, 1
        %s211 = scalar_select %p210, %s18, 1
        %p212 = scmp.lt.s32.totalorder %s209, 15
        %s213 = scalar_select %p212, %s209, 15
        %s214 = smul.addr %s213, 2
        %s215 = smul.addr %s211, 32
        %s216 = sadd.s32 %s214, %s215
        %s217 = smul.addr %s216, 4
        %s218 = scalar_lea.vmem %s0, %s217
        %s219 = smul.u32 4, %s19
      $region32: #{spatial_path_forward.3} parent=27 // pred_fallthru
        _
      // Predicated region
      $region33: #{spatial_path_forward.3} parent=27 // pred_check
        %p220 = pneg %p81
      $region34: #{spatial_path_forward.3} parent=27 // pred_check_branch
        %222 = sbr.rel (%p220) target = $region36
      $region35: #{spatial_path_forward.3} parent=27 // pred_region
        %s223 = smul.u32 %s19, 4
        %s224 = ssub.s32 %s223, 1
        %p225 = scmp.gt.s32.totalorder %s224, 0
        %s226 = scalar_select %p225, %s224, 0
        %p227 = scmp.lt.s32.totalorder %s18, 1
        %s228 = scalar_select %p227, %s18, 1
        %p229 = scmp.lt.s32.totalorder %s226, 15
        %s230 = scalar_select %p229, %s226, 15
        %s231 = smul.addr %s230, 2
        %s232 = smul.addr %s228, 32
        %s233 = sadd.s32 %s231, %s232
        %s234 = smul.addr %s233, 4
        %s235 = scalar_lea.vmem %s1, %s234
        %s236 = smul.u32 %s19, 4
        %s237 = ssub.s32 %s236, 1
        %p238 = scmp.gt.s32.totalorder %s237, 0
        %s239 = scalar_select %p238, %s237, 0
      $region36: #{spatial_path_forward.3} parent=27 // pred_fallthru
        _
    $region28: #{spatial_path_forward.3} parent=5 // pred_fallthru
      _
    %p240 = scmp.le.s32.totalorder 1, %s11
    %p241 = scmp.lt.s32.totalorder %s11, 9
    %p242 = pnand %p240, %p241
    %p243 = pneg %p242
    // Predicated region
    $region37: #{spatial_path_forward.3} parent=5 // pred_check
      _
    $region38: #{spatial_path_forward.3} parent=5 // pred_check_branch
      %245 = sbr.rel (%p242) target = $region40
    $region39: #{spatial_path_forward.3} parent=5 // pred_region
      %s246 = ssub.s32 %s11, 1
      %s247 = smul.u32 4, %s21
      %p248 = scmp.lt.s32.totalorder %s20, 1
      %s249 = scalar_select %p248, %s20, 1
      %p250 = scmp.lt.s32.totalorder %s247, 15
      %s251 = scalar_select %p250, %s247, 15
      %s252 = smul.addr %s251, 2
      %s253 = smul.addr %s249, 32
      %s254 = sadd.s32 %s252, %s253
      %s255 = smul.addr %s254, 4
      %s256 = scalar_lea.vmem %s0, %s255
      %p257 = pneg %p51
      %p258 = pneg %p48
      %s259 = smul.u32 %s21, 4
      %s260 = ssub.s32 %s259, 1
      %p261 = scmp.gt.s32.totalorder %s260, 0
      %s262 = scalar_select %p261, %s260, 0
      %p263 = scmp.lt.s32.totalorder %s20, 1
      %s264 = scalar_select %p263, %s20, 1
      %p265 = scmp.lt.s32.totalorder %s262, 15
      %s266 = scalar_select %p265, %s262, 15
      %s267 = smul.addr %s266, 2
      %s268 = smul.addr %s264, 32
      %s269 = sadd.s32 %s267, %s268
      %s270 = smul.addr %s269, 4
      %s271 = scalar_lea.vmem %s1, %s270
      %p272 = pneg %p87
      %p273 = pneg %p84
      %p274 = pneg %p108
      %p275 = pneg %p105
      %p276 = pneg %p129
      %p277 = pneg %p126
      %p278 = pneg %p150
      %p279 = pneg %p147
      %p280 = pneg %p178
      %p281 = pneg %p175
      %s282 = smul.u32 4, %s21
      %p283 = scmp.lt.s32.totalorder %s20, 1
      %s284 = scalar_select %p283, %s20, 1
      %p285 = scmp.lt.s32.totalorder %s282, 15
      %s286 = scalar_select %p285, %s282, 15
      %s287 = smul.addr %s284, 16
      %s288 = sadd.s32 %s286, %s287
      %s289 = smul.addr %s288, 4
      %s290 = scalar_lea.vmem %s5, %s289
      %s291 = smul.u32 4, %s21
      %p292 = scmp.lt.s32.totalorder %s20, 1
      %s293 = scalar_select %p292, %s20, 1
      %p294 = scmp.lt.s32.totalorder %s291, 15
      %s295 = scalar_select %p294, %s291, 15
      %s296 = smul.addr %s295, 2
      %s297 = smul.addr %s293, 32
      %s298 = sadd.s32 %s296, %s297
      %s299 = smul.addr %s298, 4
      %s300 = scalar_lea.vmem %s0, %s299
      %s301 = smul.u32 4, %s21
      %s302 = smul.u32 %s21, 4
      %s303 = ssub.s32 %s302, 1
      %p304 = scmp.gt.s32.totalorder %s303, 0
      %s305 = scalar_select %p304, %s303, 0
      %p306 = scmp.lt.s32.totalorder %s20, 1
      %s307 = scalar_select %p306, %s20, 1
      %p308 = scmp.lt.s32.totalorder %s305, 15
      %s309 = scalar_select %p308, %s305, 15
      %s310 = smul.addr %s309, 2
      %s311 = smul.addr %s307, 32
      %s312 = sadd.s32 %s310, %s311
      %s313 = smul.addr %s312, 4
      %s314 = scalar_lea.vmem %s1, %s313
      %s315 = smul.u32 %s21, 4
      %s316 = ssub.s32 %s315, 1
      %p317 = scmp.gt.s32.totalorder %s316, 0
      %s318 = scalar_select %p317, %s316, 0
      %s319 = smul.u32 4, %s21
      %p320 = scmp.lt.s32.totalorder %s20, 1
      %s321 = scalar_select %p320, %s20, 1
      %p322 = scmp.lt.s32.totalorder %s319, 15
      %s323 = scalar_select %p322, %s319, 15
      %s324 = smul.addr %s321, 16
      %s325 = sadd.s32 %s323, %s324
      %s326 = smul.addr %s325, 4
      %s327 = scalar_lea.vmem %s5, %s326
      %s328 = smul.u32 4, %s21
      %v330 = vld [vmem:[%s300] sm:$0xf]
      %v331 = vld [vmem:[%s300 + $0x8] sm:$0xf]
      %v332 = vld [vmem:[%s300 + $0x10] sm:$0xf]
      %v333 = vld [vmem:[%s300 + $0x18] sm:$0xf]
      %s334 = scalar_lea.vmem %s300, 4
      %v335 = vld [vmem:[%s334] sm:$0xf]
      %v336 = vld [vmem:[%s334 + $0x8] sm:$0xf]
      %v337 = vld [vmem:[%s334 + $0x10] sm:$0xf]
      %v338 = vld [vmem:[%s334 + $0x18] sm:$0xf]
      %v339 = vld [vmem:[%s2] sm:$0xf]
      %v340 = vld [vmem:[%s2 + $0x4] sm:$0x3]
      %v345 = vunpack.c.l.b16 %v330
      %v346 = vunpack.c.l.b16 %v331
      %v347 = vunpack.c.l.b16 %v332
      %v348 = vunpack.c.l.b16 %v333
      %v349 = vpack.c.b16 %v346, %v345
      %v350 = vpack.c.b16 %v348, %v347
      %v353 = vunpack.c.l.b16 %v339
      %v354 = vunpack.c.l.b16 %v340
      %v355 = vpack.c.b16 %v354, %v353
      %vm356 = vcmask 97280
      %v358 = vsel %vm356, %v349, 0
      %v361 = vsel %vm356, %v350, 0
      %vm363 = vcmask 1045504
      %v365 = vsel %vm363, %v355, 0
      %367 = vmatprep.subr.bf16.mxu0 0
      %368 = vmatpush1.bf16.msra.mxu0 %v365
      %369 = vmatprep.subr.bf16.mxu0 0
      %370 = vmatpush1.bf16.msra.mxu0 0
      %371 = vmatprep.subr.bf16.mxu0 0
      %372 = vmatpush1.bf16.msra.mxu0 0
      %373 = vmatprep.subr.bf16.mxu0 0
      %374 = vmatpush1.bf16.msra.mxu0 0
      %375 = vmatprep.subr.bf16.mxu0 0
      %376 = vmatpush1.bf16.msra.mxu0 0
      %377 = vmatprep.subr.bf16.mxu0 0
      %378 = vmatpush1.bf16.msra.mxu0 0
      %379 = vmatprep.subr.bf16.mxu0 0
      %380 = vmatpush1.bf16.msra.mxu0 0
      %381 = vmatprep.subr.bf16.mxu0 0
      %382 = vmatpush1.bf16.msra.mxu0 0
      %383 = vmatprep.subr.bf16.mxu0 0
      %384 = vmatpush1.bf16.msra.mxu0 0
      %385 = vmatprep.subr.bf16.mxu0 0
      %386 = vmatpush1.bf16.msra.mxu0 0
      %387 = vmatprep.subr.bf16.mxu0 0
      %388 = vmatpush1.bf16.msra.mxu0 0
      %389 = vmatprep.subr.bf16.mxu0 0
      %390 = vmatpush1.bf16.msra.mxu0 0
      %391 = vmatprep.subr.bf16.mxu0 0
      %392 = vmatpush1.bf16.msra.mxu0 0
      %393 = vmatprep.subr.bf16.mxu0 0
      %394 = vmatpush1.bf16.msra.mxu0 0
      %395 = vmatprep.subr.bf16.mxu0 0
      %396 = vmatpush1.bf16.msra.mxu0 0
      %397 = vmatprep.subr.bf16.mxu0 0
      %398 = vmatpush1.bf16.msra.mxu0 0
      %399 = vmatprep.mubr.bf16.mxu0 0
      %400 = vmatmul.mubr.bf16.gmra.mrb[0].mxu0 %v358
      %v401 = vpop.f32.mrb[0].mxu0
      %v402 = vadd.f32 0.0, %v401
      %v403 = vpop.f32.mrb[0].mxu0
      %v404 = vpop.f32.mrb[0].mxu0
      %v405 = vadd.f32 0.0, %v404
      %v406 = vpop.f32.mrb[0].mxu0
      %407 = vmatprep.mubr.bf16.mxu0 0
      %408 = vmatmul.mubr.bf16.gmra.mrb[0].mxu0 %v361
      %v409 = vpop.f32.mrb[0].mxu0
      %v410 = vadd.f32 0.0, %v409
      %v411 = vpop.f32.mrb[0].mxu0
      %v412 = vpop.f32.mrb[0].mxu0
      %v413 = vadd.f32 0.0, %v412
      %v414 = vpop.f32.mrb[0].mxu0
      %415 = vdwg.mxu0
      %416 = vst [vmem:[#allocation2] sm:$0xff] %v402
      %417 = vst [vmem:[#allocation2 + $0x8] sm:$0xff] %v405
      %418 = vst [vmem:[#allocation2 + $0x10] sm:$0xff] %v410
      %419 = vst [vmem:[#allocation2 + $0x18] sm:$0xff] %v413
      %v420 = vld [vmem:[%s3] sm:$0xf]
      %v421 = vld [vmem:[%s3 + $0x4] sm:$0x3]
      %v424 = vunpack.c.l.b16 %v420
      %v425 = vunpack.c.l.b16 %v421
      %v426 = vpack.c.b16 %v425, %v424
      %v428 = vsel %vm363, %v426, 0
      %430 = vmatprep.subr.bf16.mxu0 0
      %431 = vmatpush1.bf16.msra.mxu0 %v428
      %432 = vmatprep.subr.bf16.mxu0 0
      %433 = vmatpush1.bf16.msra.mxu0 0
      %434 = vmatprep.subr.bf16.mxu0 0
      %435 = vmatpush1.bf16.msra.mxu0 0
      %436 = vmatprep.subr.bf16.mxu0 0
      %437 = vmatpush1.bf16.msra.mxu0 0
      %438 = vmatprep.subr.bf16.mxu0 0
      %439 = vmatpush1.bf16.msra.mxu0 0
      %440 = vmatprep.subr.bf16.mxu0 0
      %441 = vmatpush1.bf16.msra.mxu0 0
      %442 = vmatprep.subr.bf16.mxu0 0
      %443 = vmatpush1.bf16.msra.mxu0 0
      %444 = vmatprep.subr.bf16.mxu0 0
      %445 = vmatpush1.bf16.msra.mxu0 0
      %446 = vmatprep.subr.bf16.mxu0 0
      %447 = vmatpush1.bf16.msra.mxu0 0
      %448 = vmatprep.subr.bf16.mxu0 0
      %449 = vmatpush1.bf16.msra.mxu0 0
      %450 = vmatprep.subr.bf16.mxu0 0
      %451 = vmatpush1.bf16.msra.mxu0 0
      %452 = vmatprep.subr.bf16.mxu0 0
      %453 = vmatpush1.bf16.msra.mxu0 0
      %454 = vmatprep.subr.bf16.mxu0 0
      %455 = vmatpush1.bf16.msra.mxu0 0
      %456 = vmatprep.subr.bf16.mxu0 0
      %457 = vmatpush1.bf16.msra.mxu0 0
      %458 = vmatprep.subr.bf16.mxu0 0
      %459 = vmatpush1.bf16.msra.mxu0 0
      %460 = vmatprep.subr.bf16.mxu0 0
      %461 = vmatpush1.bf16.msra.mxu0 0
      %462 = vmatprep.mubr.bf16.mxu0 0
      %463 = vmatmul.mubr.bf16.gmra.mrb[0].mxu0 %v358
      %v464 = vpop.f32.mrb[0].mxu0
      %v465 = vadd.f32 0.0, %v464
      %v466 = vpop.f32.mrb[0].mxu0
      %v467 = vpop.f32.mrb[0].mxu0
      %v468 = vadd.f32 0.0, %v467
      %v469 = vpop.f32.mrb[0].mxu0
      %470 = vmatprep.mubr.bf16.mxu0 0
      %471 = vmatmul.mubr.bf16.gmra.mrb[0].mxu0 %v361
      %v472 = vpop.f32.mrb[0].mxu0
      %v473 = vadd.f32 0.0, %v472
      %v474 = vpop.f32.mrb[0].mxu0
      %v475 = vpop.f32.mrb[0].mxu0
      %v476 = vadd.f32 0.0, %v475
      %v477 = vpop.f32.mrb[0].mxu0
      %478 = vdwg.mxu0
      %479 = vst [vmem:[#allocation3] sm:$0xff] %v465
      %480 = vst [vmem:[#allocation3 + $0x8] sm:$0xff] %v468
      %481 = vst [vmem:[#allocation3 + $0x10] sm:$0xff] %v473
      %482 = vst [vmem:[#allocation3 + $0x18] sm:$0xff] %v476
      %v483 = vld [vmem:[#allocation2] sm:$0xff]
      %v484 = vld [vmem:[#allocation2 + $0x8] sm:$0xff]
      %v485 = vld [vmem:[#allocation2 + $0x10] sm:$0xff]
      %v486 = vld [vmem:[#allocation2 + $0x18] sm:$0xff]
      %s487 = scalar_lea.vmem %s2, 8
      %v488 = vld [vmem:[%s487] sm:$0xf]
      %v489 = vld [vmem:[%s487 + $0x4] sm:$0x3]
      %v494 = vunpack.c.l.b16 %v335
      %v495 = vunpack.c.l.b16 %v336
      %v496 = vunpack.c.l.b16 %v337
      %v497 = vunpack.c.l.b16 %v338
      %v498 = vpack.c.b16 %v495, %v494
      %v499 = vpack.c.b16 %v497, %v496
      %v502 = vunpack.c.l.b16 %v488
      %v503 = vunpack.c.l.b16 %v489
      %v504 = vpack.c.b16 %v503, %v502
      %v506 = vsel %vm356, %v498, 0
      %v509 = vsel %vm356, %v499, 0
      %v512 = vsel %vm363, %v504, 0
      %514 = vmatprep.subr.bf16.mxu0 0
      %515 = vmatpush1.bf16.msra.mxu0 %v512
      %516 = vmatprep.subr.bf16.mxu0 0
      %517 = vmatpush1.bf16.msra.mxu0 0
      %518 = vmatprep.subr.bf16.mxu0 0
      %519 = vmatpush1.bf16.msra.mxu0 0
      %520 = vmatprep.subr.bf16.mxu0 0
      %521 = vmatpush1.bf16.msra.mxu0 0
      %522 = vmatprep.subr.bf16.mxu0 0
      %523 = vmatpush1.bf16.msra.mxu0 0
      %524 = vmatprep.subr.bf16.mxu0 0
      %525 = vmatpush1.bf16.msra.mxu0 0
      %526 = vmatprep.subr.bf16.mxu0 0
      %527 = vmatpush1.bf16.msra.mxu0 0
      %528 = vmatprep.subr.bf16.mxu0 0
      %529 = vmatpush1.bf16.msra.mxu0 0
      %530 = vmatprep.subr.bf16.mxu0 0
      %531 = vmatpush1.bf16.msra.mxu0 0
      %532 = vmatprep.subr.bf16.mxu0 0
      %533 = vmatpush1.bf16.msra.mxu0 0
      %534 = vmatprep.subr.bf16.mxu0 0
      %535 = vmatpush1.bf16.msra.mxu0 0
      %536 = vmatprep.subr.bf16.mxu0 0
      %537 = vmatpush1.bf16.msra.mxu0 0
      %538 = vmatprep.subr.bf16.mxu0 0
      %539 = vmatpush1.bf16.msra.mxu0 0
      %540 = vmatprep.subr.bf16.mxu0 0
      %541 = vmatpush1.bf16.msra.mxu0 0
      %542 = vmatprep.subr.bf16.mxu0 0
      %543 = vmatpush1.bf16.msra.mxu0 0
      %544 = vmatprep.subr.bf16.mxu0 0
      %545 = vmatpush1.bf16.msra.mxu0 0
      %546 = vmatprep.mubr.bf16.mxu0 0
      %547 = vmatmul.mubr.bf16.gmra.mrb[0].mxu0 %v506
      %v548 = vpop.f32.mrb[0].mxu0
      %v549 = vadd.f32 0.0, %v548
      %v550 = vpop.f32.mrb[0].mxu0
      %v551 = vpop.f32.mrb[0].mxu0
      %v552 = vadd.f32 0.0, %v551
      %v553 = vpop.f32.mrb[0].mxu0
      %554 = vmatprep.mubr.bf16.mxu0 0
      %555 = vmatmul.mubr.bf16.gmra.mrb[0].mxu0 %v509
      %v556 = vpop.f32.mrb[0].mxu0
      %v557 = vadd.f32 0.0, %v556
      %v558 = vpop.f32.mrb[0].mxu0
      %v559 = vpop.f32.mrb[0].mxu0
      %v560 = vadd.f32 0.0, %v559
      %v561 = vpop.f32.mrb[0].mxu0
      %562 = vdwg.mxu0
      %v563 = vadd.f32 %v483, %v549
      %v564 = vadd.f32 %v484, %v552
      %v565 = vadd.f32 %v485, %v557
      %v566 = vadd.f32 %v486, %v560
      %567 = vst [vmem:[#allocation2] sm:$0xff] %v563
      %568 = vst [vmem:[#allocation2 + $0x8] sm:$0xff] %v564
      %569 = vst [vmem:[#allocation2 + $0x10] sm:$0xff] %v565
      %570 = vst [vmem:[#allocation2 + $0x18] sm:$0xff] %v566
      %v571 = vld [vmem:[#allocation3] sm:$0xff]
      %v572 = vld [vmem:[#allocation3 + $0x8] sm:$0xff]
      %v573 = vld [vmem:[#allocation3 + $0x10] sm:$0xff]
      %v574 = vld [vmem:[#allocation3 + $0x18] sm:$0xff]
      %s575 = scalar_lea.vmem %s3, 8
      %v576 = vld [vmem:[%s575] sm:$0xf]
      %v577 = vld [vmem:[%s575 + $0x4] sm:$0x3]
      %v580 = vunpack.c.l.b16 %v576
      %v581 = vunpack.c.l.b16 %v577
      %v582 = vpack.c.b16 %v581, %v580
      %v584 = vsel %vm363, %v582, 0
      %586 = vmatprep.subr.bf16.mxu0 0
      %587 = vmatpush1.bf16.msra.mxu0 %v584
      %588 = vmatprep.subr.bf16.mxu0 0
      %589 = vmatpush1.bf16.msra.mxu0 0
      %590 = vmatprep.subr.bf16.mxu0 0
      %591 = vmatpush1.bf16.msra.mxu0 0
      %592 = vmatprep.subr.bf16.mxu0 0
      %593 = vmatpush1.bf16.msra.mxu0 0
      %594 = vmatprep.subr.bf16.mxu0 0
      %595 = vmatpush1.bf16.msra.mxu0 0
      %596 = vmatprep.subr.bf16.mxu0 0
      %597 = vmatpush1.bf16.msra.mxu0 0
      %598 = vmatprep.subr.bf16.mxu0 0
      %599 = vmatpush1.bf16.msra.mxu0 0
      %600 = vmatprep.subr.bf16.mxu0 0
      %601 = vmatpush1.bf16.msra.mxu0 0
      %602 = vmatprep.subr.bf16.mxu0 0
      %603 = vmatpush1.bf16.msra.mxu0 0
      %604 = vmatprep.subr.bf16.mxu0 0
      %605 = vmatpush1.bf16.msra.mxu0 0
      %606 = vmatprep.subr.bf16.mxu0 0
      %607 = vmatpush1.bf16.msra.mxu0 0
      %608 = vmatprep.subr.bf16.mxu0 0
      %609 = vmatpush1.bf16.msra.mxu0 0
      %610 = vmatprep.subr.bf16.mxu0 0
      %611 = vmatpush1.bf16.msra.mxu0 0
      %612 = vmatprep.subr.bf16.mxu0 0
      %613 = vmatpush1.bf16.msra.mxu0 0
      %614 = vmatprep.subr.bf16.mxu0 0
      %615 = vmatpush1.bf16.msra.mxu0 0
      %616 = vmatprep.subr.bf16.mxu0 0
      %617 = vmatpush1.bf16.msra.mxu0 0
      %618 = vmatprep.mubr.bf16.mxu0 0
      %619 = vmatmul.mubr.bf16.gmra.mrb[0].mxu0 %v506
      %v620 = vpop.f32.mrb[0].mxu0
      %v621 = vadd.f32 0.0, %v620
      %v622 = vpop.f32.mrb[0].mxu0
      %v623 = vpop.f32.mrb[0].mxu0
      %v624 = vadd.f32 0.0, %v623
      %v625 = vpop.f32.mrb[0].mxu0
      %626 = vmatprep.mubr.bf16.mxu0 0
      %627 = vmatmul.mubr.bf16.gmra.mrb[0].mxu0 %v509
      %v628 = vpop.f32.mrb[0].mxu0
      %v629 = vadd.f32 0.0, %v628
      %v630 = vpop.f32.mrb[0].mxu0
      %v631 = vpop.f32.mrb[0].mxu0
      %v632 = vadd.f32 0.0, %v631
      %v633 = vpop.f32.mrb[0].mxu0
      %634 = vdwg.mxu0
      %v635 = vadd.f32 %v571, %v621
      %v636 = vadd.f32 %v572, %v624
      %v637 = vadd.f32 %v573, %v629
      %v638 = vadd.f32 %v574, %v632
      %639 = vst [vmem:[#allocation3] sm:$0xff] %v635
      %640 = vst [vmem:[#allocation3 + $0x8] sm:$0xff] %v636
      %641 = vst [vmem:[#allocation3 + $0x10] sm:$0xff] %v637
      %642 = vst [vmem:[#allocation3 + $0x18] sm:$0xff] %v638
      %v643 = vld [vmem:[%s334] sm:$0xf]
      %v644 = vld [vmem:[%s334 + $0x8] sm:$0xf]
      %v645 = vld [vmem:[%s334 + $0x10] sm:$0xf]
      %v646 = vld [vmem:[#allocation2 + $0x8] sm:$0xff]
      %v647 = vld [vmem:[#allocation2 + $0x10] sm:$0xff]
      %v648 = vld [vmem:[#allocation2 + $0x18] sm:$0xff]
      %s649 = scalar_lea.vmem %s2, 16
      %v650 = vld [vmem:[%s649] sm:$0xf]
      %v651 = vld [vmem:[%s649 + $0x4] sm:$0x3]
      %v655 = vunpack.c.l.b16 %v643
      %v656 = vunpack.c.l.b16 %v644
      %v657 = vunpack.c.l.b16 %v645
      %v658 = vpack.c.b16 %v656, %v655
      %v659 = vpack.c.b16 %v657, %v657
      %v662 = vunpack.c.l.b16 %v650
      %v663 = vunpack.c.l.b16 %v651
      %v664 = vpack.c.b16 %v663, %v662
      %v666 = vsel %vm356, %v658, 0
      %v669 = vsel %vm356, %v659, 0
      %v672 = vsel %vm363, %v664, 0
      %674 = vmatprep.subr.bf16.mxu0 0
      %675 = vmatpush1.bf16.msra.mxu0 %v672
      %676 = vmatprep.subr.bf16.mxu0 0
      %677 = vmatpush1.bf16.msra.mxu0 0
      %678 = vmatprep.subr.bf16.mxu0 0
      %679 = vmatpush1.bf16.msra.mxu0 0
      %680 = vmatprep.subr.bf16.mxu0 0
      %681 = vmatpush1.bf16.msra.mxu0 0
      %682 = vmatprep.subr.bf16.mxu0 0
      %683 = vmatpush1.bf16.msra.mxu0 0
      %684 = vmatprep.subr.bf16.mxu0 0
      %685 = vmatpush1.bf16.msra.mxu0 0
      %686 = vmatprep.subr.bf16.mxu0 0
      %687 = vmatpush1.bf16.msra.mxu0 0
      %688 = vmatprep.subr.bf16.mxu0 0
      %689 = vmatpush1.bf16.msra.mxu0 0
      %690 = vmatprep.subr.bf16.mxu0 0
      %691 = vmatpush1.bf16.msra.mxu0 0
      %692 = vmatprep.subr.bf16.mxu0 0
      %693 = vmatpush1.bf16.msra.mxu0 0
      %694 = vmatprep.subr.bf16.mxu0 0
      %695 = vmatpush1.bf16.msra.mxu0 0
      %696 = vmatprep.subr.bf16.mxu0 0
      %697 = vmatpush1.bf16.msra.mxu0 0
      %698 = vmatprep.subr.bf16.mxu0 0
      %699 = vmatpush1.bf16.msra.mxu0 0
      %700 = vmatprep.subr.bf16.mxu0 0
      %701 = vmatpush1.bf16.msra.mxu0 0
      %702 = vmatprep.subr.bf16.mxu0 0
      %703 = vmatpush1.bf16.msra.mxu0 0
      %704 = vmatprep.subr.bf16.mxu0 0
      %705 = vmatpush1.bf16.msra.mxu0 0
      %706 = vmatprep.mubr.bf16.mxu0 0
      %707 = vmatmul.mubr.bf16.gmra.mrb[0].mxu0 %v666
      %v708 = vpop.f32.mrb[0].mxu0
      %v709 = vadd.f32 0.0, %v708
      %v710 = vpop.f32.mrb[0].mxu0
      %v711 = vpop.f32.mrb[0].mxu0
      %v712 = vadd.f32 0.0, %v711
      %v713 = vpop.f32.mrb[0].mxu0
      %714 = vmatprep.mubr.bf16.mxu0 0
      %715 = vmatmul.mubr.bf16.gmra.mrb[0].mxu0 %v669
      %v716 = vpop.f32.mrb[0].mxu0
      %v717 = vadd.f32 0.0, %v716
      %v718 = vpop.f32.mrb[0].mxu0
      %v719 = vpop.f32.mrb[0].mxu0
      %v720 = vpop.f32.mrb[0].mxu0
      %721 = vdwg.mxu0
      %v722 = vadd.f32 %v646, %v709
      %v723 = vadd.f32 %v647, %v712
      %v724 = vadd.f32 %v648, %v717
      %725 = vst [vmem:[#allocation2 + $0x8] sm:$0xff] %v722
      %726 = vst [vmem:[#allocation2 + $0x10] sm:$0xff] %v723
      %727 = vst [vmem:[#allocation2 + $0x18] sm:$0xff] %v724
      %v728 = vld [vmem:[#allocation3 + $0x8] sm:$0xff]
      %v729 = vld [vmem:[#allocation3 + $0x10] sm:$0xff]
      %v730 = vld [vmem:[#allocation3 + $0x18] sm:$0xff]
      %s731 = scalar_lea.vmem %s3, 16
      %v732 = vld [vmem:[%s731] sm:$0xf]
      %v733 = vld [vmem:[%s731 + $0x4] sm:$0x3]
      %v736 = vunpack.c.l.b16 %v732
      %v737 = vunpack.c.l.b16 %v733
      %v738 = vpack.c.b16 %v737, %v736
      %v740 = vsel %vm363, %v738, 0
      %742 = vmatprep.subr.bf16.mxu0 0
      %743 = vmatpush1.bf16.msra.mxu0 %v740
      %744 = vmatprep.subr.bf16.mxu0 0
      %745 = vmatpush1.bf16.msra.mxu0 0
      %746 = vmatprep.subr.bf16.mxu0 0
      %747 = vmatpush1.bf16.msra.mxu0 0
      %748 = vmatprep.subr.bf16.mxu0 0
      %749 = vmatpush1.bf16.msra.mxu0 0
      %750 = vmatprep.subr.bf16.mxu0 0
      %751 = vmatpush1.bf16.msra.mxu0 0
      %752 = vmatprep.subr.bf16.mxu0 0
      %753 = vmatpush1.bf16.msra.mxu0 0
      %754 = vmatprep.subr.bf16.mxu0 0
      %755 = vmatpush1.bf16.msra.mxu0 0
      %756 = vmatprep.subr.bf16.mxu0 0
      %757 = vmatpush1.bf16.msra.mxu0 0
      %758 = vmatprep.subr.bf16.mxu0 0
      %759 = vmatpush1.bf16.msra.mxu0 0
      %760 = vmatprep.subr.bf16.mxu0 0
      %761 = vmatpush1.bf16.msra.mxu0 0
      %762 = vmatprep.subr.bf16.mxu0 0
      %763 = vmatpush1.bf16.msra.mxu0 0
      %764 = vmatprep.subr.bf16.mxu0 0
      %765 = vmatpush1.bf16.msra.mxu0 0
      %766 = vmatprep.subr.bf16.mxu0 0
      %767 = vmatpush1.bf16.msra.mxu0 0
      %768 = vmatprep.subr.bf16.mxu0 0
      %769 = vmatpush1.bf16.msra.mxu0 0
      %770 = vmatprep.subr.bf16.mxu0 0
      %771 = vmatpush1.bf16.msra.mxu0 0
      %772 = vmatprep.subr.bf16.mxu0 0
      %773 = vmatpush1.bf16.msra.mxu0 0
      %774 = vmatprep.mubr.bf16.mxu0 0
      %775 = vmatmul.mubr.bf16.gmra.mrb[0].mxu0 %v666
      %v776 = vpop.f32.mrb[0].mxu0
      %v777 = vadd.f32 0.0, %v776
      %v778 = vpop.f32.mrb[0].mxu0
      %v779 = vpop.f32.mrb[0].mxu0
      %v780 = vadd.f32 0.0, %v779
      %v781 = vpop.f32.mrb[0].mxu0
      %782 = vmatprep.mubr.bf16.mxu0 0
      %783 = vmatmul.mubr.bf16.gmra.mrb[0].mxu0 %v669
      %v784 = vpop.f32.mrb[0].mxu0
      %v785 = vadd.f32 0.0, %v784
      %v786 = vpop.f32.mrb[0].mxu0
      %v787 = vpop.f32.mrb[0].mxu0
      %v788 = vpop.f32.mrb[0].mxu0
      %789 = vdwg.mxu0
      %v790 = vadd.f32 %v728, %v777
      %v791 = vadd.f32 %v729, %v780
      %v792 = vadd.f32 %v730, %v785
      %793 = vst [vmem:[#allocation3 + $0x8] sm:$0xff] %v790
      %794 = vst [vmem:[#allocation3 + $0x10] sm:$0xff] %v791
      %795 = vst [vmem:[#allocation3 + $0x18] sm:$0xff] %v792
      %p796 = scmp.gt.s32.totalorder %s21, 0
      // Predicated region
      $region41: #{spatial_path_forward.3} parent=39 // pred_check
        %p797 = pneg %p796
      $region42: #{spatial_path_forward.3} parent=39 // pred_check_branch
        %799 = sbr.rel (%p797) target = $region44
      $region43: #{spatial_path_forward.3} parent=39 // pred_region
        %s800 = scalar_lea.vmem %s314, 4
        %v801 = vld [vmem:[%s800] sm:$0xf]
        %v802 = vld [vmem:[#allocation2] sm:$0xff]
        %v803 = vld [vmem:[%s649] sm:$0xf]
        %v804 = vld [vmem:[%s649 + $0x4] sm:$0x3]
        %v807 = vunpack.c.l.b16 %v803
        %v808 = vunpack.c.l.b16 %v804
        %v809 = vpack.c.b16 %v808, %v807
        %v811 = vsel %vm356, %v801, 0
        %v814 = vsel %vm363, %v809, 0
        %816 = vmatprep.subr.bf16.mxu0 0
        %817 = vmatpush1.bf16.msra.mxu0 %v814
        %818 = vmatprep.subr.bf16.mxu0 0
        %819 = vmatpush1.bf16.msra.mxu0 0
        %820 = vmatprep.subr.bf16.mxu0 0
        %821 = vmatpush1.bf16.msra.mxu0 0
        %822 = vmatprep.subr.bf16.mxu0 0
        %823 = vmatpush1.bf16.msra.mxu0 0
        %824 = vmatprep.subr.bf16.mxu0 0
        %825 = vmatpush1.bf16.msra.mxu0 0
        %826 = vmatprep.subr.bf16.mxu0 0
        %827 = vmatpush1.bf16.msra.mxu0 0
        %828 = vmatprep.subr.bf16.mxu0 0
        %829 = vmatpush1.bf16.msra.mxu0 0
        %830 = vmatprep.subr.bf16.mxu0 0
        %831 = vmatpush1.bf16.msra.mxu0 0
        %832 = vmatprep.subr.bf16.mxu0 0
        %833 = vmatpush1.bf16.msra.mxu0 0
        %834 = vmatprep.subr.bf16.mxu0 0
        %835 = vmatpush1.bf16.msra.mxu0 0
        %836 = vmatprep.subr.bf16.mxu0 0
        %837 = vmatpush1.bf16.msra.mxu0 0
        %838 = vmatprep.subr.bf16.mxu0 0
        %839 = vmatpush1.bf16.msra.mxu0 0
        %840 = vmatprep.subr.bf16.mxu0 0
        %841 = vmatpush1.bf16.msra.mxu0 0
        %842 = vmatprep.subr.bf16.mxu0 0
        %843 = vmatpush1.bf16.msra.mxu0 0
        %844 = vmatprep.subr.bf16.mxu0 0
        %845 = vmatpush1.bf16.msra.mxu0 0
        %846 = vmatprep.subr.bf16.mxu0 0
        %847 = vmatpush1.bf16.msra.mxu0 0
        %848 = vmatprep.mubr.bf16.mxu0 0
        %849 = vmatmul.mubr.bf16.gmra.mrb[0].mxu0 %v811
        %v850 = vpop.f32.mrb[0].mxu0
        %v851 = vadd.f32 0.0, %v850
        %v852 = vpop.f32.mrb[0].mxu0
        %v853 = vpop.f32.mrb[0].mxu0
        %v854 = vpop.f32.mrb[0].mxu0
        %855 = vdwg.mxu0
        %v856 = vadd.f32 %v802, %v851
        %857 = vst [vmem:[#allocation2] sm:$0xff] %v856
        %v858 = vld [vmem:[#allocation3] sm:$0xff]
        %v859 = vld [vmem:[%s731] sm:$0xf]
        %v860 = vld [vmem:[%s731 + $0x4] sm:$0x3]
        %v863 = vunpack.c.l.b16 %v859
        %v864 = vunpack.c.l.b16 %v860
        %v865 = vpack.c.b16 %v864, %v863
        %v867 = vsel %vm363, %v865, 0
        %869 = vmatprep.subr.bf16.mxu0 0
        %870 = vmatpush1.bf16.msra.mxu0 %v867
        %871 = vmatprep.subr.bf16.mxu0 0
        %872 = vmatpush1.bf16.msra.mxu0 0
        %873 = vmatprep.subr.bf16.mxu0 0
        %874 = vmatpush1.bf16.msra.mxu0 0
        %875 = vmatprep.subr.bf16.mxu0 0
        %876 = vmatpush1.bf16.msra.mxu0 0
        %877 = vmatprep.subr.bf16.mxu0 0
        %878 = vmatpush1.bf16.msra.mxu0 0
        %879 = vmatprep.subr.bf16.mxu0 0
        %880 = vmatpush1.bf16.msra.mxu0 0
        %881 = vmatprep.subr.bf16.mxu0 0
        %882 = vmatpush1.bf16.msra.mxu0 0
        %883 = vmatprep.subr.bf16.mxu0 0
        %884 = vmatpush1.bf16.msra.mxu0 0
        %885 = vmatprep.subr.bf16.mxu0 0
        %886 = vmatpush1.bf16.msra.mxu0 0
        %887 = vmatprep.subr.bf16.mxu0 0
        %888 = vmatpush1.bf16.msra.mxu0 0
        %889 = vmatprep.subr.bf16.mxu0 0
        %890 = vmatpush1.bf16.msra.mxu0 0
        %891 = vmatprep.subr.bf16.mxu0 0
        %892 = vmatpush1.bf16.msra.mxu0 0
        %893 = vmatprep.subr.bf16.mxu0 0
        %894 = vmatpush1.bf16.msra.mxu0 0
        %895 = vmatprep.subr.bf16.mxu0 0
        %896 = vmatpush1.bf16.msra.mxu0 0
        %897 = vmatprep.subr.bf16.mxu0 0
        %898 = vmatpush1.bf16.msra.mxu0 0
        %899 = vmatprep.subr.bf16.mxu0 0
        %900 = vmatpush1.bf16.msra.mxu0 0
        %901 = vmatprep.mubr.bf16.mxu0 0
        %902 = vmatmul.mubr.bf16.gmra.mrb[0].mxu0 %v811
        %v903 = vpop.f32.mrb[0].mxu0
        %v904 = vadd.f32 0.0, %v903
        %v905 = vpop.f32.mrb[0].mxu0
        %v906 = vpop.f32.mrb[0].mxu0
        %v907 = vpop.f32.mrb[0].mxu0
        %908 = vdwg.mxu0
        %v909 = vadd.f32 %v858, %v904
        %910 = vst [vmem:[#allocation3] sm:$0xff] %v909
      $region44: #{spatial_path_forward.3} parent=39 // pred_fallthru
        _
      %v911 = vld [vmem:[#allocation2] sm:$0xff]
      %v912 = vld [vmem:[#allocation2 + $0x8] sm:$0xff]
      %v913 = vld [vmem:[#allocation2 + $0x10] sm:$0xff]
      %v914 = vld [vmem:[#allocation2 + $0x18] sm:$0xff]
      %v915 = vld [vmem:[#allocation3] sm:$0xff]
      %v916 = vld [vmem:[#allocation3 + $0x8] sm:$0xff]
      %v917 = vld [vmem:[#allocation3 + $0x10] sm:$0xff]
      %v918 = vld [vmem:[#allocation3 + $0x18] sm:$0xff]
      %vm923 = vcmask 1040384
      %v924 = vrot.slane %v915, 7
      %v925 = vrot.slane %v916, 7
      %v926 = vsel %vm923, %v924, %v925
      %v927 = vrot.slane %v917, 7
      %v928 = vsel %vm923, %v925, %v927
      %v929 = vrot.slane %v918, 7
      %v930 = vsel %vm923, %v927, %v929
      %v935 = vsel %vm923, 0.0, %v924
      %v936 = vlaneseq
      %v937 = vshrl.u32 %v936, 7
      %v938 = vadd.s32 %v937, 8
      %v939 = vadd.s32 %v937, 16
      %v940 = vadd.s32 %v937, 24
      %vm941 = vcmp.lt.s32.totalorder %v937, 0
      %v942 = vsub.s32 0, %v937
      %v943 = vsel %vm941, %v942, %v937
      %v944 = vshrl.u32 %v943, 3
      %v945 = vand.u32 %v943, 7
      %v946 = vsub.s32 0, %v945
      %v947 = vsel %vm941, %v946, %v945
      %vm948 = vcmp.lt.s32.totalorder %v938, 0
      %v949 = vsub.s32 0, %v938
      %v950 = vsel %vm948, %v949, %v938
      %v951 = vshrl.u32 %v950, 3
      %v952 = vand.u32 %v950, 7
      %v953 = vsub.s32 0, %v952
      %v954 = vsel %vm948, %v953, %v952
      %vm955 = vcmp.lt.s32.totalorder %v939, 0
      %v956 = vsub.s32 0, %v939
      %v957 = vsel %vm955, %v956, %v939
      %v958 = vshrl.u32 %v957, 3
      %v959 = vand.u32 %v957, 7
      %v960 = vsub.s32 0, %v959
      %v961 = vsel %vm955, %v960, %v959
      %vm962 = vcmp.lt.s32.totalorder %v940, 0
      %v963 = vsub.s32 0, %v940
      %v964 = vsel %vm962, %v963, %v940
      %v965 = vshrl.u32 %v964, 3
      %v966 = vand.u32 %v964, 7
      %v967 = vsub.s32 0, %v966
      %v968 = vsel %vm962, %v967, %v966
      %vm969 = vcmp.ne.s32.totalorder %v947, 0
      %vm970 = vcmp.ne.s32.totalorder %v954, 0
      %vm971 = vcmp.ne.s32.totalorder %v961, 0
      %vm972 = vcmp.ne.s32.totalorder %v968, 0
      %vm973 = vcmp.lt.s32.totalorder %v947, 0
      %vm974 = vcmp.lt.s32.totalorder %v954, 0
      %vm975 = vcmp.lt.s32.totalorder %v961, 0
      %vm976 = vcmp.lt.s32.totalorder %v968, 0
      %vm977 = vmand %vm973, %vm969
      %vm978 = vmand %vm974, %vm970
      %vm979 = vmand %vm975, %vm971
      %vm980 = vmand %vm976, %vm972
      %v981 = vadd.s32 %v947, 8
      %v982 = vadd.s32 %v954, 8
      %v983 = vadd.s32 %v961, 8
      %v984 = vadd.s32 %v968, 8
      %v985 = vsel %vm977, %v981, %v947
      %v986 = vsel %vm978, %v982, %v954
      %v987 = vsel %vm979, %v983, %v961
      %v988 = vsel %vm980, %v984, %v968
      %vm989 = vcmp.eq.s32.totalorder %v985, 0
      %vm990 = vcmp.eq.s32.totalorder %v986, 0
      %vm991 = vcmp.eq.s32.totalorder %v987, 0
      %vm992 = vcmp.eq.s32.totalorder %v988, 0
      %v993 = vsel %vm989, 0.0, %v935
      %v994 = vsel %vm990, 0.0, %v926
      %v995 = vsel %vm991, 0.0, %v928
      %v996 = vsel %vm992, 0.0, %v930
      %v997 = vadd.f32 %v911, %v993
      %v998 = vadd.f32 %v912, %v994
      %v999 = vadd.f32 %v913, %v995
      %v1000 = vadd.f32 %v914, %v996
      %v1001 = vld [vmem:[%s4] sm:$0x1]
      %v1002 = vlaneseq
      %v1003 = vshrl.u32 %v1002, 7
      %v1004 = vsub.s32 0, %v1003
      %v1005 = vrot.slane %v1001, %v1004
      %v1006 = vmul.f32 %v997, %v1005
      %v1007 = vmul.f32 %v998, %v1005
      %v1008 = vmul.f32 %v999, %v1005
      %v1009 = vmul.f32 %v1000, %v1005
      %v1010 = vld [vmem:[%s4 + $0x1] sm:$0x1]
      %v1011 = vlaneseq
      %v1012 = vshrl.u32 %v1011, 7
      %v1013 = vsub.s32 0, %v1012
      %v1014 = vrot.slane %v1010, %v1013
      %v1015 = vadd.f32 %v1006, %v1014
      %v1016 = vadd.f32 %v1007, %v1014
      %v1017 = vadd.f32 %v1008, %v1014
      %v1018 = vadd.f32 %v1009, %v1014
      %v1019 = vmax.f32 %v1015, 0.0
      %v1020 = vmax.f32 %v1016, 0.0
      %v1021 = vmax.f32 %v1017, 0.0
      %v1022 = vmax.f32 %v1018, 0.0
      %v1023 = vpack.c.bf16 %v1020, %v1019
      %v1024 = vpack.c.bf16 %v1022, %v1021
      %v1027 = vunpack.c.l.b16 %v1023
      %v1028 = vunpack.c.h.b16 %v1023
      %v1029 = vunpack.c.l.b16 %v1024
      %v1030 = vunpack.c.h.b16 %v1024
      %v1031 = vpack.c.b16 %v1027, %v1027
      %v1032 = vpack.c.b16 %v1028, %v1028
      %v1033 = vpack.c.b16 %v1029, %v1029
      %v1034 = vpack.c.b16 %v1030, %v1030
      %1039 = vst [vmem:[%s327] sm:$0xf] %v1031
      %1040 = vst [vmem:[%s327 + $0x4] sm:$0xf] %v1032
      %1041 = vst [vmem:[%s327 + $0x8] sm:$0xf] %v1033
      %1042 = vst [vmem:[%s327 + $0xc] sm:$0xf] %v1034
      %s1043 = smul.u32 4, %s21
      %p1044 = scmp.lt.s32.totalorder %s20, 1
      %s1045 = scalar_select %p1044, %s20, 1
      %p1046 = scmp.lt.s32.totalorder %s1043, 15
      %s1047 = scalar_select %p1046, %s1043, 15
      %s1048 = smul.addr %s1045, 16
      %s1049 = sadd.s32 %s1047, %s1048
      %s1050 = smul.addr %s1049, 4
      %s1051 = scalar_lea.vmem %s5, %s1050
      // Predicated region
      $region45: #{spatial_path_forward.3} parent=39 // pred_check
        %p1052 = pneg %p175
      $region46: #{spatial_path_forward.3} parent=39 // pred_check_branch
        %1054 = sbr.rel (%p1052) target = $region48
      $region47: #{spatial_path_forward.3} parent=39 // pred_region
        %s1055 = smul.u32 4, %s21
      $region48: #{spatial_path_forward.3} parent=39 // pred_fallthru
        _
    $region40: #{spatial_path_forward.3} parent=5 // pred_fallthru
      _
    %p1056 = scmp.le.s32.totalorder 2, %s11
    // Predicated region
    $region49: #{spatial_path_forward.3} parent=5 // pred_check
      %p1057 = pneg %p1056
    $region50: #{spatial_path_forward.3} parent=5 // pred_check_branch
      %1059 = sbr.rel (%p1057) target = $region52
    $region51: #{spatial_path_forward.3} parent=5 // pred_region
      %s1060 = ssub.s32 %s11, 2
      // Predicated region
      $region53: #{spatial_path_forward.3} parent=51 // pred_check
        %p1061 = pneg %p181
      $region54: #{spatial_path_forward.3} parent=51 // pred_check_branch
        %1063 = sbr.rel (%p1061) target = $region56
      $region55: #{spatial_path_forward.3} parent=51 // pred_region
        %s1064 = smul.u32 4, %s23
        %p1065 = scmp.lt.s32.totalorder %s22, 1
        %s1066 = scalar_select %p1065, %s22, 1
        %p1067 = scmp.lt.s32.totalorder %s1064, 15
        %s1068 = scalar_select %p1067, %s1064, 15
        %s1069 = smul.addr %s1066, 16
        %s1070 = sadd.s32 %s1068, %s1069
        %s1071 = smul.addr %s1070, 4
        %s1072 = scalar_lea.vmem %s5, %s1071
      $region56: #{spatial_path_forward.3} parent=51 // pred_fallthru
        _
    $region52: #{spatial_path_forward.3} parent=5 // pred_fallthru
      _
  $region6: #{spatial_path_forward.3} parent=0 // loop_footer
    %s15 = sadd.s32 1, %s11
  $region7: #{spatial_path_forward.3} parent=0 // loop_footer_branch
    %10 = sbr.rel target = $region3
  $region8: #{spatial_path_forward.3} parent=0 // loop_exit
    _

// kernel: spatial_path_forward.4
$region0: #{spatial_path_forward.4}
  #allocation0 [shape = 'u32[]', space=smem, size = 0x4, offset = 0x4, fixed_abs, tag = 'smem constant byte address 0x4 - core index']
  #allocation1 [shape = 'u32[144,128]{1,0:T(1,128)}', space=vmem, size = 0x12000, scoped, tag = 'internal scratch']
  #allocation2 [shape = 'f32[32,128]{1,0:T(8,128)}', space=vmem, size = 0x4000, scoped, tag = 'scratch operand']
  #allocation3 [shape = 'f32[32,128]{1,0:T(8,128)}', space=vmem, size = 0x4000, scoped, tag = 'scratch operand']
  %s0 = inlined_call_operand.vmem [shape: bf16[2,8,2,8,128], index: 0, kind: input, shape index: {}, may-alias: {0,1}]
  %s1 = inlined_call_operand.vmem [shape: bf16[2,8,2,8,128], index: 1, kind: input, shape index: {}, may-alias: {0,1}]
  %s2 = inlined_call_operand.vmem [shape: bf16[3,128,128], index: 2, kind: input, shape index: {}]
  %s3 = inlined_call_operand.vmem [shape: bf16[3,128,128], index: 3, kind: input, shape index: {}]
  %s4 = inlined_call_operand.vmem [shape: f32[2,128], index: 4, kind: input, shape index: {}]
  %s5 = inlined_call_operand.vmem [shape: bf16[2,64,128], index: 5, kind: output, shape index: {}]
  %s6 = sld [smem:[#allocation0]]
  $region57: #{spatial_path_forward.4} parent=0
    _
  %s8 = ssub.s32 1, %s6
  %s9 = scalar_select 0, %s8, %s6
  loop: start=0, step=1, limit=6
  $region2: #{spatial_path_forward.4} parent=0 // loop_pre_header
    _
  $region3: #{spatial_path_forward.4} parent=0 // loop_header
    %s11 = sphi 0, %s15
    %p12 = scmp.ge.s32.totalorder %s11, 6
    %s18 = sphi 0, %s30
    %s19 = sphi 0, %s26
    %s20 = sphi 0, %s18
    %s21 = sphi 0, %s19
    %s22 = sphi 0, %s20
    %s23 = sphi 0, %s21
    %s35 = sphi 0, %s37
    %s38 = sphi 0, %s35
    %s39 = sphi 0, %s38
    %s55 = sphi 0, %s39
    %s71 = sphi 0, %s73
    %s74 = sphi 0, %s71
    %s75 = sphi 0, %s74
    %s91 = sphi 0, %s75
    %s95 = sphi 0, %s95
    %s97 = sphi 0, %s95
    %s98 = sphi 0, %s97
    %s112 = sphi 0, %s98
    %s116 = sphi 0, %s116
    %s118 = sphi 0, %s116
    %s119 = sphi 0, %s118
    %s133 = sphi 0, %s119
    %s137 = sphi 0, %s137
    %s139 = sphi 0, %s137
    %s140 = sphi 0, %s139
    %s154 = sphi 0, %s140
    %s162 = sphi 0, %s164
    %s165 = sphi 0, %s162
    %s166 = sphi 0, %s165
    %s182 = sphi 0, %s166
  $region4: #{spatial_path_forward.4} parent=0 // loop_header_branch
    %14 = sbr.rel (%p12) target = $region8
  $region5: #{spatial_path_forward.4} parent=0 // loop_body
    %s16 = ssub.s32 %s11, 1
    %s17 = ssub.s32 %s11, 2
    %s24 = sadd.s32 1, %s19
    %p25 = scmp.ge.s32.totalorder %s24, 2
    %s26 = scalar_select %p25, 0, %s24
    %s27 = sadd.s32 1, %s18
    %s28 = scalar_select %p25, %s27, %s18
    %p29 = scmp.ge.s32.totalorder %s28, 2
    %s30 = scalar_select %p29, 0, %s28
    %s31 = ssub.s32 %s18, %s30
    %s32 = ssub.s32 %s19, %s26
    %s33 = sor.u32 %s31, %s32
    %p34 = scmp.eq.s32.totalorder %s33, 0
    %s36 = sadd.s32 %s35, 1
    %s37 = scalar_select %p34, %s35, %s36
    %p40 = pneg %p34
    %p41 = scmp.eq.s32.totalorder %s11, 3
    %p42 = por %p40, %p41
    %p43 = scmp.ne.s32.totalorder %s35, %s38
    %p44 = scmp.eq.s32.totalorder %s11, 0
    %p45 = por %p43, %p44
    %p46 = scmp.ne.s32.totalorder %s35, %s38
    %p47 = scmp.eq.s32.totalorder %s16, 3
    %p48 = por %p46, %p47
    %p49 = scmp.ne.s32.totalorder %s38, %s39
    %p50 = scmp.eq.s32.totalorder %s16, 0
    %p51 = por %p49, %p50
    %p52 = scmp.ne.s32.totalorder %s38, %s39
    %p53 = scmp.eq.s32.totalorder %s17, 3
    %p54 = por %p52, %p53
    %p56 = scmp.ne.s32.totalorder %s39, %s55
    %p57 = scmp.eq.s32.totalorder %s17, 0
    %p58 = por %p56, %p57
    %s59 = smul.u32 %s19, 4
    %s60 = ssub.s32 %s59, 1
    %p61 = scmp.gt.s32.totalorder %s60, 0
    %s62 = scalar_select %p61, %s60, 0
    %s63 = smul.u32 %s26, 4
    %s64 = ssub.s32 %s63, 1
    %p65 = scmp.gt.s32.totalorder %s64, 0
    %s66 = scalar_select %p65, %s64, 0
    %s67 = ssub.s32 %s18, %s30
    %s68 = ssub.s32 %s62, %s66
    %s69 = sor.u32 %s67, %s68
    %p70 = scmp.eq.s32.totalorder %s69, 0
    %s72 = sadd.s32 %s71, 1
    %s73 = scalar_select %p70, %s71, %s72
    %p76 = pneg %p70
    %p77 = scmp.eq.s32.totalorder %s11, 3
    %p78 = por %p76, %p77
    %p79 = scmp.ne.s32.totalorder %s71, %s74
    %p80 = scmp.eq.s32.totalorder %s11, 0
    %p81 = por %p79, %p80
    %p82 = scmp.ne.s32.totalorder %s71, %s74
    %p83 = scmp.eq.s32.totalorder %s16, 3
    %p84 = por %p82, %p83
    %p85 = scmp.ne.s32.totalorder %s74, %s75
    %p86 = scmp.eq.s32.totalorder %s16, 0
    %p87 = por %p85, %p86
    %p88 = scmp.ne.s32.totalorder %s74, %s75
    %p89 = scmp.eq.s32.totalorder %s17, 3
    %p90 = por %p88, %p89
    %p92 = scmp.ne.s32.totalorder %s75, %s91
    %p93 = scmp.eq.s32.totalorder %s17, 0
    %p94 = por %p92, %p93
    %s96 = sadd.s32 %s95, 1
    %p99 = scmp.eq.s32.totalorder %s11, 3
    %p100 = scmp.ne.s32.totalorder %s95, %s97
    %p101 = scmp.eq.s32.totalorder %s11, 0
    %p102 = por %p100, %p101
    %p103 = scmp.ne.s32.totalorder %s95, %s97
    %p104 = scmp.eq.s32.totalorder %s16, 3
    %p105 = por %p103, %p104
    %p106 = scmp.ne.s32.totalorder %s97, %s98
    %p107 = scmp.eq.s32.totalorder %s16, 0
    %p108 = por %p106, %p107
    %p109 = scmp.ne.s32.totalorder %s97, %s98
    %p110 = scmp.eq.s32.totalorder %s17, 3
    %p111 = por %p109, %p110
    %p113 = scmp.ne.s32.totalorder %s98, %s112
    %p114 = scmp.eq.s32.totalorder %s17, 0
    %p115 = por %p113, %p114
    %s117 = sadd.s32 %s116, 1
    %p120 = scmp.eq.s32.totalorder %s11, 3
    %p121 = scmp.ne.s32.totalorder %s116, %s118
    %p122 = scmp.eq.s32.totalorder %s11, 0
    %p123 = por %p121, %p122
    %p124 = scmp.ne.s32.totalorder %s116, %s118
    %p125 = scmp.eq.s32.totalorder %s16, 3
    %p126 = por %p124, %p125
    %p127 = scmp.ne.s32.totalorder %s118, %s119
    %p128 = scmp.eq.s32.totalorder %s16, 0
    %p129 = por %p127, %p128
    %p130 = scmp.ne.s32.totalorder %s118, %s119
    %p131 = scmp.eq.s32.totalorder %s17, 3
    %p132 = por %p130, %p131
    %p134 = scmp.ne.s32.totalorder %s119, %s133
    %p135 = scmp.eq.s32.totalorder %s17, 0
    %p136 = por %p134, %p135
    %s138 = sadd.s32 %s137, 1
    %p141 = scmp.eq.s32.totalorder %s11, 3
    %p142 = scmp.ne.s32.totalorder %s137, %s139
    %p143 = scmp.eq.s32.totalorder %s11, 0
    %p144 = por %p142, %p143
    %p145 = scmp.ne.s32.totalorder %s137, %s139
    %p146 = scmp.eq.s32.totalorder %s16, 3
    %p147 = por %p145, %p146
    %p148 = scmp.ne.s32.totalorder %s139, %s140
    %p149 = scmp.eq.s32.totalorder %s16, 0
    %p150 = por %p148, %p149
    %p151 = scmp.ne.s32.totalorder %s139, %s140
    %p152 = scmp.eq.s32.totalorder %s17, 3
    %p153 = por %p151, %p152
    %p155 = scmp.ne.s32.totalorder %s140, %s154
    %p156 = scmp.eq.s32.totalorder %s17, 0
    %p157 = por %p155, %p156
    %s158 = ssub.s32 %s18, %s30
    %s159 = ssub.s32 %s19, %s26
    %s160 = sor.u32 %s158, %s159
    %p161 = scmp.eq.s32.totalorder %s160, 0
    %s163 = sadd.s32 %s162, 1
    %s164 = scalar_select %p161, %s162, %s163
    %p167 = pneg %p161
    %p168 = scmp.eq.s32.totalorder %s11, 3
    %p169 = por %p167, %p168
    %p170 = scmp.ne.s32.totalorder %s162, %s165
    %p171 = scmp.eq.s32.totalorder %s11, 0
    %p172 = por %p170, %p171
    %p173 = scmp.ne.s32.totalorder %s162, %s165
    %p174 = scmp.eq.s32.totalorder %s16, 3
    %p175 = por %p173, %p174
    %p176 = scmp.ne.s32.totalorder %s165, %s166
    %p177 = scmp.eq.s32.totalorder %s16, 0
    %p178 = por %p176, %p177
    %p179 = scmp.ne.s32.totalorder %s165, %s166
    %p180 = scmp.eq.s32.totalorder %s17, 3
    %p181 = por %p179, %p180
    %p183 = scmp.ne.s32.totalorder %s166, %s182
    %p184 = scmp.eq.s32.totalorder %s17, 0
    %p185 = por %p183, %p184
    %p186 = scmp.le.s32.totalorder 1, %s11
    %p187 = scmp.lt.s32.totalorder %s11, 5
    %p188 = pnand %p186, %p187
    %p189 = pneg %p188
    // Predicated region
    $region9: #{spatial_path_forward.4} parent=5 // pred_check
      _
    $region10: #{spatial_path_forward.4} parent=5 // pred_check_branch
      %191 = sbr.rel (%p188) target = $region12
    $region11: #{spatial_path_forward.4} parent=5 // pred_region
      %s192 = ssub.s32 %s11, 1
      // Predicated region
      $region13: #{spatial_path_forward.4} parent=11 // pred_check
        %p193 = pneg %p108
      $region14: #{spatial_path_forward.4} parent=11 // pred_check_branch
        %195 = sbr.rel (%p193) target = $region16
      $region15: #{spatial_path_forward.4} parent=11 // pred_region
        _
      $region16: #{spatial_path_forward.4} parent=11 // pred_fallthru
        _
      // Predicated region
      $region17: #{spatial_path_forward.4} parent=11 // pred_check
        %p196 = pneg %p129
      $region18: #{spatial_path_forward.4} parent=11 // pred_check_branch
        %198 = sbr.rel (%p196) target = $region20
      $region19: #{spatial_path_forward.4} parent=11 // pred_region
        _
      $region20: #{spatial_path_forward.4} parent=11 // pred_fallthru
        _
      // Predicated region
      $region21: #{spatial_path_forward.4} parent=11 // pred_check
        %p199 = pneg %p150
      $region22: #{spatial_path_forward.4} parent=11 // pred_check_branch
        %201 = sbr.rel (%p199) target = $region24
      $region23: #{spatial_path_forward.4} parent=11 // pred_region
        _
      $region24: #{spatial_path_forward.4} parent=11 // pred_fallthru
        _
    $region12: #{spatial_path_forward.4} parent=5 // pred_fallthru
      _
    %p202 = scmp.lt.s32.totalorder %s11, 4
    // Predicated region
    $region25: #{spatial_path_forward.4} parent=5 // pred_check
      %p203 = pneg %p202
    $region26: #{spatial_path_forward.4} parent=5 // pred_check_branch
      %205 = sbr.rel (%p203) target = $region28
    $region27: #{spatial_path_forward.4} parent=5 // pred_region
      // Predicated region
      $region29: #{spatial_path_forward.4} parent=27 // pred_check
        %p206 = pneg %p45
      $region30: #{spatial_path_forward.4} parent=27 // pred_check_branch
        %208 = sbr.rel (%p206) target = $region32
      $region31: #{spatial_path_forward.4} parent=27 // pred_region
        %s209 = smul.u32 4, %s19
        %p210 = scmp.lt.s32.totalorder %s18, 1
        %s211 = scalar_select %p210, %s18, 1
        %p212 = scmp.lt.s32.totalorder %s209, 7
        %s213 = scalar_select %p212, %s209, 7
        %s214 = smul.addr %s213, 2
        %s215 = smul.addr %s211, 16
        %s216 = sadd.s32 %s214, %s215
        %s217 = smul.addr %s216, 4
        %s218 = scalar_lea.vmem %s0, %s217
        %s219 = smul.u32 4, %s19
      $region32: #{spatial_path_forward.4} parent=27 // pred_fallthru
        _
      // Predicated region
      $region33: #{spatial_path_forward.4} parent=27 // pred_check
        %p220 = pneg %p81
      $region34: #{spatial_path_forward.4} parent=27 // pred_check_branch
        %222 = sbr.rel (%p220) target = $region36
      $region35: #{spatial_path_forward.4} parent=27 // pred_region
        %s223 = smul.u32 %s19, 4
        %s224 = ssub.s32 %s223, 1
        %p225 = scmp.gt.s32.totalorder %s224, 0
        %s226 = scalar_select %p225, %s224, 0
        %p227 = scmp.lt.s32.totalorder %s18, 1
        %s228 = scalar_select %p227, %s18, 1
        %p229 = scmp.lt.s32.totalorder %s226, 7
        %s230 = scalar_select %p229, %s226, 7
        %s231 = smul.addr %s230, 2
        %s232 = smul.addr %s228, 16
        %s233 = sadd.s32 %s231, %s232
        %s234 = smul.addr %s233, 4
        %s235 = scalar_lea.vmem %s1, %s234
        %s236 = smul.u32 %s19, 4
        %s237 = ssub.s32 %s236, 1
        %p238 = scmp.gt.s32.totalorder %s237, 0
        %s239 = scalar_select %p238, %s237, 0
      $region36: #{spatial_path_forward.4} parent=27 // pred_fallthru
        _
    $region28: #{spatial_path_forward.4} parent=5 // pred_fallthru
      _
    %p240 = scmp.le.s32.totalorder 1, %s11
    %p241 = scmp.lt.s32.totalorder %s11, 5
    %p242 = pnand %p240, %p241
    %p243 = pneg %p242
    // Predicated region
    $region37: #{spatial_path_forward.4} parent=5 // pred_check
      _
    $region38: #{spatial_path_forward.4} parent=5 // pred_check_branch
      %245 = sbr.rel (%p242) target = $region40
    $region39: #{spatial_path_forward.4} parent=5 // pred_region
      %s246 = ssub.s32 %s11, 1
      %s247 = smul.u32 4, %s21
      %p248 = scmp.lt.s32.totalorder %s20, 1
      %s249 = scalar_select %p248, %s20, 1
      %p250 = scmp.lt.s32.totalorder %s247, 7
      %s251 = scalar_select %p250, %s247, 7
      %s252 = smul.addr %s251, 2
      %s253 = smul.addr %s249, 16
      %s254 = sadd.s32 %s252, %s253
      %s255 = smul.addr %s254, 4
      %s256 = scalar_lea.vmem %s0, %s255
      %p257 = pneg %p51
      %p258 = pneg %p48
      %s259 = smul.u32 %s21, 4
      %s260 = ssub.s32 %s259, 1
      %p261 = scmp.gt.s32.totalorder %s260, 0
      %s262 = scalar_select %p261, %s260, 0
      %p263 = scmp.lt.s32.totalorder %s20, 1
      %s264 = scalar_select %p263, %s20, 1
      %p265 = scmp.lt.s32.totalorder %s262, 7
      %s266 = scalar_select %p265, %s262, 7
      %s267 = smul.addr %s266, 2
      %s268 = smul.addr %s264, 16
      %s269 = sadd.s32 %s267, %s268
      %s270 = smul.addr %s269, 4
      %s271 = scalar_lea.vmem %s1, %s270
      %p272 = pneg %p87
      %p273 = pneg %p84
      %p274 = pneg %p108
      %p275 = pneg %p105
      %p276 = pneg %p129
      %p277 = pneg %p126
      %p278 = pneg %p150
      %p279 = pneg %p147
      %p280 = pneg %p178
      %p281 = pneg %p175
      %s282 = smul.u32 4, %s21
      %p283 = scmp.lt.s32.totalorder %s20, 1
      %s284 = scalar_select %p283, %s20, 1
      %p285 = scmp.lt.s32.totalorder %s282, 7
      %s286 = scalar_select %p285, %s282, 7
      %s287 = smul.addr %s284, 8
      %s288 = sadd.s32 %s286, %s287
      %s289 = smul.addr %s288, 4
      %s290 = scalar_lea.vmem %s5, %s289
      %s291 = smul.u32 4, %s21
      %p292 = scmp.lt.s32.totalorder %s20, 1
      %s293 = scalar_select %p292, %s20, 1
      %p294 = scmp.lt.s32.totalorder %s291, 7
      %s295 = scalar_select %p294, %s291, 7
      %s296 = smul.addr %s295, 2
      %s297 = smul.addr %s293, 16
      %s298 = sadd.s32 %s296, %s297
      %s299 = smul.addr %s298, 4
      %s300 = scalar_lea.vmem %s0, %s299
      %s301 = smul.u32 4, %s21
      %s302 = smul.u32 %s21, 4
      %s303 = ssub.s32 %s302, 1
      %p304 = scmp.gt.s32.totalorder %s303, 0
      %s305 = scalar_select %p304, %s303, 0
      %p306 = scmp.lt.s32.totalorder %s20, 1
      %s307 = scalar_select %p306, %s20, 1
      %p308 = scmp.lt.s32.totalorder %s305, 7
      %s309 = scalar_select %p308, %s305, 7
      %s310 = smul.addr %s309, 2
      %s311 = smul.addr %s307, 16
      %s312 = sadd.s32 %s310, %s311
      %s313 = smul.addr %s312, 4
      %s314 = scalar_lea.vmem %s1, %s313
      %s315 = smul.u32 %s21, 4
      %s316 = ssub.s32 %s315, 1
      %p317 = scmp.gt.s32.totalorder %s316, 0
      %s318 = scalar_select %p317, %s316, 0
      %s319 = smul.u32 4, %s21
      %p320 = scmp.lt.s32.totalorder %s20, 1
      %s321 = scalar_select %p320, %s20, 1
      %p322 = scmp.lt.s32.totalorder %s319, 7
      %s323 = scalar_select %p322, %s319, 7
      %s324 = smul.addr %s321, 8
      %s325 = sadd.s32 %s323, %s324
      %s326 = smul.addr %s325, 4
      %s327 = scalar_lea.vmem %s5, %s326
      %s328 = smul.u32 4, %s21
      %v330 = vld [vmem:[%s300] sm:$0xf]
      %v331 = vld [vmem:[%s300 + $0x8] sm:$0xf]
      %v332 = vld [vmem:[%s300 + $0x10] sm:$0xf]
      %v333 = vld [vmem:[%s300 + $0x18] sm:$0xf]
      %s334 = scalar_lea.vmem %s300, 4
      %v335 = vld [vmem:[%s334] sm:$0xf]
      %v336 = vld [vmem:[%s334 + $0x8] sm:$0xf]
      %v337 = vld [vmem:[%s334 + $0x10] sm:$0xf]
      %v338 = vld [vmem:[%s334 + $0x18] sm:$0xf]
      %v339 = vld [vmem:[%s2] sm:$0xf]
      %v340 = vld [vmem:[%s2 + $0x4] sm:$0xf]
      %v341 = vld [vmem:[%s2 + $0x8] sm:$0xf]
      %v342 = vld [vmem:[%s2 + $0xc] sm:$0xf]
      %v343 = vld [vmem:[%s2 + $0x10] sm:$0xf]
      %v344 = vld [vmem:[%s2 + $0x14] sm:$0xf]
      %v345 = vld [vmem:[%s2 + $0x18] sm:$0xf]
      %v346 = vld [vmem:[%s2 + $0x1c] sm:$0xf]
      %v347 = vld [vmem:[%s2 + $0x20] sm:$0xf]
      %v348 = vld [vmem:[%s2 + $0x24] sm:$0xf]
      %v349 = vld [vmem:[%s2 + $0x28] sm:$0xf]
      %v350 = vld [vmem:[%s2 + $0x2c] sm:$0xf]
      %v351 = vld [vmem:[%s2 + $0x30] sm:$0xf]
      %v352 = vld [vmem:[%s2 + $0x34] sm:$0xf]
      %v353 = vld [vmem:[%s2 + $0x38] sm:$0xf]
      %v354 = vld [vmem:[%s2 + $0x3c] sm:$0xf]
      %v359 = vunpack.c.l.b16 %v330
      %v360 = vunpack.c.l.b16 %v331
      %v361 = vunpack.c.l.b16 %v332
      %v362 = vunpack.c.l.b16 %v333
      %v363 = vpack.c.b16 %v360, %v359
      %v364 = vpack.c.b16 %v362, %v361
      %v383 = vunpack.c.l.b16 %v339
      %v384 = vunpack.c.l.b16 %v340
      %v385 = vunpack.c.l.b16 %v341
      %v386 = vunpack.c.l.b16 %v342
      %v387 = vunpack.c.l.b16 %v343
      %v388 = vunpack.c.l.b16 %v344
      %v389 = vunpack.c.l.b16 %v345
      %v390 = vunpack.c.l.b16 %v346
      %v391 = vunpack.c.l.b16 %v347
      %v392 = vunpack.c.l.b16 %v348
      %v393 = vunpack.c.l.b16 %v349
      %v394 = vunpack.c.l.b16 %v350
      %v395 = vunpack.c.l.b16 %v351
      %v396 = vunpack.c.l.b16 %v352
      %v397 = vunpack.c.l.b16 %v353
      %v398 = vunpack.c.l.b16 %v354
      %v399 = vpack.c.b16 %v384, %v383
      %v400 = vpack.c.b16 %v386, %v385
      %v401 = vpack.c.b16 %v388, %v387
      %v402 = vpack.c.b16 %v390, %v389
      %v403 = vpack.c.b16 %v392, %v391
      %v404 = vpack.c.b16 %v394, %v393
      %v405 = vpack.c.b16 %v396, %v395
      %v406 = vpack.c.b16 %v398, %v397
      %415 = vmatprep.subr.bf16.mxu0 0
      %416 = vmatpush1.bf16.msra.mxu0 %v399
      %417 = vmatprep.subr.bf16.mxu0 0
      %418 = vmatpush1.bf16.msra.mxu0 %v400
      %419 = vmatprep.subr.bf16.mxu0 0
      %420 = vmatpush1.bf16.msra.mxu0 %v401
      %421 = vmatprep.subr.bf16.mxu0 0
      %422 = vmatpush1.bf16.msra.mxu0 %v402
      %423 = vmatprep.subr.bf16.mxu0 0
      %424 = vmatpush1.bf16.msra.mxu0 %v403
      %425 = vmatprep.subr.bf16.mxu0 0
      %426 = vmatpush1.bf16.msra.mxu0 %v404
      %427 = vmatprep.subr.bf16.mxu0 0
      %428 = vmatpush1.bf16.msra.mxu0 %v405
      %429 = vmatprep.subr.bf16.mxu0 0
      %430 = vmatpush1.bf16.msra.mxu0 %v406
      %431 = vmatprep.subr.bf16.mxu0 0
      %432 = vmatpush1.bf16.msra.mxu0 0
      %433 = vmatprep.subr.bf16.mxu0 0
      %434 = vmatpush1.bf16.msra.mxu0 0
      %435 = vmatprep.subr.bf16.mxu0 0
      %436 = vmatpush1.bf16.msra.mxu0 0
      %437 = vmatprep.subr.bf16.mxu0 0
      %438 = vmatpush1.bf16.msra.mxu0 0
      %439 = vmatprep.subr.bf16.mxu0 0
      %440 = vmatpush1.bf16.msra.mxu0 0
      %441 = vmatprep.subr.bf16.mxu0 0
      %442 = vmatpush1.bf16.msra.mxu0 0
      %443 = vmatprep.subr.bf16.mxu0 0
      %444 = vmatpush1.bf16.msra.mxu0 0
      %445 = vmatprep.subr.bf16.mxu0 0
      %446 = vmatpush1.bf16.msra.mxu0 0
      %447 = vmatprep.mubr.bf16.mxu0 0
      %448 = vmatmul.mubr.bf16.gmra.mrb[0].mxu0 %v363
      %v449 = vpop.f32.mrb[0].mxu0
      %v450 = vadd.f32 0.0, %v449
      %v451 = vpop.f32.mrb[0].mxu0
      %v452 = vpop.f32.mrb[0].mxu0
      %v453 = vadd.f32 0.0, %v452
      %v454 = vpop.f32.mrb[0].mxu0
      %455 = vmatprep.mubr.bf16.mxu0 0
      %456 = vmatmul.mubr.bf16.gmra.mrb[0].mxu0 %v364
      %v457 = vpop.f32.mrb[0].mxu0
      %v458 = vadd.f32 0.0, %v457
      %v459 = vpop.f32.mrb[0].mxu0
      %v460 = vpop.f32.mrb[0].mxu0
      %v461 = vadd.f32 0.0, %v460
      %v462 = vpop.f32.mrb[0].mxu0
      %463 = vdwg.mxu0
      %464 = vst [vmem:[#allocation2] sm:$0xff] %v450
      %465 = vst [vmem:[#allocation2 + $0x8] sm:$0xff] %v453
      %466 = vst [vmem:[#allocation2 + $0x10] sm:$0xff] %v458
      %467 = vst [vmem:[#allocation2 + $0x18] sm:$0xff] %v461
      %v468 = vld [vmem:[%s3] sm:$0xf]
      %v469 = vld [vmem:[%s3 + $0x4] sm:$0xf]
      %v470 = vld [vmem:[%s3 + $0x8] sm:$0xf]
      %v471 = vld [vmem:[%s3 + $0xc] sm:$0xf]
      %v472 = vld [vmem:[%s3 + $0x10] sm:$0xf]
      %v473 = vld [vmem:[%s3 + $0x14] sm:$0xf]
      %v474 = vld [vmem:[%s3 + $0x18] sm:$0xf]
      %v475 = vld [vmem:[%s3 + $0x1c] sm:$0xf]
      %v476 = vld [vmem:[%s3 + $0x20] sm:$0xf]
      %v477 = vld [vmem:[%s3 + $0x24] sm:$0xf]
      %v478 = vld [vmem:[%s3 + $0x28] sm:$0xf]
      %v479 = vld [vmem:[%s3 + $0x2c] sm:$0xf]
      %v480 = vld [vmem:[%s3 + $0x30] sm:$0xf]
      %v481 = vld [vmem:[%s3 + $0x34] sm:$0xf]
      %v482 = vld [vmem:[%s3 + $0x38] sm:$0xf]
      %v483 = vld [vmem:[%s3 + $0x3c] sm:$0xf]
      %v500 = vunpack.c.l.b16 %v468
      %v501 = vunpack.c.l.b16 %v469
      %v502 = vunpack.c.l.b16 %v470
      %v503 = vunpack.c.l.b16 %v471
      %v504 = vunpack.c.l.b16 %v472
      %v505 = vunpack.c.l.b16 %v473
      %v506 = vunpack.c.l.b16 %v474
      %v507 = vunpack.c.l.b16 %v475
      %v508 = vunpack.c.l.b16 %v476
      %v509 = vunpack.c.l.b16 %v477
      %v510 = vunpack.c.l.b16 %v478
      %v511 = vunpack.c.l.b16 %v479
      %v512 = vunpack.c.l.b16 %v480
      %v513 = vunpack.c.l.b16 %v481
      %v514 = vunpack.c.l.b16 %v482
      %v515 = vunpack.c.l.b16 %v483
      %v516 = vpack.c.b16 %v501, %v500
      %v517 = vpack.c.b16 %v503, %v502
      %v518 = vpack.c.b16 %v505, %v504
      %v519 = vpack.c.b16 %v507, %v506
      %v520 = vpack.c.b16 %v509, %v508
      %v521 = vpack.c.b16 %v511, %v510
      %v522 = vpack.c.b16 %v513, %v512
      %v523 = vpack.c.b16 %v515, %v514
      %532 = vmatprep.subr.bf16.mxu0 0
      %533 = vmatpush1.bf16.msra.mxu0 %v516
      %534 = vmatprep.subr.bf16.mxu0 0
      %535 = vmatpush1.bf16.msra.mxu0 %v517
      %536 = vmatprep.subr.bf16.mxu0 0
      %537 = vmatpush1.bf16.msra.mxu0 %v518
      %538 = vmatprep.subr.bf16.mxu0 0
      %539 = vmatpush1.bf16.msra.mxu0 %v519
      %540 = vmatprep.subr.bf16.mxu0 0
      %541 = vmatpush1.bf16.msra.mxu0 %v520
      %542 = vmatprep.subr.bf16.mxu0 0
      %543 = vmatpush1.bf16.msra.mxu0 %v521
      %544 = vmatprep.subr.bf16.mxu0 0
      %545 = vmatpush1.bf16.msra.mxu0 %v522
      %546 = vmatprep.subr.bf16.mxu0 0
      %547 = vmatpush1.bf16.msra.mxu0 %v523
      %548 = vmatprep.subr.bf16.mxu0 0
      %549 = vmatpush1.bf16.msra.mxu0 0
      %550 = vmatprep.subr.bf16.mxu0 0
      %551 = vmatpush1.bf16.msra.mxu0 0
      %552 = vmatprep.subr.bf16.mxu0 0
      %553 = vmatpush1.bf16.msra.mxu0 0
      %554 = vmatprep.subr.bf16.mxu0 0
      %555 = vmatpush1.bf16.msra.mxu0 0
      %556 = vmatprep.subr.bf16.mxu0 0
      %557 = vmatpush1.bf16.msra.mxu0 0
      %558 = vmatprep.subr.bf16.mxu0 0
      %559 = vmatpush1.bf16.msra.mxu0 0
      %560 = vmatprep.subr.bf16.mxu0 0
      %561 = vmatpush1.bf16.msra.mxu0 0
      %562 = vmatprep.subr.bf16.mxu0 0
      %563 = vmatpush1.bf16.msra.mxu0 0
      %564 = vmatprep.mubr.bf16.mxu0 0
      %565 = vmatmul.mubr.bf16.gmra.mrb[0].mxu0 %v363
      %v566 = vpop.f32.mrb[0].mxu0
      %v567 = vadd.f32 0.0, %v566
      %v568 = vpop.f32.mrb[0].mxu0
      %v569 = vpop.f32.mrb[0].mxu0
      %v570 = vadd.f32 0.0, %v569
      %v571 = vpop.f32.mrb[0].mxu0
      %572 = vmatprep.mubr.bf16.mxu0 0
      %573 = vmatmul.mubr.bf16.gmra.mrb[0].mxu0 %v364
      %v574 = vpop.f32.mrb[0].mxu0
      %v575 = vadd.f32 0.0, %v574
      %v576 = vpop.f32.mrb[0].mxu0
      %v577 = vpop.f32.mrb[0].mxu0
      %v578 = vadd.f32 0.0, %v577
      %v579 = vpop.f32.mrb[0].mxu0
      %580 = vdwg.mxu0
      %581 = vst [vmem:[#allocation3] sm:$0xff] %v567
      %582 = vst [vmem:[#allocation3 + $0x8] sm:$0xff] %v570
      %583 = vst [vmem:[#allocation3 + $0x10] sm:$0xff] %v575
      %584 = vst [vmem:[#allocation3 + $0x18] sm:$0xff] %v578
      %v585 = vld [vmem:[#allocation2] sm:$0xff]
      %v586 = vld [vmem:[#allocation2 + $0x8] sm:$0xff]
      %v587 = vld [vmem:[#allocation2 + $0x10] sm:$0xff]
      %v588 = vld [vmem:[#allocation2 + $0x18] sm:$0xff]
      %s589 = scalar_lea.vmem %s2, 64
      %v590 = vld [vmem:[%s589] sm:$0xf]
      %v591 = vld [vmem:[%s589 + $0x4] sm:$0xf]
      %v592 = vld [vmem:[%s589 + $0x8] sm:$0xf]
      %v593 = vld [vmem:[%s589 + $0xc] sm:$0xf]
      %v594 = vld [vmem:[%s589 + $0x10] sm:$0xf]
      %v595 = vld [vmem:[%s589 + $0x14] sm:$0xf]
      %v596 = vld [vmem:[%s589 + $0x18] sm:$0xf]
      %v597 = vld [vmem:[%s589 + $0x1c] sm:$0xf]
      %v598 = vld [vmem:[%s589 + $0x20] sm:$0xf]
      %v599 = vld [vmem:[%s589 + $0x24] sm:$0xf]
      %v600 = vld [vmem:[%s589 + $0x28] sm:$0xf]
      %v601 = vld [vmem:[%s589 + $0x2c] sm:$0xf]
      %v602 = vld [vmem:[%s589 + $0x30] sm:$0xf]
      %v603 = vld [vmem:[%s589 + $0x34] sm:$0xf]
      %v604 = vld [vmem:[%s589 + $0x38] sm:$0xf]
      %v605 = vld [vmem:[%s589 + $0x3c] sm:$0xf]
      %v610 = vunpack.c.l.b16 %v335
      %v611 = vunpack.c.l.b16 %v336
      %v612 = vunpack.c.l.b16 %v337
      %v613 = vunpack.c.l.b16 %v338
      %v614 = vpack.c.b16 %v611, %v610
      %v615 = vpack.c.b16 %v613, %v612
      %v634 = vunpack.c.l.b16 %v590
      %v635 = vunpack.c.l.b16 %v591
      %v636 = vunpack.c.l.b16 %v592
      %v637 = vunpack.c.l.b16 %v593
      %v638 = vunpack.c.l.b16 %v594
      %v639 = vunpack.c.l.b16 %v595
      %v640 = vunpack.c.l.b16 %v596
      %v641 = vunpack.c.l.b16 %v597
      %v642 = vunpack.c.l.b16 %v598
      %v643 = vunpack.c.l.b16 %v599
      %v644 = vunpack.c.l.b16 %v600
      %v645 = vunpack.c.l.b16 %v601
      %v646 = vunpack.c.l.b16 %v602
      %v647 = vunpack.c.l.b16 %v603
      %v648 = vunpack.c.l.b16 %v604
      %v649 = vunpack.c.l.b16 %v605
      %v650 = vpack.c.b16 %v635, %v634
      %v651 = vpack.c.b16 %v637, %v636
      %v652 = vpack.c.b16 %v639, %v638
      %v653 = vpack.c.b16 %v641, %v640
      %v654 = vpack.c.b16 %v643, %v642
      %v655 = vpack.c.b16 %v645, %v644
      %v656 = vpack.c.b16 %v647, %v646
      %v657 = vpack.c.b16 %v649, %v648
      %666 = vmatprep.subr.bf16.mxu0 0
      %667 = vmatpush1.bf16.msra.mxu0 %v650
      %668 = vmatprep.subr.bf16.mxu0 0
      %669 = vmatpush1.bf16.msra.mxu0 %v651
      %670 = vmatprep.subr.bf16.mxu0 0
      %671 = vmatpush1.bf16.msra.mxu0 %v652
      %672 = vmatprep.subr.bf16.mxu0 0
      %673 = vmatpush1.bf16.msra.mxu0 %v653
      %674 = vmatprep.subr.bf16.mxu0 0
      %675 = vmatpush1.bf16.msra.mxu0 %v654
      %676 = vmatprep.subr.bf16.mxu0 0
      %677 = vmatpush1.bf16.msra.mxu0 %v655
      %678 = vmatprep.subr.bf16.mxu0 0
      %679 = vmatpush1.bf16.msra.mxu0 %v656
      %680 = vmatprep.subr.bf16.mxu0 0
      %681 = vmatpush1.bf16.msra.mxu0 %v657
      %682 = vmatprep.subr.bf16.mxu0 0
      %683 = vmatpush1.bf16.msra.mxu0 0
      %684 = vmatprep.subr.bf16.mxu0 0
      %685 = vmatpush1.bf16.msra.mxu0 0
      %686 = vmatprep.subr.bf16.mxu0 0
      %687 = vmatpush1.bf16.msra.mxu0 0
      %688 = vmatprep.subr.bf16.mxu0 0
      %689 = vmatpush1.bf16.msra.mxu0 0
      %690 = vmatprep.subr.bf16.mxu0 0
      %691 = vmatpush1.bf16.msra.mxu0 0
      %692 = vmatprep.subr.bf16.mxu0 0
      %693 = vmatpush1.bf16.msra.mxu0 0
      %694 = vmatprep.subr.bf16.mxu0 0
      %695 = vmatpush1.bf16.msra.mxu0 0
      %696 = vmatprep.subr.bf16.mxu0 0
      %697 = vmatpush1.bf16.msra.mxu0 0
      %698 = vmatprep.mubr.bf16.mxu0 0
      %699 = vmatmul.mubr.bf16.gmra.mrb[0].mxu0 %v614
      %v700 = vpop.f32.mrb[0].mxu0
      %v701 = vadd.f32 0.0, %v700
      %v702 = vpop.f32.mrb[0].mxu0
      %v703 = vpop.f32.mrb[0].mxu0
      %v704 = vadd.f32 0.0, %v703
      %v705 = vpop.f32.mrb[0].mxu0
      %706 = vmatprep.mubr.bf16.mxu0 0
      %707 = vmatmul.mubr.bf16.gmra.mrb[0].mxu0 %v615
      %v708 = vpop.f32.mrb[0].mxu0
      %v709 = vadd.f32 0.0, %v708
      %v710 = vpop.f32.mrb[0].mxu0
      %v711 = vpop.f32.mrb[0].mxu0
      %v712 = vadd.f32 0.0, %v711
      %v713 = vpop.f32.mrb[0].mxu0
      %714 = vdwg.mxu0
      %v715 = vadd.f32 %v585, %v701
      %v716 = vadd.f32 %v586, %v704
      %v717 = vadd.f32 %v587, %v709
      %v718 = vadd.f32 %v588, %v712
      %719 = vst [vmem:[#allocation2] sm:$0xff] %v715
      %720 = vst [vmem:[#allocation2 + $0x8] sm:$0xff] %v716
      %721 = vst [vmem:[#allocation2 + $0x10] sm:$0xff] %v717
      %722 = vst [vmem:[#allocation2 + $0x18] sm:$0xff] %v718
      %v723 = vld [vmem:[#allocation3] sm:$0xff]
      %v724 = vld [vmem:[#allocation3 + $0x8] sm:$0xff]
      %v725 = vld [vmem:[#allocation3 + $0x10] sm:$0xff]
      %v726 = vld [vmem:[#allocation3 + $0x18] sm:$0xff]
      %s727 = scalar_lea.vmem %s3, 64
      %v728 = vld [vmem:[%s727] sm:$0xf]
      %v729 = vld [vmem:[%s727 + $0x4] sm:$0xf]
      %v730 = vld [vmem:[%s727 + $0x8] sm:$0xf]
      %v731 = vld [vmem:[%s727 + $0xc] sm:$0xf]
      %v732 = vld [vmem:[%s727 + $0x10] sm:$0xf]
      %v733 = vld [vmem:[%s727 + $0x14] sm:$0xf]
      %v734 = vld [vmem:[%s727 + $0x18] sm:$0xf]
      %v735 = vld [vmem:[%s727 + $0x1c] sm:$0xf]
      %v736 = vld [vmem:[%s727 + $0x20] sm:$0xf]
      %v737 = vld [vmem:[%s727 + $0x24] sm:$0xf]
      %v738 = vld [vmem:[%s727 + $0x28] sm:$0xf]
      %v739 = vld [vmem:[%s727 + $0x2c] sm:$0xf]
      %v740 = vld [vmem:[%s727 + $0x30] sm:$0xf]
      %v741 = vld [vmem:[%s727 + $0x34] sm:$0xf]
      %v742 = vld [vmem:[%s727 + $0x38] sm:$0xf]
      %v743 = vld [vmem:[%s727 + $0x3c] sm:$0xf]
      %v760 = vunpack.c.l.b16 %v728
      %v761 = vunpack.c.l.b16 %v729
      %v762 = vunpack.c.l.b16 %v730
      %v763 = vunpack.c.l.b16 %v731
      %v764 = vunpack.c.l.b16 %v732
      %v765 = vunpack.c.l.b16 %v733
      %v766 = vunpack.c.l.b16 %v734
      %v767 = vunpack.c.l.b16 %v735
      %v768 = vunpack.c.l.b16 %v736
      %v769 = vunpack.c.l.b16 %v737
      %v770 = vunpack.c.l.b16 %v738
      %v771 = vunpack.c.l.b16 %v739
      %v772 = vunpack.c.l.b16 %v740
      %v773 = vunpack.c.l.b16 %v741
      %v774 = vunpack.c.l.b16 %v742
      %v775 = vunpack.c.l.b16 %v743
      %v776 = vpack.c.b16 %v761, %v760
      %v777 = vpack.c.b16 %v763, %v762
      %v778 = vpack.c.b16 %v765, %v764
      %v779 = vpack.c.b16 %v767, %v766
      %v780 = vpack.c.b16 %v769, %v768
      %v781 = vpack.c.b16 %v771, %v770
      %v782 = vpack.c.b16 %v773, %v772
      %v783 = vpack.c.b16 %v775, %v774
      %792 = vmatprep.subr.bf16.mxu0 0
      %793 = vmatpush1.bf16.msra.mxu0 %v776
      %794 = vmatprep.subr.bf16.mxu0 0
      %795 = vmatpush1.bf16.msra.mxu0 %v777
      %796 = vmatprep.subr.bf16.mxu0 0
      %797 = vmatpush1.bf16.msra.mxu0 %v778
      %798 = vmatprep.subr.bf16.mxu0 0
      %799 = vmatpush1.bf16.msra.mxu0 %v779
      %800 = vmatprep.subr.bf16.mxu0 0
      %801 = vmatpush1.bf16.msra.mxu0 %v780
      %802 = vmatprep.subr.bf16.mxu0 0
      %803 = vmatpush1.bf16.msra.mxu0 %v781
      %804 = vmatprep.subr.bf16.mxu0 0
      %805 = vmatpush1.bf16.msra.mxu0 %v782
      %806 = vmatprep.subr.bf16.mxu0 0
      %807 = vmatpush1.bf16.msra.mxu0 %v783
      %808 = vmatprep.subr.bf16.mxu0 0
      %809 = vmatpush1.bf16.msra.mxu0 0
      %810 = vmatprep.subr.bf16.mxu0 0
      %811 = vmatpush1.bf16.msra.mxu0 0
      %812 = vmatprep.subr.bf16.mxu0 0
      %813 = vmatpush1.bf16.msra.mxu0 0
      %814 = vmatprep.subr.bf16.mxu0 0
      %815 = vmatpush1.bf16.msra.mxu0 0
      %816 = vmatprep.subr.bf16.mxu0 0
      %817 = vmatpush1.bf16.msra.mxu0 0
      %818 = vmatprep.subr.bf16.mxu0 0
      %819 = vmatpush1.bf16.msra.mxu0 0
      %820 = vmatprep.subr.bf16.mxu0 0
      %821 = vmatpush1.bf16.msra.mxu0 0
      %822 = vmatprep.subr.bf16.mxu0 0
      %823 = vmatpush1.bf16.msra.mxu0 0
      %824 = vmatprep.mubr.bf16.mxu0 0
      %825 = vmatmul.mubr.bf16.gmra.mrb[0].mxu0 %v614
      %v826 = vpop.f32.mrb[0].mxu0
      %v827 = vadd.f32 0.0, %v826
      %v828 = vpop.f32.mrb[0].mxu0
      %v829 = vpop.f32.mrb[0].mxu0
      %v830 = vadd.f32 0.0, %v829
      %v831 = vpop.f32.mrb[0].mxu0
      %832 = vmatprep.mubr.bf16.mxu0 0
      %833 = vmatmul.mubr.bf16.gmra.mrb[0].mxu0 %v615
      %v834 = vpop.f32.mrb[0].mxu0
      %v835 = vadd.f32 0.0, %v834
      %v836 = vpop.f32.mrb[0].mxu0
      %v837 = vpop.f32.mrb[0].mxu0
      %v838 = vadd.f32 0.0, %v837
      %v839 = vpop.f32.mrb[0].mxu0
      %840 = vdwg.mxu0
      %v841 = vadd.f32 %v723, %v827
      %v842 = vadd.f32 %v724, %v830
      %v843 = vadd.f32 %v725, %v835
      %v844 = vadd.f32 %v726, %v838
      %845 = vst [vmem:[#allocation3] sm:$0xff] %v841
      %846 = vst [vmem:[#allocation3 + $0x8] sm:$0xff] %v842
      %847 = vst [vmem:[#allocation3 + $0x10] sm:$0xff] %v843
      %848 = vst [vmem:[#allocation3 + $0x18] sm:$0xff] %v844
      %v849 = vld [vmem:[%s334] sm:$0xf]
      %v850 = vld [vmem:[%s334 + $0x8] sm:$0xf]
      %v851 = vld [vmem:[%s334 + $0x10] sm:$0xf]
      %v852 = vld [vmem:[#allocation2 + $0x8] sm:$0xff]
      %v853 = vld [vmem:[#allocation2 + $0x10] sm:$0xff]
      %v854 = vld [vmem:[#allocation2 + $0x18] sm:$0xff]
      %s855 = scalar_lea.vmem %s2, 128
      %v856 = vld [vmem:[%s855] sm:$0xf]
      %v857 = vld [vmem:[%s855 + $0x4] sm:$0xf]
      %v858 = vld [vmem:[%s855 + $0x8] sm:$0xf]
      %v859 = vld [vmem:[%s855 + $0xc] sm:$0xf]
      %v860 = vld [vmem:[%s855 + $0x10] sm:$0xf]
      %v861 = vld [vmem:[%s855 + $0x14] sm:$0xf]
      %v862 = vld [vmem:[%s855 + $0x18] sm:$0xf]
      %v863 = vld [vmem:[%s855 + $0x1c] sm:$0xf]
      %v864 = vld [vmem:[%s855 + $0x20] sm:$0xf]
      %v865 = vld [vmem:[%s855 + $0x24] sm:$0xf]
      %v866 = vld [vmem:[%s855 + $0x28] sm:$0xf]
      %v867 = vld [vmem:[%s855 + $0x2c] sm:$0xf]
      %v868 = vld [vmem:[%s855 + $0x30] sm:$0xf]
      %v869 = vld [vmem:[%s855 + $0x34] sm:$0xf]
      %v870 = vld [vmem:[%s855 + $0x38] sm:$0xf]
      %v871 = vld [vmem:[%s855 + $0x3c] sm:$0xf]
      %v875 = vunpack.c.l.b16 %v849
      %v876 = vunpack.c.l.b16 %v850
      %v877 = vunpack.c.l.b16 %v851
      %v878 = vpack.c.b16 %v876, %v875
      %v879 = vpack.c.b16 %v877, %v877
      %v898 = vunpack.c.l.b16 %v856
      %v899 = vunpack.c.l.b16 %v857
      %v900 = vunpack.c.l.b16 %v858
      %v901 = vunpack.c.l.b16 %v859
      %v902 = vunpack.c.l.b16 %v860
      %v903 = vunpack.c.l.b16 %v861
      %v904 = vunpack.c.l.b16 %v862
      %v905 = vunpack.c.l.b16 %v863
      %v906 = vunpack.c.l.b16 %v864
      %v907 = vunpack.c.l.b16 %v865
      %v908 = vunpack.c.l.b16 %v866
      %v909 = vunpack.c.l.b16 %v867
      %v910 = vunpack.c.l.b16 %v868
      %v911 = vunpack.c.l.b16 %v869
      %v912 = vunpack.c.l.b16 %v870
      %v913 = vunpack.c.l.b16 %v871
      %v914 = vpack.c.b16 %v899, %v898
      %v915 = vpack.c.b16 %v901, %v900
      %v916 = vpack.c.b16 %v903, %v902
      %v917 = vpack.c.b16 %v905, %v904
      %v918 = vpack.c.b16 %v907, %v906
      %v919 = vpack.c.b16 %v909, %v908
      %v920 = vpack.c.b16 %v911, %v910
      %v921 = vpack.c.b16 %v913, %v912
      %930 = vmatprep.subr.bf16.mxu0 0
      %931 = vmatpush1.bf16.msra.mxu0 %v914
      %932 = vmatprep.subr.bf16.mxu0 0
      %933 = vmatpush1.bf16.msra.mxu0 %v915
      %934 = vmatprep.subr.bf16.mxu0 0
      %935 = vmatpush1.bf16.msra.mxu0 %v916
      %936 = vmatprep.subr.bf16.mxu0 0
      %937 = vmatpush1.bf16.msra.mxu0 %v917
      %938 = vmatprep.subr.bf16.mxu0 0
      %939 = vmatpush1.bf16.msra.mxu0 %v918
      %940 = vmatprep.subr.bf16.mxu0 0
      %941 = vmatpush1.bf16.msra.mxu0 %v919
      %942 = vmatprep.subr.bf16.mxu0 0
      %943 = vmatpush1.bf16.msra.mxu0 %v920
      %944 = vmatprep.subr.bf16.mxu0 0
      %945 = vmatpush1.bf16.msra.mxu0 %v921
      %946 = vmatprep.subr.bf16.mxu0 0
      %947 = vmatpush1.bf16.msra.mxu0 0
      %948 = vmatprep.subr.bf16.mxu0 0
      %949 = vmatpush1.bf16.msra.mxu0 0
      %950 = vmatprep.subr.bf16.mxu0 0
      %951 = vmatpush1.bf16.msra.mxu0 0
      %952 = vmatprep.subr.bf16.mxu0 0
      %953 = vmatpush1.bf16.msra.mxu0 0
      %954 = vmatprep.subr.bf16.mxu0 0
      %955 = vmatpush1.bf16.msra.mxu0 0
      %956 = vmatprep.subr.bf16.mxu0 0
      %957 = vmatpush1.bf16.msra.mxu0 0
      %958 = vmatprep.subr.bf16.mxu0 0
      %959 = vmatpush1.bf16.msra.mxu0 0
      %960 = vmatprep.subr.bf16.mxu0 0
      %961 = vmatpush1.bf16.msra.mxu0 0
      %962 = vmatprep.mubr.bf16.mxu0 0
      %963 = vmatmul.mubr.bf16.gmra.mrb[0].mxu0 %v878
      %v964 = vpop.f32.mrb[0].mxu0
      %v965 = vadd.f32 0.0, %v964
      %v966 = vpop.f32.mrb[0].mxu0
      %v967 = vpop.f32.mrb[0].mxu0
      %v968 = vadd.f32 0.0, %v967
      %v969 = vpop.f32.mrb[0].mxu0
      %970 = vmatprep.mubr.bf16.mxu0 0
      %971 = vmatmul.mubr.bf16.gmra.mrb[0].mxu0 %v879
      %v972 = vpop.f32.mrb[0].mxu0
      %v973 = vadd.f32 0.0, %v972
      %v974 = vpop.f32.mrb[0].mxu0
      %v975 = vpop.f32.mrb[0].mxu0
      %v976 = vpop.f32.mrb[0].mxu0
      %977 = vdwg.mxu0
      %v978 = vadd.f32 %v852, %v965
      %v979 = vadd.f32 %v853, %v968
      %v980 = vadd.f32 %v854, %v973
      %981 = vst [vmem:[#allocation2 + $0x8] sm:$0xff] %v978
      %982 = vst [vmem:[#allocation2 + $0x10] sm:$0xff] %v979
      %983 = vst [vmem:[#allocation2 + $0x18] sm:$0xff] %v980
      %v984 = vld [vmem:[#allocation3 + $0x8] sm:$0xff]
      %v985 = vld [vmem:[#allocation3 + $0x10] sm:$0xff]
      %v986 = vld [vmem:[#allocation3 + $0x18] sm:$0xff]
      %s987 = scalar_lea.vmem %s3, 128
      %v988 = vld [vmem:[%s987] sm:$0xf]
      %v989 = vld [vmem:[%s987 + $0x4] sm:$0xf]
      %v990 = vld [vmem:[%s987 + $0x8] sm:$0xf]
      %v991 = vld [vmem:[%s987 + $0xc] sm:$0xf]
      %v992 = vld [vmem:[%s987 + $0x10] sm:$0xf]
      %v993 = vld [vmem:[%s987 + $0x14] sm:$0xf]
      %v994 = vld [vmem:[%s987 + $0x18] sm:$0xf]
      %v995 = vld [vmem:[%s987 + $0x1c] sm:$0xf]
      %v996 = vld [vmem:[%s987 + $0x20] sm:$0xf]
      %v997 = vld [vmem:[%s987 + $0x24] sm:$0xf]
      %v998 = vld [vmem:[%s987 + $0x28] sm:$0xf]
      %v999 = vld [vmem:[%s987 + $0x2c] sm:$0xf]
      %v1000 = vld [vmem:[%s987 + $0x30] sm:$0xf]
      %v1001 = vld [vmem:[%s987 + $0x34] sm:$0xf]
      %v1002 = vld [vmem:[%s987 + $0x38] sm:$0xf]
      %v1003 = vld [vmem:[%s987 + $0x3c] sm:$0xf]
      %v1020 = vunpack.c.l.b16 %v988
      %v1021 = vunpack.c.l.b16 %v989
      %v1022 = vunpack.c.l.b16 %v990
      %v1023 = vunpack.c.l.b16 %v991
      %v1024 = vunpack.c.l.b16 %v992
      %v1025 = vunpack.c.l.b16 %v993
      %v1026 = vunpack.c.l.b16 %v994
      %v1027 = vunpack.c.l.b16 %v995
      %v1028 = vunpack.c.l.b16 %v996
      %v1029 = vunpack.c.l.b16 %v997
      %v1030 = vunpack.c.l.b16 %v998
      %v1031 = vunpack.c.l.b16 %v999
      %v1032 = vunpack.c.l.b16 %v1000
      %v1033 = vunpack.c.l.b16 %v1001
      %v1034 = vunpack.c.l.b16 %v1002
      %v1035 = vunpack.c.l.b16 %v1003
      %v1036 = vpack.c.b16 %v1021, %v1020
      %v1037 = vpack.c.b16 %v1023, %v1022
      %v1038 = vpack.c.b16 %v1025, %v1024
      %v1039 = vpack.c.b16 %v1027, %v1026
      %v1040 = vpack.c.b16 %v1029, %v1028
      %v1041 = vpack.c.b16 %v1031, %v1030
      %v1042 = vpack.c.b16 %v1033, %v1032
      %v1043 = vpack.c.b16 %v1035, %v1034
      %1052 = vmatprep.subr.bf16.mxu0 0
      %1053 = vmatpush1.bf16.msra.mxu0 %v1036
      %1054 = vmatprep.subr.bf16.mxu0 0
      %1055 = vmatpush1.bf16.msra.mxu0 %v1037
      %1056 = vmatprep.subr.bf16.mxu0 0
      %1057 = vmatpush1.bf16.msra.mxu0 %v1038
      %1058 = vmatprep.subr.bf16.mxu0 0
      %1059 = vmatpush1.bf16.msra.mxu0 %v1039
      %1060 = vmatprep.subr.bf16.mxu0 0
      %1061 = vmatpush1.bf16.msra.mxu0 %v1040
      %1062 = vmatprep.subr.bf16.mxu0 0
      %1063 = vmatpush1.bf16.msra.mxu0 %v1041
      %1064 = vmatprep.subr.bf16.mxu0 0
      %1065 = vmatpush1.bf16.msra.mxu0 %v1042
      %1066 = vmatprep.subr.bf16.mxu0 0
      %1067 = vmatpush1.bf16.msra.mxu0 %v1043
      %1068 = vmatprep.subr.bf16.mxu0 0
      %1069 = vmatpush1.bf16.msra.mxu0 0
      %1070 = vmatprep.subr.bf16.mxu0 0
      %1071 = vmatpush1.bf16.msra.mxu0 0
      %1072 = vmatprep.subr.bf16.mxu0 0
      %1073 = vmatpush1.bf16.msra.mxu0 0
      %1074 = vmatprep.subr.bf16.mxu0 0
      %1075 = vmatpush1.bf16.msra.mxu0 0
      %1076 = vmatprep.subr.bf16.mxu0 0
      %1077 = vmatpush1.bf16.msra.mxu0 0
      %1078 = vmatprep.subr.bf16.mxu0 0
      %1079 = vmatpush1.bf16.msra.mxu0 0
      %1080 = vmatprep.subr.bf16.mxu0 0
      %1081 = vmatpush1.bf16.msra.mxu0 0
      %1082 = vmatprep.subr.bf16.mxu0 0
      %1083 = vmatpush1.bf16.msra.mxu0 0
      %1084 = vmatprep.mubr.bf16.mxu0 0
      %1085 = vmatmul.mubr.bf16.gmra.mrb[0].mxu0 %v878
      %v1086 = vpop.f32.mrb[0].mxu0
      %v1087 = vadd.f32 0.0, %v1086
      %v1088 = vpop.f32.mrb[0].mxu0
      %v1089 = vpop.f32.mrb[0].mxu0
      %v1090 = vadd.f32 0.0, %v1089
      %v1091 = vpop.f32.mrb[0].mxu0
      %1092 = vmatprep.mubr.bf16.mxu0 0
      %1093 = vmatmul.mubr.bf16.gmra.mrb[0].mxu0 %v879
      %v1094 = vpop.f32.mrb[0].mxu0
      %v1095 = vadd.f32 0.0, %v1094
      %v1096 = vpop.f32.mrb[0].mxu0
      %v1097 = vpop.f32.mrb[0].mxu0
      %v1098 = vpop.f32.mrb[0].mxu0
      %1099 = vdwg.mxu0
      %v1100 = vadd.f32 %v984, %v1087
      %v1101 = vadd.f32 %v985, %v1090
      %v1102 = vadd.f32 %v986, %v1095
      %1103 = vst [vmem:[#allocation3 + $0x8] sm:$0xff] %v1100
      %1104 = vst [vmem:[#allocation3 + $0x10] sm:$0xff] %v1101
      %1105 = vst [vmem:[#allocation3 + $0x18] sm:$0xff] %v1102
      %p1106 = scmp.gt.s32.totalorder %s21, 0
      // Predicated region
      $region41: #{spatial_path_forward.4} parent=39 // pred_check
        %p1107 = pneg %p1106
      $region42: #{spatial_path_forward.4} parent=39 // pred_check_branch
        %1109 = sbr.rel (%p1107) target = $region44
      $region43: #{spatial_path_forward.4} parent=39 // pred_region
        %s1110 = scalar_lea.vmem %s314, 4
        %v1111 = vld [vmem:[%s1110] sm:$0xf]
        %v1112 = vld [vmem:[#allocation2] sm:$0xff]
        %v1113 = vld [vmem:[%s855] sm:$0xf]
        %v1114 = vld [vmem:[%s855 + $0x4] sm:$0xf]
        %v1115 = vld [vmem:[%s855 + $0x8] sm:$0xf]
        %v1116 = vld [vmem:[%s855 + $0xc] sm:$0xf]
        %v1117 = vld [vmem:[%s855 + $0x10] sm:$0xf]
        %v1118 = vld [vmem:[%s855 + $0x14] sm:$0xf]
        %v1119 = vld [vmem:[%s855 + $0x18] sm:$0xf]
        %v1120 = vld [vmem:[%s855 + $0x1c] sm:$0xf]
        %v1121 = vld [vmem:[%s855 + $0x20] sm:$0xf]
        %v1122 = vld [vmem:[%s855 + $0x24] sm:$0xf]
        %v1123 = vld [vmem:[%s855 + $0x28] sm:$0xf]
        %v1124 = vld [vmem:[%s855 + $0x2c] sm:$0xf]
        %v1125 = vld [vmem:[%s855 + $0x30] sm:$0xf]
        %v1126 = vld [vmem:[%s855 + $0x34] sm:$0xf]
        %v1127 = vld [vmem:[%s855 + $0x38] sm:$0xf]
        %v1128 = vld [vmem:[%s855 + $0x3c] sm:$0xf]
        %v1145 = vunpack.c.l.b16 %v1113
        %v1146 = vunpack.c.l.b16 %v1114
        %v1147 = vunpack.c.l.b16 %v1115
        %v1148 = vunpack.c.l.b16 %v1116
        %v1149 = vunpack.c.l.b16 %v1117
        %v1150 = vunpack.c.l.b16 %v1118
        %v1151 = vunpack.c.l.b16 %v1119
        %v1152 = vunpack.c.l.b16 %v1120
        %v1153 = vunpack.c.l.b16 %v1121
        %v1154 = vunpack.c.l.b16 %v1122
        %v1155 = vunpack.c.l.b16 %v1123
        %v1156 = vunpack.c.l.b16 %v1124
        %v1157 = vunpack.c.l.b16 %v1125
        %v1158 = vunpack.c.l.b16 %v1126
        %v1159 = vunpack.c.l.b16 %v1127
        %v1160 = vunpack.c.l.b16 %v1128
        %v1161 = vpack.c.b16 %v1146, %v1145
        %v1162 = vpack.c.b16 %v1148, %v1147
        %v1163 = vpack.c.b16 %v1150, %v1149
        %v1164 = vpack.c.b16 %v1152, %v1151
        %v1165 = vpack.c.b16 %v1154, %v1153
        %v1166 = vpack.c.b16 %v1156, %v1155
        %v1167 = vpack.c.b16 %v1158, %v1157
        %v1168 = vpack.c.b16 %v1160, %v1159
        %1177 = vmatprep.subr.bf16.mxu0 0
        %1178 = vmatpush1.bf16.msra.mxu0 %v1161
        %1179 = vmatprep.subr.bf16.mxu0 0
        %1180 = vmatpush1.bf16.msra.mxu0 %v1162
        %1181 = vmatprep.subr.bf16.mxu0 0
        %1182 = vmatpush1.bf16.msra.mxu0 %v1163
        %1183 = vmatprep.subr.bf16.mxu0 0
        %1184 = vmatpush1.bf16.msra.mxu0 %v1164
        %1185 = vmatprep.subr.bf16.mxu0 0
        %1186 = vmatpush1.bf16.msra.mxu0 %v1165
        %1187 = vmatprep.subr.bf16.mxu0 0
        %1188 = vmatpush1.bf16.msra.mxu0 %v1166
        %1189 = vmatprep.subr.bf16.mxu0 0
        %1190 = vmatpush1.bf16.msra.mxu0 %v1167
        %1191 = vmatprep.subr.bf16.mxu0 0
        %1192 = vmatpush1.bf16.msra.mxu0 %v1168
        %1193 = vmatprep.subr.bf16.mxu0 0
        %1194 = vmatpush1.bf16.msra.mxu0 0
        %1195 = vmatprep.subr.bf16.mxu0 0
        %1196 = vmatpush1.bf16.msra.mxu0 0
        %1197 = vmatprep.subr.bf16.mxu0 0
        %1198 = vmatpush1.bf16.msra.mxu0 0
        %1199 = vmatprep.subr.bf16.mxu0 0
        %1200 = vmatpush1.bf16.msra.mxu0 0
        %1201 = vmatprep.subr.bf16.mxu0 0
        %1202 = vmatpush1.bf16.msra.mxu0 0
        %1203 = vmatprep.subr.bf16.mxu0 0
        %1204 = vmatpush1.bf16.msra.mxu0 0
        %1205 = vmatprep.subr.bf16.mxu0 0
        %1206 = vmatpush1.bf16.msra.mxu0 0
        %1207 = vmatprep.subr.bf16.mxu0 0
        %1208 = vmatpush1.bf16.msra.mxu0 0
        %1209 = vmatprep.mubr.bf16.mxu0 0
        %1210 = vmatmul.mubr.bf16.gmra.mrb[0].mxu0 %v1111
        %v1211 = vpop.f32.mrb[0].mxu0
        %v1212 = vadd.f32 0.0, %v1211
        %v1213 = vpop.f32.mrb[0].mxu0
        %v1214 = vpop.f32.mrb[0].mxu0
        %v1215 = vpop.f32.mrb[0].mxu0
        %1216 = vdwg.mxu0
        %v1217 = vadd.f32 %v1112, %v1212
        %1218 = vst [vmem:[#allocation2] sm:$0xff] %v1217
        %v1219 = vld [vmem:[#allocation3] sm:$0xff]
        %v1220 = vld [vmem:[%s987] sm:$0xf]
        %v1221 = vld [vmem:[%s987 + $0x4] sm:$0xf]
        %v1222 = vld [vmem:[%s987 + $0x8] sm:$0xf]
        %v1223 = vld [vmem:[%s987 + $0xc] sm:$0xf]
        %v1224 = vld [vmem:[%s987 + $0x10] sm:$0xf]
        %v1225 = vld [vmem:[%s987 + $0x14] sm:$0xf]
        %v1226 = vld [vmem:[%s987 + $0x18] sm:$0xf]
        %v1227 = vld [vmem:[%s987 + $0x1c] sm:$0xf]
        %v1228 = vld [vmem:[%s987 + $0x20] sm:$0xf]
        %v1229 = vld [vmem:[%s987 + $0x24] sm:$0xf]
        %v1230 = vld [vmem:[%s987 + $0x28] sm:$0xf]
        %v1231 = vld [vmem:[%s987 + $0x2c] sm:$0xf]
        %v1232 = vld [vmem:[%s987 + $0x30] sm:$0xf]
        %v1233 = vld [vmem:[%s987 + $0x34] sm:$0xf]
        %v1234 = vld [vmem:[%s987 + $0x38] sm:$0xf]
        %v1235 = vld [vmem:[%s987 + $0x3c] sm:$0xf]
        %v1252 = vunpack.c.l.b16 %v1220
        %v1253 = vunpack.c.l.b16 %v1221
        %v1254 = vunpack.c.l.b16 %v1222
        %v1255 = vunpack.c.l.b16 %v1223
        %v1256 = vunpack.c.l.b16 %v1224
        %v1257 = vunpack.c.l.b16 %v1225
        %v1258 = vunpack.c.l.b16 %v1226
        %v1259 = vunpack.c.l.b16 %v1227
        %v1260 = vunpack.c.l.b16 %v1228
        %v1261 = vunpack.c.l.b16 %v1229
        %v1262 = vunpack.c.l.b16 %v1230
        %v1263 = vunpack.c.l.b16 %v1231
        %v1264 = vunpack.c.l.b16 %v1232
        %v1265 = vunpack.c.l.b16 %v1233
        %v1266 = vunpack.c.l.b16 %v1234
        %v1267 = vunpack.c.l.b16 %v1235
        %v1268 = vpack.c.b16 %v1253, %v1252
        %v1269 = vpack.c.b16 %v1255, %v1254
        %v1270 = vpack.c.b16 %v1257, %v1256
        %v1271 = vpack.c.b16 %v1259, %v1258
        %v1272 = vpack.c.b16 %v1261, %v1260
        %v1273 = vpack.c.b16 %v1263, %v1262
        %v1274 = vpack.c.b16 %v1265, %v1264
        %v1275 = vpack.c.b16 %v1267, %v1266
        %1284 = vmatprep.subr.bf16.mxu0 0
        %1285 = vmatpush1.bf16.msra.mxu0 %v1268
        %1286 = vmatprep.subr.bf16.mxu0 0
        %1287 = vmatpush1.bf16.msra.mxu0 %v1269
        %1288 = vmatprep.subr.bf16.mxu0 0
        %1289 = vmatpush1.bf16.msra.mxu0 %v1270
        %1290 = vmatprep.subr.bf16.mxu0 0
        %1291 = vmatpush1.bf16.msra.mxu0 %v1271
        %1292 = vmatprep.subr.bf16.mxu0 0
        %1293 = vmatpush1.bf16.msra.mxu0 %v1272
        %1294 = vmatprep.subr.bf16.mxu0 0
        %1295 = vmatpush1.bf16.msra.mxu0 %v1273
        %1296 = vmatprep.subr.bf16.mxu0 0
        %1297 = vmatpush1.bf16.msra.mxu0 %v1274
        %1298 = vmatprep.subr.bf16.mxu0 0
        %1299 = vmatpush1.bf16.msra.mxu0 %v1275
        %1300 = vmatprep.subr.bf16.mxu0 0
        %1301 = vmatpush1.bf16.msra.mxu0 0
        %1302 = vmatprep.subr.bf16.mxu0 0
        %1303 = vmatpush1.bf16.msra.mxu0 0
        %1304 = vmatprep.subr.bf16.mxu0 0
        %1305 = vmatpush1.bf16.msra.mxu0 0
        %1306 = vmatprep.subr.bf16.mxu0 0
        %1307 = vmatpush1.bf16.msra.mxu0 0
        %1308 = vmatprep.subr.bf16.mxu0 0
        %1309 = vmatpush1.bf16.msra.mxu0 0
        %1310 = vmatprep.subr.bf16.mxu0 0
        %1311 = vmatpush1.bf16.msra.mxu0 0
        %1312 = vmatprep.subr.bf16.mxu0 0
        %1313 = vmatpush1.bf16.msra.mxu0 0
        %1314 = vmatprep.subr.bf16.mxu0 0
        %1315 = vmatpush1.bf16.msra.mxu0 0
        %1316 = vmatprep.mubr.bf16.mxu0 0
        %1317 = vmatmul.mubr.bf16.gmra.mrb[0].mxu0 %v1111
        %v1318 = vpop.f32.mrb[0].mxu0
        %v1319 = vadd.f32 0.0, %v1318
        %v1320 = vpop.f32.mrb[0].mxu0
        %v1321 = vpop.f32.mrb[0].mxu0
        %v1322 = vpop.f32.mrb[0].mxu0
        %1323 = vdwg.mxu0
        %v1324 = vadd.f32 %v1219, %v1319
        %1325 = vst [vmem:[#allocation3] sm:$0xff] %v1324
      $region44: #{spatial_path_forward.4} parent=39 // pred_fallthru
        _
      %v1326 = vld [vmem:[#allocation2] sm:$0xff]
      %v1327 = vld [vmem:[#allocation2 + $0x8] sm:$0xff]
      %v1328 = vld [vmem:[#allocation2 + $0x10] sm:$0xff]
      %v1329 = vld [vmem:[#allocation2 + $0x18] sm:$0xff]
      %v1330 = vld [vmem:[#allocation3] sm:$0xff]
      %v1331 = vld [vmem:[#allocation3 + $0x8] sm:$0xff]
      %v1332 = vld [vmem:[#allocation3 + $0x10] sm:$0xff]
      %v1333 = vld [vmem:[#allocation3 + $0x18] sm:$0xff]
      %vm1338 = vcmask 1040384
      %v1339 = vrot.slane %v1330, 7
      %v1340 = vrot.slane %v1331, 7
      %v1341 = vsel %vm1338, %v1339, %v1340
      %v1342 = vrot.slane %v1332, 7
      %v1343 = vsel %vm1338, %v1340, %v1342
      %v1344 = vrot.slane %v1333, 7
      %v1345 = vsel %vm1338, %v1342, %v1344
      %v1350 = vsel %vm1338, 0.0, %v1339
      %v1351 = vlaneseq
      %v1352 = vshrl.u32 %v1351, 7
      %v1353 = vadd.s32 %v1352, 8
      %v1354 = vadd.s32 %v1352, 16
      %v1355 = vadd.s32 %v1352, 24
      %vm1356 = vcmp.lt.s32.totalorder %v1352, 0
      %v1357 = vsub.s32 0, %v1352
      %v1358 = vsel %vm1356, %v1357, %v1352
      %v1359 = vshrl.u32 %v1358, 3
      %v1360 = vand.u32 %v1358, 7
      %v1361 = vsub.s32 0, %v1360
      %v1362 = vsel %vm1356, %v1361, %v1360
      %vm1363 = vcmp.lt.s32.totalorder %v1353, 0
      %v1364 = vsub.s32 0, %v1353
      %v1365 = vsel %vm1363, %v1364, %v1353
      %v1366 = vshrl.u32 %v1365, 3
      %v1367 = vand.u32 %v1365, 7
      %v1368 = vsub.s32 0, %v1367
      %v1369 = vsel %vm1363, %v1368, %v1367
      %vm1370 = vcmp.lt.s32.totalorder %v1354, 0
      %v1371 = vsub.s32 0, %v1354
      %v1372 = vsel %vm1370, %v1371, %v1354
      %v1373 = vshrl.u32 %v1372, 3
      %v1374 = vand.u32 %v1372, 7
      %v1375 = vsub.s32 0, %v1374
      %v1376 = vsel %vm1370, %v1375, %v1374
      %vm1377 = vcmp.lt.s32.totalorder %v1355, 0
      %v1378 = vsub.s32 0, %v1355
      %v1379 = vsel %vm1377, %v1378, %v1355
      %v1380 = vshrl.u32 %v1379, 3
      %v1381 = vand.u32 %v1379, 7
      %v1382 = vsub.s32 0, %v1381
      %v1383 = vsel %vm1377, %v1382, %v1381
      %vm1384 = vcmp.ne.s32.totalorder %v1362, 0
      %vm1385 = vcmp.ne.s32.totalorder %v1369, 0
      %vm1386 = vcmp.ne.s32.totalorder %v1376, 0
      %vm1387 = vcmp.ne.s32.totalorder %v1383, 0
      %vm1388 = vcmp.lt.s32.totalorder %v1362, 0
      %vm1389 = vcmp.lt.s32.totalorder %v1369, 0
      %vm1390 = vcmp.lt.s32.totalorder %v1376, 0
      %vm1391 = vcmp.lt.s32.totalorder %v1383, 0
      %vm1392 = vmand %vm1388, %vm1384
      %vm1393 = vmand %vm1389, %vm1385
      %vm1394 = vmand %vm1390, %vm1386
      %vm1395 = vmand %vm1391, %vm1387
      %v1396 = vadd.s32 %v1362, 8
      %v1397 = vadd.s32 %v1369, 8
      %v1398 = vadd.s32 %v1376, 8
      %v1399 = vadd.s32 %v1383, 8
      %v1400 = vsel %vm1392, %v1396, %v1362
      %v1401 = vsel %vm1393, %v1397, %v1369
      %v1402 = vsel %vm1394, %v1398, %v1376
      %v1403 = vsel %vm1395, %v1399, %v1383
      %vm1404 = vcmp.eq.s32.totalorder %v1400, 0
      %vm1405 = vcmp.eq.s32.totalorder %v1401, 0
      %vm1406 = vcmp.eq.s32.totalorder %v1402, 0
      %vm1407 = vcmp.eq.s32.totalorder %v1403, 0
      %v1408 = vsel %vm1404, 0.0, %v1350
      %v1409 = vsel %vm1405, 0.0, %v1341
      %v1410 = vsel %vm1406, 0.0, %v1343
      %v1411 = vsel %vm1407, 0.0, %v1345
      %v1412 = vadd.f32 %v1326, %v1408
      %v1413 = vadd.f32 %v1327, %v1409
      %v1414 = vadd.f32 %v1328, %v1410
      %v1415 = vadd.f32 %v1329, %v1411
      %v1416 = vld [vmem:[%s4] sm:$0x1]
      %v1417 = vlaneseq
      %v1418 = vshrl.u32 %v1417, 7
      %v1419 = vsub.s32 0, %v1418
      %v1420 = vrot.slane %v1416, %v1419
      %v1421 = vmul.f32 %v1412, %v1420
      %v1422 = vmul.f32 %v1413, %v1420
      %v1423 = vmul.f32 %v1414, %v1420
      %v1424 = vmul.f32 %v1415, %v1420
      %v1425 = vld [vmem:[%s4 + $0x1] sm:$0x1]
      %v1426 = vlaneseq
      %v1427 = vshrl.u32 %v1426, 7
      %v1428 = vsub.s32 0, %v1427
      %v1429 = vrot.slane %v1425, %v1428
      %v1430 = vadd.f32 %v1421, %v1429
      %v1431 = vadd.f32 %v1422, %v1429
      %v1432 = vadd.f32 %v1423, %v1429
      %v1433 = vadd.f32 %v1424, %v1429
      %v1434 = vmax.f32 %v1430, 0.0
      %v1435 = vmax.f32 %v1431, 0.0
      %v1436 = vmax.f32 %v1432, 0.0
      %v1437 = vmax.f32 %v1433, 0.0
      %v1438 = vpack.c.bf16 %v1435, %v1434
      %v1439 = vpack.c.bf16 %v1437, %v1436
      %v1442 = vunpack.c.l.b16 %v1438
      %v1443 = vunpack.c.h.b16 %v1438
      %v1444 = vunpack.c.l.b16 %v1439
      %v1445 = vunpack.c.h.b16 %v1439
      %v1446 = vpack.c.b16 %v1442, %v1442
      %v1447 = vpack.c.b16 %v1443, %v1443
      %v1448 = vpack.c.b16 %v1444, %v1444
      %v1449 = vpack.c.b16 %v1445, %v1445
      %1454 = vst [vmem:[%s327] sm:$0xf] %v1446
      %1455 = vst [vmem:[%s327 + $0x4] sm:$0xf] %v1447
      %1456 = vst [vmem:[%s327 + $0x8] sm:$0xf] %v1448
      %1457 = vst [vmem:[%s327 + $0xc] sm:$0xf] %v1449
      %s1458 = smul.u32 4, %s21
      %p1459 = scmp.lt.s32.totalorder %s20, 1
      %s1460 = scalar_select %p1459, %s20, 1
      %p1461 = scmp.lt.s32.totalorder %s1458, 7
      %s1462 = scalar_select %p1461, %s1458, 7
      %s1463 = smul.addr %s1460, 8
      %s1464 = sadd.s32 %s1462, %s1463
      %s1465 = smul.addr %s1464, 4
      %s1466 = scalar_lea.vmem %s5, %s1465
      // Predicated region
      $region45: #{spatial_path_forward.4} parent=39 // pred_check
        %p1467 = pneg %p175
      $region46: #{spatial_path_forward.4} parent=39 // pred_check_branch
        %1469 = sbr.rel (%p1467) target = $region48
      $region47: #{spatial_path_forward.4} parent=39 // pred_region
        %s1470 = smul.u32 4, %s21
      $region48: #{spatial_path_forward.4} parent=39 // pred_fallthru
        _
    $region40: #{spatial_path_forward.4} parent=5 // pred_fallthru
      _
    %p1471 = scmp.le.s32.totalorder 2, %s11
    // Predicated region
    $region49: #{spatial_path_forward.4} parent=5 // pred_check
      %p1472 = pneg %p1471
    $region50: #{spatial_path_forward.4} parent=5 // pred_check_branch
      %1474 = sbr.rel (%p1472) target = $region52
    $region51: #{spatial_path_forward.4} parent=5 // pred_region
      %s1475 = ssub.s32 %s11, 2
      // Predicated region
      $region53: #{spatial_path_forward.4} parent=51 // pred_check
        %p1476 = pneg %p181
      $region54: #{spatial_path_forward.4} parent=51 // pred_check_branch
        %1478 = sbr.rel (%p1476) target = $region56
      $region55: #{spatial_path_forward.4} parent=51 // pred_region
        %s1479 = smul.u32 4, %s23
        %p1480 = scmp.lt.s32.totalorder %s22, 1
        %s1481 = scalar_select %p1480, %s22, 1
        %p1482 = scmp.lt.s32.totalorder %s1479, 7
        %s1483 = scalar_select %p1482, %s1479, 7
        %s1484 = smul.addr %s1481, 8
        %s1485 = sadd.s32 %s1483, %s1484
        %s1486 = smul.addr %s1485, 4
        %s1487 = scalar_lea.vmem %s5, %s1486
      $region56: #{spatial_path_forward.4} parent=51 // pred_fallthru
        _
    $region52: #{spatial_path_forward.4} parent=5 // pred_fallthru
      _
  $region6: #{spatial_path_forward.4} parent=0 // loop_footer
    %s15 = sadd.s32 1, %s11
  $region7: #{spatial_path_forward.4} parent=0 // loop_footer_branch
    %10 = sbr.rel target = $region3
  $region8: #{spatial_path_forward.4} parent=0 // loop_exit
    _

// kernel: spatial_path_forward.5
$region0: #{spatial_path_forward.5}
  #allocation0 [shape = 'u32[]', space=smem, size = 0x4, offset = 0x4, fixed_abs, tag = 'smem constant byte address 0x4 - core index']
  #allocation1 [shape = 'u32[144,128]{1,0:T(1,128)}', space=vmem, size = 0x12000, scoped, tag = 'internal scratch']
  #allocation2 [shape = 'f32[16,256]{1,0:T(8,128)}', space=vmem, size = 0x4000, scoped, tag = 'scratch operand']
  #allocation3 [shape = 'f32[16,256]{1,0:T(8,128)}', space=vmem, size = 0x4000, scoped, tag = 'scratch operand']
  %s0 = inlined_call_operand.vmem [shape: bf16[2,4,2,4,256], index: 0, kind: input, shape index: {}, may-alias: {0,1}]
  %s1 = inlined_call_operand.vmem [shape: bf16[2,4,2,4,256], index: 1, kind: input, shape index: {}, may-alias: {0,1}]
  %s2 = inlined_call_operand.vmem [shape: bf16[3,256,256], index: 2, kind: input, shape index: {}]
  %s3 = inlined_call_operand.vmem [shape: bf16[3,256,256], index: 3, kind: input, shape index: {}]
  %s4 = inlined_call_operand.vmem [shape: f32[2,256], index: 4, kind: input, shape index: {}]
  %s5 = inlined_call_operand.vmem [shape: bf16[2,16,256], index: 5, kind: output, shape index: {}]
  %s6 = sld [smem:[#allocation0]]
  $region57: #{spatial_path_forward.5} parent=0
    _
  %s8 = ssub.s32 1, %s6
  %s9 = scalar_select 0, %s8, %s6
  loop: start=0, step=1, limit=4
  $region2: #{spatial_path_forward.5} parent=0 // loop_pre_header
    _
  $region3: #{spatial_path_forward.5} parent=0 // loop_header
    %s11 = sphi 0, %s15
    %p12 = scmp.ge.s32.totalorder %s11, 4
    %s18 = sphi 0, %s30
    %s19 = sphi 0, %s26
    %s20 = sphi 0, %s18
    %s21 = sphi 0, %s19
    %s22 = sphi 0, %s20
    %s23 = sphi 0, %s21
    %s35 = sphi 0, %s37
    %s38 = sphi 0, %s35
    %s39 = sphi 0, %s38
    %s55 = sphi 0, %s39
    %s71 = sphi 0, %s73
    %s74 = sphi 0, %s71
    %s75 = sphi 0, %s74
    %s91 = sphi 0, %s75
    %s95 = sphi 0, %s95
    %s97 = sphi 0, %s95
    %s98 = sphi 0, %s97
    %s112 = sphi 0, %s98
    %s116 = sphi 0, %s116
    %s118 = sphi 0, %s116
    %s119 = sphi 0, %s118
    %s133 = sphi 0, %s119
    %s137 = sphi 0, %s137
    %s139 = sphi 0, %s137
    %s140 = sphi 0, %s139
    %s154 = sphi 0, %s140
    %s162 = sphi 0, %s164
    %s165 = sphi 0, %s162
    %s166 = sphi 0, %s165
    %s182 = sphi 0, %s166
  $region4: #{spatial_path_forward.5} parent=0 // loop_header_branch
    %14 = sbr.rel (%p12) target = $region8
  $region5: #{spatial_path_forward.5} parent=0 // loop_body
    %s16 = ssub.s32 %s11, 1
    %s17 = ssub.s32 %s11, 2
    %s24 = sadd.s32 1, %s19
    %p25 = scmp.ge.s32.totalorder %s24, 1
    %s26 = scalar_select %p25, 0, %s24
    %s27 = sadd.s32 1, %s18
    %s28 = scalar_select %p25, %s27, %s18
    %p29 = scmp.ge.s32.totalorder %s28, 2
    %s30 = scalar_select %p29, 0, %s28
    %s31 = ssub.s32 %s18, %s30
    %s32 = ssub.s32 %s19, %s26
    %s33 = sor.u32 %s31, %s32
    %p34 = scmp.eq.s32.totalorder %s33, 0
    %s36 = sadd.s32 %s35, 1
    %s37 = scalar_select %p34, %s35, %s36
    %p40 = pneg %p34
    %p41 = scmp.eq.s32.totalorder %s11, 1
    %p42 = por %p40, %p41
    %p43 = scmp.ne.s32.totalorder %s35, %s38
    %p44 = scmp.eq.s32.totalorder %s11, 0
    %p45 = por %p43, %p44
    %p46 = scmp.ne.s32.totalorder %s35, %s38
    %p47 = scmp.eq.s32.totalorder %s16, 1
    %p48 = por %p46, %p47
    %p49 = scmp.ne.s32.totalorder %s38, %s39
    %p50 = scmp.eq.s32.totalorder %s16, 0
    %p51 = por %p49, %p50
    %p52 = scmp.ne.s32.totalorder %s38, %s39
    %p53 = scmp.eq.s32.totalorder %s17, 1
    %p54 = por %p52, %p53
    %p56 = scmp.ne.s32.totalorder %s39, %s55
    %p57 = scmp.eq.s32.totalorder %s17, 0
    %p58 = por %p56, %p57
    %s59 = smul.u32 %s19, 4
    %s60 = ssub.s32 %s59, 1
    %p61 = scmp.gt.s32.totalorder %s60, 0
    %s62 = scalar_select %p61, %s60, 0
    %s63 = smul.u32 %s26, 4
    %s64 = ssub.s32 %s63, 1
    %p65 = scmp.gt.s32.totalorder %s64, 0
    %s66 = scalar_select %p65, %s64, 0
    %s67 = ssub.s32 %s18, %s30
    %s68 = ssub.s32 %s62, %s66
    %s69 = sor.u32 %s67, %s68
    %p70 = scmp.eq.s32.totalorder %s69, 0
    %s72 = sadd.s32 %s71, 1
    %s73 = scalar_select %p70, %s71, %s72
    %p76 = pneg %p70
    %p77 = scmp.eq.s32.totalorder %s11, 1
    %p78 = por %p76, %p77
    %p79 = scmp.ne.s32.totalorder %s71, %s74
    %p80 = scmp.eq.s32.totalorder %s11, 0
    %p81 = por %p79, %p80
    %p82 = scmp.ne.s32.totalorder %s71, %s74
    %p83 = scmp.eq.s32.totalorder %s16, 1
    %p84 = por %p82, %p83
    %p85 = scmp.ne.s32.totalorder %s74, %s75
    %p86 = scmp.eq.s32.totalorder %s16, 0
    %p87 = por %p85, %p86
    %p88 = scmp.ne.s32.totalorder %s74, %s75
    %p89 = scmp.eq.s32.totalorder %s17, 1
    %p90 = por %p88, %p89
    %p92 = scmp.ne.s32.totalorder %s75, %s91
    %p93 = scmp.eq.s32.totalorder %s17, 0
    %p94 = por %p92, %p93
    %s96 = sadd.s32 %s95, 1
    %p99 = scmp.eq.s32.totalorder %s11, 1
    %p100 = scmp.ne.s32.totalorder %s95, %s97
    %p101 = scmp.eq.s32.totalorder %s11, 0
    %p102 = por %p100, %p101
    %p103 = scmp.ne.s32.totalorder %s95, %s97
    %p104 = scmp.eq.s32.totalorder %s16, 1
    %p105 = por %p103, %p104
    %p106 = scmp.ne.s32.totalorder %s97, %s98
    %p107 = scmp.eq.s32.totalorder %s16, 0
    %p108 = por %p106, %p107
    %p109 = scmp.ne.s32.totalorder %s97, %s98
    %p110 = scmp.eq.s32.totalorder %s17, 1
    %p111 = por %p109, %p110
    %p113 = scmp.ne.s32.totalorder %s98, %s112
    %p114 = scmp.eq.s32.totalorder %s17, 0
    %p115 = por %p113, %p114
    %s117 = sadd.s32 %s116, 1
    %p120 = scmp.eq.s32.totalorder %s11, 1
    %p121 = scmp.ne.s32.totalorder %s116, %s118
    %p122 = scmp.eq.s32.totalorder %s11, 0
    %p123 = por %p121, %p122
    %p124 = scmp.ne.s32.totalorder %s116, %s118
    %p125 = scmp.eq.s32.totalorder %s16, 1
    %p126 = por %p124, %p125
    %p127 = scmp.ne.s32.totalorder %s118, %s119
    %p128 = scmp.eq.s32.totalorder %s16, 0
    %p129 = por %p127, %p128
    %p130 = scmp.ne.s32.totalorder %s118, %s119
    %p131 = scmp.eq.s32.totalorder %s17, 1
    %p132 = por %p130, %p131
    %p134 = scmp.ne.s32.totalorder %s119, %s133
    %p135 = scmp.eq.s32.totalorder %s17, 0
    %p136 = por %p134, %p135
    %s138 = sadd.s32 %s137, 1
    %p141 = scmp.eq.s32.totalorder %s11, 1
    %p142 = scmp.ne.s32.totalorder %s137, %s139
    %p143 = scmp.eq.s32.totalorder %s11, 0
    %p144 = por %p142, %p143
    %p145 = scmp.ne.s32.totalorder %s137, %s139
    %p146 = scmp.eq.s32.totalorder %s16, 1
    %p147 = por %p145, %p146
    %p148 = scmp.ne.s32.totalorder %s139, %s140
    %p149 = scmp.eq.s32.totalorder %s16, 0
    %p150 = por %p148, %p149
    %p151 = scmp.ne.s32.totalorder %s139, %s140
    %p152 = scmp.eq.s32.totalorder %s17, 1
    %p153 = por %p151, %p152
    %p155 = scmp.ne.s32.totalorder %s140, %s154
    %p156 = scmp.eq.s32.totalorder %s17, 0
    %p157 = por %p155, %p156
    %s158 = ssub.s32 %s18, %s30
    %s159 = ssub.s32 %s19, %s26
    %s160 = sor.u32 %s158, %s159
    %p161 = scmp.eq.s32.totalorder %s160, 0
    %s163 = sadd.s32 %s162, 1
    %s164 = scalar_select %p161, %s162, %s163
    %p167 = pneg %p161
    %p168 = scmp.eq.s32.totalorder %s11, 1
    %p169 = por %p167, %p168
    %p170 = scmp.ne.s32.totalorder %s162, %s165
    %p171 = scmp.eq.s32.totalorder %s11, 0
    %p172 = por %p170, %p171
    %p173 = scmp.ne.s32.totalorder %s162, %s165
    %p174 = scmp.eq.s32.totalorder %s16, 1
    %p175 = por %p173, %p174
    %p176 = scmp.ne.s32.totalorder %s165, %s166
    %p177 = scmp.eq.s32.totalorder %s16, 0
    %p178 = por %p176, %p177
    %p179 = scmp.ne.s32.totalorder %s165, %s166
    %p180 = scmp.eq.s32.totalorder %s17, 1
    %p181 = por %p179, %p180
    %p183 = scmp.ne.s32.totalorder %s166, %s182
    %p184 = scmp.eq.s32.totalorder %s17, 0
    %p185 = por %p183, %p184
    %p186 = scmp.le.s32.totalorder 1, %s11
    %p187 = scmp.lt.s32.totalorder %s11, 3
    %p188 = pnand %p186, %p187
    %p189 = pneg %p188
    // Predicated region
    $region9: #{spatial_path_forward.5} parent=5 // pred_check
      _
    $region10: #{spatial_path_forward.5} parent=5 // pred_check_branch
      %191 = sbr.rel (%p188) target = $region12
    $region11: #{spatial_path_forward.5} parent=5 // pred_region
      %s192 = ssub.s32 %s11, 1
      // Predicated region
      $region13: #{spatial_path_forward.5} parent=11 // pred_check
        %p193 = pneg %p108
      $region14: #{spatial_path_forward.5} parent=11 // pred_check_branch
        %195 = sbr.rel (%p193) target = $region16
      $region15: #{spatial_path_forward.5} parent=11 // pred_region
        _
      $region16: #{spatial_path_forward.5} parent=11 // pred_fallthru
        _
      // Predicated region
      $region17: #{spatial_path_forward.5} parent=11 // pred_check
        %p196 = pneg %p129
      $region18: #{spatial_path_forward.5} parent=11 // pred_check_branch
        %198 = sbr.rel (%p196) target = $region20
      $region19: #{spatial_path_forward.5} parent=11 // pred_region
        _
      $region20: #{spatial_path_forward.5} parent=11 // pred_fallthru
        _
      // Predicated region
      $region21: #{spatial_path_forward.5} parent=11 // pred_check
        %p199 = pneg %p150
      $region22: #{spatial_path_forward.5} parent=11 // pred_check_branch
        %201 = sbr.rel (%p199) target = $region24
      $region23: #{spatial_path_forward.5} parent=11 // pred_region
        _
      $region24: #{spatial_path_forward.5} parent=11 // pred_fallthru
        _
    $region12: #{spatial_path_forward.5} parent=5 // pred_fallthru
      _
    %p202 = scmp.lt.s32.totalorder %s11, 2
    // Predicated region
    $region25: #{spatial_path_forward.5} parent=5 // pred_check
      %p203 = pneg %p202
    $region26: #{spatial_path_forward.5} parent=5 // pred_check_branch
      %205 = sbr.rel (%p203) target = $region28
    $region27: #{spatial_path_forward.5} parent=5 // pred_region
      // Predicated region
      $region29: #{spatial_path_forward.5} parent=27 // pred_check
        %p206 = pneg %p45
      $region30: #{spatial_path_forward.5} parent=27 // pred_check_branch
        %208 = sbr.rel (%p206) target = $region32
      $region31: #{spatial_path_forward.5} parent=27 // pred_region
        %s209 = smul.u32 4, %s19
        %p210 = scmp.lt.s32.totalorder %s18, 1
        %s211 = scalar_select %p210, %s18, 1
        %p212 = scmp.lt.s32.totalorder %s209, 3
        %s213 = scalar_select %p212, %s209, 3
        %s214 = smul.addr %s213, 4
        %s215 = smul.addr %s211, 16
        %s216 = sadd.s32 %s214, %s215
        %s217 = smul.addr %s216, 2
        %s218 = scalar_lea.vmem %s0, %s217
        %s219 = smul.u32 4, %s19
      $region32: #{spatial_path_forward.5} parent=27 // pred_fallthru
        _
      // Predicated region
      $region33: #{spatial_path_forward.5} parent=27 // pred_check
        %p220 = pneg %p81
      $region34: #{spatial_path_forward.5} parent=27 // pred_check_branch
        %222 = sbr.rel (%p220) target = $region36
      $region35: #{spatial_path_forward.5} parent=27 // pred_region
        %s223 = smul.u32 %s19, 4
        %s224 = ssub.s32 %s223, 1
        %p225 = scmp.gt.s32.totalorder %s224, 0
        %s226 = scalar_select %p225, %s224, 0
        %p227 = scmp.lt.s32.totalorder %s18, 1
        %s228 = scalar_select %p227, %s18, 1
        %p229 = scmp.lt.s32.totalorder %s226, 3
        %s230 = scalar_select %p229, %s226, 3
        %s231 = smul.addr %s230, 4
        %s232 = smul.addr %s228, 16
        %s233 = sadd.s32 %s231, %s232
        %s234 = smul.addr %s233, 2
        %s235 = scalar_lea.vmem %s1, %s234
        %s236 = smul.u32 %s19, 4
        %s237 = ssub.s32 %s236, 1
        %p238 = scmp.gt.s32.totalorder %s237, 0
        %s239 = scalar_select %p238, %s237, 0
      $region36: #{spatial_path_forward.5} parent=27 // pred_fallthru
        _
    $region28: #{spatial_path_forward.5} parent=5 // pred_fallthru
      _
    %p240 = scmp.le.s32.totalorder 1, %s11
    %p241 = scmp.lt.s32.totalorder %s11, 3
    %p242 = pnand %p240, %p241
    %p243 = pneg %p242
    // Predicated region
    $region37: #{spatial_path_forward.5} parent=5 // pred_check
      _
    $region38: #{spatial_path_forward.5} parent=5 // pred_check_branch
      %245 = sbr.rel (%p242) target = $region40
    $region39: #{spatial_path_forward.5} parent=5 // pred_region
      %s246 = ssub.s32 %s11, 1
      %s247 = smul.u32 4, %s21
      %p248 = scmp.lt.s32.totalorder %s20, 1
      %s249 = scalar_select %p248, %s20, 1
      %p250 = scmp.lt.s32.totalorder %s247, 3
      %s251 = scalar_select %p250, %s247, 3
      %s252 = smul.addr %s251, 4
      %s253 = smul.addr %s249, 16
      %s254 = sadd.s32 %s252, %s253
      %s255 = smul.addr %s254, 2
      %s256 = scalar_lea.vmem %s0, %s255
      %p257 = pneg %p51
      %p258 = pneg %p48
      %s259 = smul.u32 %s21, 4
      %s260 = ssub.s32 %s259, 1
      %p261 = scmp.gt.s32.totalorder %s260, 0
      %s262 = scalar_select %p261, %s260, 0
      %p263 = scmp.lt.s32.totalorder %s20, 1
      %s264 = scalar_select %p263, %s20, 1
      %p265 = scmp.lt.s32.totalorder %s262, 3
      %s266 = scalar_select %p265, %s262, 3
      %s267 = smul.addr %s266, 4
      %s268 = smul.addr %s264, 16
      %s269 = sadd.s32 %s267, %s268
      %s270 = smul.addr %s269, 2
      %s271 = scalar_lea.vmem %s1, %s270
      %p272 = pneg %p87
      %p273 = pneg %p84
      %p274 = pneg %p108
      %p275 = pneg %p105
      %p276 = pneg %p129
      %p277 = pneg %p126
      %p278 = pneg %p150
      %p279 = pneg %p147
      %p280 = pneg %p178
      %p281 = pneg %p175
      %s282 = smul.u32 2, %s21
      %p283 = scmp.lt.s32.totalorder %s20, 1
      %s284 = scalar_select %p283, %s20, 1
      %p285 = scmp.lt.s32.totalorder %s282, 1
      %s286 = scalar_select %p285, %s282, 1
      %s287 = smul.addr %s286, 2
      %s288 = smul.addr %s284, 4
      %s289 = sadd.s32 %s287, %s288
      %s290 = smul.addr %s289, 4
      %s291 = scalar_lea.vmem %s5, %s290
      %s292 = smul.u32 4, %s21
      %p293 = scmp.lt.s32.totalorder %s20, 1
      %s294 = scalar_select %p293, %s20, 1
      %p295 = scmp.lt.s32.totalorder %s292, 3
      %s296 = scalar_select %p295, %s292, 3
      %s297 = smul.addr %s296, 4
      %s298 = smul.addr %s294, 16
      %s299 = sadd.s32 %s297, %s298
      %s300 = smul.addr %s299, 2
      %s301 = scalar_lea.vmem %s0, %s300
      %s302 = smul.u32 4, %s21
      %s303 = smul.u32 %s21, 4
      %s304 = ssub.s32 %s303, 1
      %p305 = scmp.gt.s32.totalorder %s304, 0
      %s306 = scalar_select %p305, %s304, 0
      %p307 = scmp.lt.s32.totalorder %s20, 1
      %s308 = scalar_select %p307, %s20, 1
      %p309 = scmp.lt.s32.totalorder %s306, 3
      %s310 = scalar_select %p309, %s306, 3
      %s311 = smul.addr %s310, 4
      %s312 = smul.addr %s308, 16
      %s313 = sadd.s32 %s311, %s312
      %s314 = smul.addr %s313, 2
      %s315 = scalar_lea.vmem %s1, %s314
      %s316 = smul.u32 %s21, 4
      %s317 = ssub.s32 %s316, 1
      %p318 = scmp.gt.s32.totalorder %s317, 0
      %s319 = scalar_select %p318, %s317, 0
      %s320 = smul.u32 2, %s21
      %p321 = scmp.lt.s32.totalorder %s20, 1
      %s322 = scalar_select %p321, %s20, 1
      %p323 = scmp.lt.s32.totalorder %s320, 1
      %s324 = scalar_select %p323, %s320, 1
      %s325 = smul.addr %s324, 2
      %s326 = smul.addr %s322, 4
      %s327 = sadd.s32 %s325, %s326
      %s328 = smul.addr %s327, 4
      %s329 = scalar_lea.vmem %s5, %s328
      %s330 = smul.u32 2, %s21
      %v331 = vld [vmem:[%s301] sm:$0xf]
      %v332 = vld [vmem:[%s301 + $0x8] sm:$0xf]
      %v333 = vld [vmem:[%s301 + $0x10] sm:$0xf]
      %v334 = vld [vmem:[%s301 + $0x18] sm:$0xf]
      %s335 = scalar_lea.vmem %s301, 4
      %v336 = vld [vmem:[%s335] sm:$0xf]
      %v337 = vld [vmem:[%s335 + $0x8] sm:$0xf]
      %v338 = vld [vmem:[%s335 + $0x10] sm:$0xf]
      %v339 = vld [vmem:[%s335 + $0x18] sm:$0xf]
      %v340 = vld [vmem:[%s2] sm:$0xff]
      %v341 = vld [vmem:[%s2 + $0x8] sm:$0xff]
      %v342 = vld [vmem:[%s2 + $0x10] sm:$0xff]
      %v343 = vld [vmem:[%s2 + $0x18] sm:$0xff]
      %v344 = vld [vmem:[%s2 + $0x20] sm:$0xff]
      %v345 = vld [vmem:[%s2 + $0x28] sm:$0xff]
      %v346 = vld [vmem:[%s2 + $0x30] sm:$0xff]
      %v347 = vld [vmem:[%s2 + $0x38] sm:$0xff]
      %v348 = vld [vmem:[%s2 + $0x40] sm:$0xff]
      %v349 = vld [vmem:[%s2 + $0x48] sm:$0xff]
      %v350 = vld [vmem:[%s2 + $0x50] sm:$0xff]
      %v351 = vld [vmem:[%s2 + $0x58] sm:$0xff]
      %v352 = vld [vmem:[%s2 + $0x60] sm:$0xff]
      %v353 = vld [vmem:[%s2 + $0x68] sm:$0xff]
      %v354 = vld [vmem:[%s2 + $0x70] sm:$0xff]
      %v355 = vld [vmem:[%s2 + $0x78] sm:$0xff]
      %v356 = vld [vmem:[%s2 + $0x80] sm:$0xff]
      %v357 = vld [vmem:[%s2 + $0x88] sm:$0xff]
      %v358 = vld [vmem:[%s2 + $0x90] sm:$0xff]
      %v359 = vld [vmem:[%s2 + $0x98] sm:$0xff]
      %v360 = vld [vmem:[%s2 + $0xa0] sm:$0xff]
      %v361 = vld [vmem:[%s2 + $0xa8] sm:$0xff]
      %v362 = vld [vmem:[%s2 + $0xb0] sm:$0xff]
      %v363 = vld [vmem:[%s2 + $0xb8] sm:$0xff]
      %v364 = vld [vmem:[%s2 + $0xc0] sm:$0xff]
      %v365 = vld [vmem:[%s2 + $0xc8] sm:$0xff]
      %v366 = vld [vmem:[%s2 + $0xd0] sm:$0xff]
      %v367 = vld [vmem:[%s2 + $0xd8] sm:$0xff]
      %v368 = vld [vmem:[%s2 + $0xe0] sm:$0xff]
      %v369 = vld [vmem:[%s2 + $0xe8] sm:$0xff]
      %v370 = vld [vmem:[%s2 + $0xf0] sm:$0xff]
      %v371 = vld [vmem:[%s2 + $0xf8] sm:$0xff]
      %v376 = vcombine.low %v331, %v332
      %v377 = vcombine.low %v333, %v334
      %v379 = vunpack.c.l.s4 1983009808
      %v380 = vunpack.c.0.s8 %v379
      %v381 = vlaneseq
      %v382 = vshrl.u32 %v381, 7
      %v383 = vsub.s32 %v380, %v382
      %v384 = vrot.slane %v376, %v383
      %v386 = vunpack.c.l.s4 1983009808
      %v387 = vunpack.c.0.s8 %v386
      %v388 = vlaneseq
      %v389 = vshrl.u32 %v388, 7
      %v390 = vsub.s32 %v387, %v389
      %v391 = vrot.slane %v377, %v390
      %v392 = vcombine.low %v384, %v391
      %v393 = vcombine.high %v384, %v391
      %v428 = vunpack.c.l.b16 %v340
      %v429 = vunpack.c.h.b16 %v340
      %v430 = vunpack.c.l.b16 %v341
      %v431 = vunpack.c.h.b16 %v341
      %v432 = vunpack.c.l.b16 %v342
      %v433 = vunpack.c.h.b16 %v342
      %v434 = vunpack.c.l.b16 %v343
      %v435 = vunpack.c.h.b16 %v343
      %v436 = vunpack.c.l.b16 %v344
      %v437 = vunpack.c.h.b16 %v344
      %v438 = vunpack.c.l.b16 %v345
      %v439 = vunpack.c.h.b16 %v345
      %v440 = vunpack.c.l.b16 %v346
      %v441 = vunpack.c.h.b16 %v346
      %v442 = vunpack.c.l.b16 %v347
      %v443 = vunpack.c.h.b16 %v347
      %v444 = vunpack.c.l.b16 %v348
      %v445 = vunpack.c.h.b16 %v348
      %v446 = vunpack.c.l.b16 %v349
      %v447 = vunpack.c.h.b16 %v349
      %v448 = vunpack.c.l.b16 %v350
      %v449 = vunpack.c.h.b16 %v350
      %v450 = vunpack.c.l.b16 %v351
      %v451 = vunpack.c.h.b16 %v351
      %v452 = vunpack.c.l.b16 %v352
      %v453 = vunpack.c.h.b16 %v352
      %v454 = vunpack.c.l.b16 %v353
      %v455 = vunpack.c.h.b16 %v353
      %v456 = vunpack.c.l.b16 %v354
      %v457 = vunpack.c.h.b16 %v354
      %v458 = vunpack.c.l.b16 %v355
      %v459 = vunpack.c.h.b16 %v355
      %v460 = vunpack.c.l.b16 %v356
      %v461 = vunpack.c.h.b16 %v356
      %v462 = vunpack.c.l.b16 %v357
      %v463 = vunpack.c.h.b16 %v357
      %v464 = vunpack.c.l.b16 %v358
      %v465 = vunpack.c.h.b16 %v358
      %v466 = vunpack.c.l.b16 %v359
      %v467 = vunpack.c.h.b16 %v359
      %v468 = vunpack.c.l.b16 %v360
      %v469 = vunpack.c.h.b16 %v360
      %v470 = vunpack.c.l.b16 %v361
      %v471 = vunpack.c.h.b16 %v361
      %v472 = vunpack.c.l.b16 %v362
      %v473 = vunpack.c.h.b16 %v362
      %v474 = vunpack.c.l.b16 %v363
      %v475 = vunpack.c.h.b16 %v363
      %v476 = vunpack.c.l.b16 %v364
      %v477 = vunpack.c.h.b16 %v364
      %v478 = vunpack.c.l.b16 %v365
      %v479 = vunpack.c.h.b16 %v365
      %v480 = vunpack.c.l.b16 %v366
      %v481 = vunpack.c.h.b16 %v366
      %v482 = vunpack.c.l.b16 %v367
      %v483 = vunpack.c.h.b16 %v367
      %v484 = vunpack.c.l.b16 %v368
      %v485 = vunpack.c.h.b16 %v368
      %v486 = vunpack.c.l.b16 %v369
      %v487 = vunpack.c.h.b16 %v369
      %v488 = vunpack.c.l.b16 %v370
      %v489 = vunpack.c.h.b16 %v370
      %v490 = vunpack.c.l.b16 %v371
      %v491 = vunpack.c.h.b16 %v371
      %v492 = vpack.c.b16 %v430, %v428
      %v493 = vpack.c.b16 %v431, %v429
      %v494 = vpack.c.b16 %v434, %v432
      %v495 = vpack.c.b16 %v435, %v433
      %v496 = vpack.c.b16 %v438, %v436
      %v497 = vpack.c.b16 %v439, %v437
      %v498 = vpack.c.b16 %v442, %v440
      %v499 = vpack.c.b16 %v443, %v441
      %v500 = vpack.c.b16 %v446, %v444
      %v501 = vpack.c.b16 %v447, %v445
      %v502 = vpack.c.b16 %v450, %v448
      %v503 = vpack.c.b16 %v451, %v449
      %v504 = vpack.c.b16 %v454, %v452
      %v505 = vpack.c.b16 %v455, %v453
      %v506 = vpack.c.b16 %v458, %v456
      %v507 = vpack.c.b16 %v459, %v457
      %v508 = vpack.c.b16 %v462, %v460
      %v509 = vpack.c.b16 %v463, %v461
      %v510 = vpack.c.b16 %v466, %v464
      %v511 = vpack.c.b16 %v467, %v465
      %v512 = vpack.c.b16 %v470, %v468
      %v513 = vpack.c.b16 %v471, %v469
      %v514 = vpack.c.b16 %v474, %v472
      %v515 = vpack.c.b16 %v475, %v473
      %v516 = vpack.c.b16 %v478, %v476
      %v517 = vpack.c.b16 %v479, %v477
      %v518 = vpack.c.b16 %v482, %v480
      %v519 = vpack.c.b16 %v483, %v481
      %v520 = vpack.c.b16 %v486, %v484
      %v521 = vpack.c.b16 %v487, %v485
      %v522 = vpack.c.b16 %v490, %v488
      %v523 = vpack.c.b16 %v491, %v489
      %556 = vmatprep.subr.bf16.mxu0 %v493
      %557 = vmatpush1.bf16.msra.mxu0 %v492
      %558 = vmatprep.subr.bf16.mxu0 %v495
      %559 = vmatpush1.bf16.msra.mxu0 %v494
      %560 = vmatprep.subr.bf16.mxu0 %v497
      %561 = vmatpush1.bf16.msra.mxu0 %v496
      %562 = vmatprep.subr.bf16.mxu0 %v499
      %563 = vmatpush1.bf16.msra.mxu0 %v498
      %564 = vmatprep.subr.bf16.mxu0 %v501
      %565 = vmatpush1.bf16.msra.mxu0 %v500
      %566 = vmatprep.subr.bf16.mxu0 %v503
      %567 = vmatpush1.bf16.msra.mxu0 %v502
      %568 = vmatprep.subr.bf16.mxu0 %v505
      %569 = vmatpush1.bf16.msra.mxu0 %v504
      %570 = vmatprep.subr.bf16.mxu0 %v507
      %571 = vmatpush1.bf16.msra.mxu0 %v506
      %572 = vmatprep.subr.bf16.mxu0 %v509
      %573 = vmatpush1.bf16.msra.mxu0 %v508
      %574 = vmatprep.subr.bf16.mxu0 %v511
      %575 = vmatpush1.bf16.msra.mxu0 %v510
      %576 = vmatprep.subr.bf16.mxu0 %v513
      %577 = vmatpush1.bf16.msra.mxu0 %v512
      %578 = vmatprep.subr.bf16.mxu0 %v515
      %579 = vmatpush1.bf16.msra.mxu0 %v514
      %580 = vmatprep.subr.bf16.mxu0 %v517
      %581 = vmatpush1.bf16.msra.mxu0 %v516
      %582 = vmatprep.subr.bf16.mxu0 %v519
      %583 = vmatpush1.bf16.msra.mxu0 %v518
      %584 = vmatprep.subr.bf16.mxu0 %v521
      %585 = vmatpush1.bf16.msra.mxu0 %v520
      %586 = vmatprep.subr.bf16.mxu0 %v523
      %587 = vmatpush1.bf16.msra.mxu0 %v522
      %588 = vmatprep.mubr.bf16.mxu0 %v393
      %589 = vmatmul.mubr.bf16.gmra.mrb[0].mxu0 %v392
      %v590 = vpop.f32.mrb[0].mxu0
      %v591 = vadd.f32 0.0, %v590
      %v592 = vpop.f32.mrb[0].mxu0
      %v593 = vadd.f32 0.0, %v592
      %v594 = vpop.f32.mrb[0].mxu0
      %v595 = vadd.f32 0.0, %v594
      %v596 = vpop.f32.mrb[0].mxu0
      %v597 = vadd.f32 0.0, %v596
      %598 = vdwg.mxu0
      %599 = vst [vmem:[#allocation2] sm:$0xff] %v591
      %600 = vst [vmem:[#allocation2 + $0x8] sm:$0xff] %v593
      %601 = vst [vmem:[#allocation2 + $0x10] sm:$0xff] %v595
      %602 = vst [vmem:[#allocation2 + $0x18] sm:$0xff] %v597
      %v603 = vld [vmem:[%s3] sm:$0xff]
      %v604 = vld [vmem:[%s3 + $0x8] sm:$0xff]
      %v605 = vld [vmem:[%s3 + $0x10] sm:$0xff]
      %v606 = vld [vmem:[%s3 + $0x18] sm:$0xff]
      %v607 = vld [vmem:[%s3 + $0x20] sm:$0xff]
      %v608 = vld [vmem:[%s3 + $0x28] sm:$0xff]
      %v609 = vld [vmem:[%s3 + $0x30] sm:$0xff]
      %v610 = vld [vmem:[%s3 + $0x38] sm:$0xff]
      %v611 = vld [vmem:[%s3 + $0x40] sm:$0xff]
      %v612 = vld [vmem:[%s3 + $0x48] sm:$0xff]
      %v613 = vld [vmem:[%s3 + $0x50] sm:$0xff]
      %v614 = vld [vmem:[%s3 + $0x58] sm:$0xff]
      %v615 = vld [vmem:[%s3 + $0x60] sm:$0xff]
      %v616 = vld [vmem:[%s3 + $0x68] sm:$0xff]
      %v617 = vld [vmem:[%s3 + $0x70] sm:$0xff]
      %v618 = vld [vmem:[%s3 + $0x78] sm:$0xff]
      %v619 = vld [vmem:[%s3 + $0x80] sm:$0xff]
      %v620 = vld [vmem:[%s3 + $0x88] sm:$0xff]
      %v621 = vld [vmem:[%s3 + $0x90] sm:$0xff]
      %v622 = vld [vmem:[%s3 + $0x98] sm:$0xff]
      %v623 = vld [vmem:[%s3 + $0xa0] sm:$0xff]
      %v624 = vld [vmem:[%s3 + $0xa8] sm:$0xff]
      %v625 = vld [vmem:[%s3 + $0xb0] sm:$0xff]
      %v626 = vld [vmem:[%s3 + $0xb8] sm:$0xff]
      %v627 = vld [vmem:[%s3 + $0xc0] sm:$0xff]
      %v628 = vld [vmem:[%s3 + $0xc8] sm:$0xff]
      %v629 = vld [vmem:[%s3 + $0xd0] sm:$0xff]
      %v630 = vld [vmem:[%s3 + $0xd8] sm:$0xff]
      %v631 = vld [vmem:[%s3 + $0xe0] sm:$0xff]
      %v632 = vld [vmem:[%s3 + $0xe8] sm:$0xff]
      %v633 = vld [vmem:[%s3 + $0xf0] sm:$0xff]
      %v634 = vld [vmem:[%s3 + $0xf8] sm:$0xff]
      %v667 = vunpack.c.l.b16 %v603
      %v668 = vunpack.c.h.b16 %v603
      %v669 = vunpack.c.l.b16 %v604
      %v670 = vunpack.c.h.b16 %v604
      %v671 = vunpack.c.l.b16 %v605
      %v672 = vunpack.c.h.b16 %v605
      %v673 = vunpack.c.l.b16 %v606
      %v674 = vunpack.c.h.b16 %v606
      %v675 = vunpack.c.l.b16 %v607
      %v676 = vunpack.c.h.b16 %v607
      %v677 = vunpack.c.l.b16 %v608
      %v678 = vunpack.c.h.b16 %v608
      %v679 = vunpack.c.l.b16 %v609
      %v680 = vunpack.c.h.b16 %v609
      %v681 = vunpack.c.l.b16 %v610
      %v682 = vunpack.c.h.b16 %v610
      %v683 = vunpack.c.l.b16 %v611
      %v684 = vunpack.c.h.b16 %v611
      %v685 = vunpack.c.l.b16 %v612
      %v686 = vunpack.c.h.b16 %v612
      %v687 = vunpack.c.l.b16 %v613
      %v688 = vunpack.c.h.b16 %v613
      %v689 = vunpack.c.l.b16 %v614
      %v690 = vunpack.c.h.b16 %v614
      %v691 = vunpack.c.l.b16 %v615
      %v692 = vunpack.c.h.b16 %v615
      %v693 = vunpack.c.l.b16 %v616
      %v694 = vunpack.c.h.b16 %v616
      %v695 = vunpack.c.l.b16 %v617
      %v696 = vunpack.c.h.b16 %v617
      %v697 = vunpack.c.l.b16 %v618
      %v698 = vunpack.c.h.b16 %v618
      %v699 = vunpack.c.l.b16 %v619
      %v700 = vunpack.c.h.b16 %v619
      %v701 = vunpack.c.l.b16 %v620
      %v702 = vunpack.c.h.b16 %v620
      %v703 = vunpack.c.l.b16 %v621
      %v704 = vunpack.c.h.b16 %v621
      %v705 = vunpack.c.l.b16 %v622
      %v706 = vunpack.c.h.b16 %v622
      %v707 = vunpack.c.l.b16 %v623
      %v708 = vunpack.c.h.b16 %v623
      %v709 = vunpack.c.l.b16 %v624
      %v710 = vunpack.c.h.b16 %v624
      %v711 = vunpack.c.l.b16 %v625
      %v712 = vunpack.c.h.b16 %v625
      %v713 = vunpack.c.l.b16 %v626
      %v714 = vunpack.c.h.b16 %v626
      %v715 = vunpack.c.l.b16 %v627
      %v716 = vunpack.c.h.b16 %v627
      %v717 = vunpack.c.l.b16 %v628
      %v718 = vunpack.c.h.b16 %v628
      %v719 = vunpack.c.l.b16 %v629
      %v720 = vunpack.c.h.b16 %v629
      %v721 = vunpack.c.l.b16 %v630
      %v722 = vunpack.c.h.b16 %v630
      %v723 = vunpack.c.l.b16 %v631
      %v724 = vunpack.c.h.b16 %v631
      %v725 = vunpack.c.l.b16 %v632
      %v726 = vunpack.c.h.b16 %v632
      %v727 = vunpack.c.l.b16 %v633
      %v728 = vunpack.c.h.b16 %v633
      %v729 = vunpack.c.l.b16 %v634
      %v730 = vunpack.c.h.b16 %v634
      %v731 = vpack.c.b16 %v669, %v667
      %v732 = vpack.c.b16 %v670, %v668
      %v733 = vpack.c.b16 %v673, %v671
      %v734 = vpack.c.b16 %v674, %v672
      %v735 = vpack.c.b16 %v677, %v675
      %v736 = vpack.c.b16 %v678, %v676
      %v737 = vpack.c.b16 %v681, %v679
      %v738 = vpack.c.b16 %v682, %v680
      %v739 = vpack.c.b16 %v685, %v683
      %v740 = vpack.c.b16 %v686, %v684
      %v741 = vpack.c.b16 %v689, %v687
      %v742 = vpack.c.b16 %v690, %v688
      %v743 = vpack.c.b16 %v693, %v691
      %v744 = vpack.c.b16 %v694, %v692
      %v745 = vpack.c.b16 %v697, %v695
      %v746 = vpack.c.b16 %v698, %v696
      %v747 = vpack.c.b16 %v701, %v699
      %v748 = vpack.c.b16 %v702, %v700
      %v749 = vpack.c.b16 %v705, %v703
      %v750 = vpack.c.b16 %v706, %v704
      %v751 = vpack.c.b16 %v709, %v707
      %v752 = vpack.c.b16 %v710, %v708
      %v753 = vpack.c.b16 %v713, %v711
      %v754 = vpack.c.b16 %v714, %v712
      %v755 = vpack.c.b16 %v717, %v715
      %v756 = vpack.c.b16 %v718, %v716
      %v757 = vpack.c.b16 %v721, %v719
      %v758 = vpack.c.b16 %v722, %v720
      %v759 = vpack.c.b16 %v725, %v723
      %v760 = vpack.c.b16 %v726, %v724
      %v761 = vpack.c.b16 %v729, %v727
      %v762 = vpack.c.b16 %v730, %v728
      %795 = vmatprep.subr.bf16.mxu0 %v732
      %796 = vmatpush1.bf16.msra.mxu0 %v731
      %797 = vmatprep.subr.bf16.mxu0 %v734
      %798 = vmatpush1.bf16.msra.mxu0 %v733
      %799 = vmatprep.subr.bf16.mxu0 %v736
      %800 = vmatpush1.bf16.msra.mxu0 %v735
      %801 = vmatprep.subr.bf16.mxu0 %v738
      %802 = vmatpush1.bf16.msra.mxu0 %v737
      %803 = vmatprep.subr.bf16.mxu0 %v740
      %804 = vmatpush1.bf16.msra.mxu0 %v739
      %805 = vmatprep.subr.bf16.mxu0 %v742
      %806 = vmatpush1.bf16.msra.mxu0 %v741
      %807 = vmatprep.subr.bf16.mxu0 %v744
      %808 = vmatpush1.bf16.msra.mxu0 %v743
      %809 = vmatprep.subr.bf16.mxu0 %v746
      %810 = vmatpush1.bf16.msra.mxu0 %v745
      %811 = vmatprep.subr.bf16.mxu0 %v748
      %812 = vmatpush1.bf16.msra.mxu0 %v747
      %813 = vmatprep.subr.bf16.mxu0 %v750
      %814 = vmatpush1.bf16.msra.mxu0 %v749
      %815 = vmatprep.subr.bf16.mxu0 %v752
      %816 = vmatpush1.bf16.msra.mxu0 %v751
      %817 = vmatprep.subr.bf16.mxu0 %v754
      %818 = vmatpush1.bf16.msra.mxu0 %v753
      %819 = vmatprep.subr.bf16.mxu0 %v756
      %820 = vmatpush1.bf16.msra.mxu0 %v755
      %821 = vmatprep.subr.bf16.mxu0 %v758
      %822 = vmatpush1.bf16.msra.mxu0 %v757
      %823 = vmatprep.subr.bf16.mxu0 %v760
      %824 = vmatpush1.bf16.msra.mxu0 %v759
      %825 = vmatprep.subr.bf16.mxu0 %v762
      %826 = vmatpush1.bf16.msra.mxu0 %v761
      %827 = vmatprep.mubr.bf16.mxu0 %v393
      %828 = vmatmul.mubr.bf16.gmra.mrb[0].mxu0 %v392
      %v829 = vpop.f32.mrb[0].mxu0
      %v830 = vadd.f32 0.0, %v829
      %v831 = vpop.f32.mrb[0].mxu0
      %v832 = vadd.f32 0.0, %v831
      %v833 = vpop.f32.mrb[0].mxu0
      %v834 = vadd.f32 0.0, %v833
      %v835 = vpop.f32.mrb[0].mxu0
      %v836 = vadd.f32 0.0, %v835
      %837 = vdwg.mxu0
      %838 = vst [vmem:[#allocation3] sm:$0xff] %v830
      %839 = vst [vmem:[#allocation3 + $0x8] sm:$0xff] %v832
      %840 = vst [vmem:[#allocation3 + $0x10] sm:$0xff] %v834
      %841 = vst [vmem:[#allocation3 + $0x18] sm:$0xff] %v836
      %v842 = vld [vmem:[#allocation2] sm:$0xff]
      %v843 = vld [vmem:[#allocation2 + $0x8] sm:$0xff]
      %v844 = vld [vmem:[#allocation2 + $0x10] sm:$0xff]
      %v845 = vld [vmem:[#allocation2 + $0x18] sm:$0xff]
      %s846 = scalar_lea.vmem %s2, 256
      %v847 = vld [vmem:[%s846] sm:$0xff]
      %v848 = vld [vmem:[%s846 + $0x8] sm:$0xff]
      %v849 = vld [vmem:[%s846 + $0x10] sm:$0xff]
      %v850 = vld [vmem:[%s846 + $0x18] sm:$0xff]
      %v851 = vld [vmem:[%s846 + $0x20] sm:$0xff]
      %v852 = vld [vmem:[%s846 + $0x28] sm:$0xff]
      %v853 = vld [vmem:[%s846 + $0x30] sm:$0xff]
      %v854 = vld [vmem:[%s846 + $0x38] sm:$0xff]
      %v855 = vld [vmem:[%s846 + $0x40] sm:$0xff]
      %v856 = vld [vmem:[%s846 + $0x48] sm:$0xff]
      %v857 = vld [vmem:[%s846 + $0x50] sm:$0xff]
      %v858 = vld [vmem:[%s846 + $0x58] sm:$0xff]
      %v859 = vld [vmem:[%s846 + $0x60] sm:$0xff]
      %v860 = vld [vmem:[%s846 + $0x68] sm:$0xff]
      %v861 = vld [vmem:[%s846 + $0x70] sm:$0xff]
      %v862 = vld [vmem:[%s846 + $0x78] sm:$0xff]
      %v863 = vld [vmem:[%s846 + $0x80] sm:$0xff]
      %v864 = vld [vmem:[%s846 + $0x88] sm:$0xff]
      %v865 = vld [vmem:[%s846 + $0x90] sm:$0xff]
      %v866 = vld [vmem:[%s846 + $0x98] sm:$0xff]
      %v867 = vld [vmem:[%s846 + $0xa0] sm:$0xff]
      %v868 = vld [vmem:[%s846 + $0xa8] sm:$0xff]
      %v869 = vld [vmem:[%s846 + $0xb0] sm:$0xff]
      %v870 = vld [vmem:[%s846 + $0xb8] sm:$0xff]
      %v871 = vld [vmem:[%s846 + $0xc0] sm:$0xff]
      %v872 = vld [vmem:[%s846 + $0xc8] sm:$0xff]
      %v873 = vld [vmem:[%s846 + $0xd0] sm:$0xff]
      %v874 = vld [vmem:[%s846 + $0xd8] sm:$0xff]
      %v875 = vld [vmem:[%s846 + $0xe0] sm:$0xff]
      %v876 = vld [vmem:[%s846 + $0xe8] sm:$0xff]
      %v877 = vld [vmem:[%s846 + $0xf0] sm:$0xff]
      %v878 = vld [vmem:[%s846 + $0xf8] sm:$0xff]
      %v883 = vcombine.low %v336, %v337
      %v884 = vcombine.low %v338, %v339
      %v886 = vunpack.c.l.s4 1983009808
      %v887 = vunpack.c.0.s8 %v886
      %v888 = vlaneseq
      %v889 = vshrl.u32 %v888, 7
      %v890 = vsub.s32 %v887, %v889
      %v891 = vrot.slane %v883, %v890
      %v893 = vunpack.c.l.s4 1983009808
      %v894 = vunpack.c.0.s8 %v893
      %v895 = vlaneseq
      %v896 = vshrl.u32 %v895, 7
      %v897 = vsub.s32 %v894, %v896
      %v898 = vrot.slane %v884, %v897
      %v899 = vcombine.low %v891, %v898
      %v900 = vcombine.high %v891, %v898
      %v935 = vunpack.c.l.b16 %v847
      %v936 = vunpack.c.h.b16 %v847
      %v937 = vunpack.c.l.b16 %v848
      %v938 = vunpack.c.h.b16 %v848
      %v939 = vunpack.c.l.b16 %v849
      %v940 = vunpack.c.h.b16 %v849
      %v941 = vunpack.c.l.b16 %v850
      %v942 = vunpack.c.h.b16 %v850
      %v943 = vunpack.c.l.b16 %v851
      %v944 = vunpack.c.h.b16 %v851
      %v945 = vunpack.c.l.b16 %v852
      %v946 = vunpack.c.h.b16 %v852
      %v947 = vunpack.c.l.b16 %v853
      %v948 = vunpack.c.h.b16 %v853
      %v949 = vunpack.c.l.b16 %v854
      %v950 = vunpack.c.h.b16 %v854
      %v951 = vunpack.c.l.b16 %v855
      %v952 = vunpack.c.h.b16 %v855
      %v953 = vunpack.c.l.b16 %v856
      %v954 = vunpack.c.h.b16 %v856
      %v955 = vunpack.c.l.b16 %v857
      %v956 = vunpack.c.h.b16 %v857
      %v957 = vunpack.c.l.b16 %v858
      %v958 = vunpack.c.h.b16 %v858
      %v959 = vunpack.c.l.b16 %v859
      %v960 = vunpack.c.h.b16 %v859
      %v961 = vunpack.c.l.b16 %v860
      %v962 = vunpack.c.h.b16 %v860
      %v963 = vunpack.c.l.b16 %v861
      %v964 = vunpack.c.h.b16 %v861
      %v965 = vunpack.c.l.b16 %v862
      %v966 = vunpack.c.h.b16 %v862
      %v967 = vunpack.c.l.b16 %v863
      %v968 = vunpack.c.h.b16 %v863
      %v969 = vunpack.c.l.b16 %v864
      %v970 = vunpack.c.h.b16 %v864
      %v971 = vunpack.c.l.b16 %v865
      %v972 = vunpack.c.h.b16 %v865
      %v973 = vunpack.c.l.b16 %v866
      %v974 = vunpack.c.h.b16 %v866
      %v975 = vunpack.c.l.b16 %v867
      %v976 = vunpack.c.h.b16 %v867
      %v977 = vunpack.c.l.b16 %v868
      %v978 = vunpack.c.h.b16 %v868
      %v979 = vunpack.c.l.b16 %v869
      %v980 = vunpack.c.h.b16 %v869
      %v981 = vunpack.c.l.b16 %v870
      %v982 = vunpack.c.h.b16 %v870
      %v983 = vunpack.c.l.b16 %v871
      %v984 = vunpack.c.h.b16 %v871
      %v985 = vunpack.c.l.b16 %v872
      %v986 = vunpack.c.h.b16 %v872
      %v987 = vunpack.c.l.b16 %v873
      %v988 = vunpack.c.h.b16 %v873
      %v989 = vunpack.c.l.b16 %v874
      %v990 = vunpack.c.h.b16 %v874
      %v991 = vunpack.c.l.b16 %v875
      %v992 = vunpack.c.h.b16 %v875
      %v993 = vunpack.c.l.b16 %v876
      %v994 = vunpack.c.h.b16 %v876
      %v995 = vunpack.c.l.b16 %v877
      %v996 = vunpack.c.h.b16 %v877
      %v997 = vunpack.c.l.b16 %v878
      %v998 = vunpack.c.h.b16 %v878
      %v999 = vpack.c.b16 %v937, %v935
      %v1000 = vpack.c.b16 %v938, %v936
      %v1001 = vpack.c.b16 %v941, %v939
      %v1002 = vpack.c.b16 %v942, %v940
      %v1003 = vpack.c.b16 %v945, %v943
      %v1004 = vpack.c.b16 %v946, %v944
      %v1005 = vpack.c.b16 %v949, %v947
      %v1006 = vpack.c.b16 %v950, %v948
      %v1007 = vpack.c.b16 %v953, %v951
      %v1008 = vpack.c.b16 %v954, %v952
      %v1009 = vpack.c.b16 %v957, %v955
      %v1010 = vpack.c.b16 %v958, %v956
      %v1011 = vpack.c.b16 %v961, %v959
      %v1012 = vpack.c.b16 %v962, %v960
      %v1013 = vpack.c.b16 %v965, %v963
      %v1014 = vpack.c.b16 %v966, %v964
      %v1015 = vpack.c.b16 %v969, %v967
      %v1016 = vpack.c.b16 %v970, %v968
      %v1017 = vpack.c.b16 %v973, %v971
      %v1018 = vpack.c.b16 %v974, %v972
      %v1019 = vpack.c.b16 %v977, %v975
      %v1020 = vpack.c.b16 %v978, %v976
      %v1021 = vpack.c.b16 %v981, %v979
      %v1022 = vpack.c.b16 %v982, %v980
      %v1023 = vpack.c.b16 %v985, %v983
      %v1024 = vpack.c.b16 %v986, %v984
      %v1025 = vpack.c.b16 %v989, %v987
      %v1026 = vpack.c.b16 %v990, %v988
      %v1027 = vpack.c.b16 %v993, %v991
      %v1028 = vpack.c.b16 %v994, %v992
      %v1029 = vpack.c.b16 %v997, %v995
      %v1030 = vpack.c.b16 %v998, %v996
      %1063 = vmatprep.subr.bf16.mxu0 %v1000
      %1064 = vmatpush1.bf16.msra.mxu0 %v999
      %1065 = vmatprep.subr.bf16.mxu0 %v1002
      %1066 = vmatpush1.bf16.msra.mxu0 %v1001
      %1067 = vmatprep.subr.bf16.mxu0 %v1004
      %1068 = vmatpush1.bf16.msra.mxu0 %v1003
      %1069 = vmatprep.subr.bf16.mxu0 %v1006
      %1070 = vmatpush1.bf16.msra.mxu0 %v1005
      %1071 = vmatprep.subr.bf16.mxu0 %v1008
      %1072 = vmatpush1.bf16.msra.mxu0 %v1007
      %1073 = vmatprep.subr.bf16.mxu0 %v1010
      %1074 = vmatpush1.bf16.msra.mxu0 %v1009
      %1075 = vmatprep.subr.bf16.mxu0 %v1012
      %1076 = vmatpush1.bf16.msra.mxu0 %v1011
      %1077 = vmatprep.subr.bf16.mxu0 %v1014
      %1078 = vmatpush1.bf16.msra.mxu0 %v1013
      %1079 = vmatprep.subr.bf16.mxu0 %v1016
      %1080 = vmatpush1.bf16.msra.mxu0 %v1015
      %1081 = vmatprep.subr.bf16.mxu0 %v1018
      %1082 = vmatpush1.bf16.msra.mxu0 %v1017
      %1083 = vmatprep.subr.bf16.mxu0 %v1020
      %1084 = vmatpush1.bf16.msra.mxu0 %v1019
      %1085 = vmatprep.subr.bf16.mxu0 %v1022
      %1086 = vmatpush1.bf16.msra.mxu0 %v1021
      %1087 = vmatprep.subr.bf16.mxu0 %v1024
      %1088 = vmatpush1.bf16.msra.mxu0 %v1023
      %1089 = vmatprep.subr.bf16.mxu0 %v1026
      %1090 = vmatpush1.bf16.msra.mxu0 %v1025
      %1091 = vmatprep.subr.bf16.mxu0 %v1028
      %1092 = vmatpush1.bf16.msra.mxu0 %v1027
      %1093 = vmatprep.subr.bf16.mxu0 %v1030
      %1094 = vmatpush1.bf16.msra.mxu0 %v1029
      %1095 = vmatprep.mubr.bf16.mxu0 %v900
      %1096 = vmatmul.mubr.bf16.gmra.mrb[0].mxu0 %v899
      %v1097 = vpop.f32.mrb[0].mxu0
      %v1098 = vadd.f32 0.0, %v1097
      %v1099 = vpop.f32.mrb[0].mxu0
      %v1100 = vadd.f32 0.0, %v1099
      %v1101 = vpop.f32.mrb[0].mxu0
      %v1102 = vadd.f32 0.0, %v1101
      %v1103 = vpop.f32.mrb[0].mxu0
      %v1104 = vadd.f32 0.0, %v1103
      %1105 = vdwg.mxu0
      %v1106 = vadd.f32 %v842, %v1098
      %v1107 = vadd.f32 %v843, %v1100
      %v1108 = vadd.f32 %v844, %v1102
      %v1109 = vadd.f32 %v845, %v1104
      %1110 = vst [vmem:[#allocation2] sm:$0xff] %v1106
      %1111 = vst [vmem:[#allocation2 + $0x8] sm:$0xff] %v1107
      %1112 = vst [vmem:[#allocation2 + $0x10] sm:$0xff] %v1108
      %1113 = vst [vmem:[#allocation2 + $0x18] sm:$0xff] %v1109
      %v1114 = vld [vmem:[#allocation3] sm:$0xff]
      %v1115 = vld [vmem:[#allocation3 + $0x8] sm:$0xff]
      %v1116 = vld [vmem:[#allocation3 + $0x10] sm:$0xff]
      %v1117 = vld [vmem:[#allocation3 + $0x18] sm:$0xff]
      %s1118 = scalar_lea.vmem %s3, 256
      %v1119 = vld [vmem:[%s1118] sm:$0xff]
      %v1120 = vld [vmem:[%s1118 + $0x8] sm:$0xff]
      %v1121 = vld [vmem:[%s1118 + $0x10] sm:$0xff]
      %v1122 = vld [vmem:[%s1118 + $0x18] sm:$0xff]
      %v1123 = vld [vmem:[%s1118 + $0x20] sm:$0xff]
      %v1124 = vld [vmem:[%s1118 + $0x28] sm:$0xff]
      %v1125 = vld [vmem:[%s1118 + $0x30] sm:$0xff]
      %v1126 = vld [vmem:[%s1118 + $0x38] sm:$0xff]
      %v1127 = vld [vmem:[%s1118 + $0x40] sm:$0xff]
      %v1128 = vld [vmem:[%s1118 + $0x48] sm:$0xff]
      %v1129 = vld [vmem:[%s1118 + $0x50] sm:$0xff]
      %v1130 = vld [vmem:[%s1118 + $0x58] sm:$0xff]
      %v1131 = vld [vmem:[%s1118 + $0x60] sm:$0xff]
      %v1132 = vld [vmem:[%s1118 + $0x68] sm:$0xff]
      %v1133 = vld [vmem:[%s1118 + $0x70] sm:$0xff]
      %v1134 = vld [vmem:[%s1118 + $0x78] sm:$0xff]
      %v1135 = vld [vmem:[%s1118 + $0x80] sm:$0xff]
      %v1136 = vld [vmem:[%s1118 + $0x88] sm:$0xff]
      %v1137 = vld [vmem:[%s1118 + $0x90] sm:$0xff]
      %v1138 = vld [vmem:[%s1118 + $0x98] sm:$0xff]
      %v1139 = vld [vmem:[%s1118 + $0xa0] sm:$0xff]
      %v1140 = vld [vmem:[%s1118 + $0xa8] sm:$0xff]
      %v1141 = vld [vmem:[%s1118 + $0xb0] sm:$0xff]
      %v1142 = vld [vmem:[%s1118 + $0xb8] sm:$0xff]
      %v1143 = vld [vmem:[%s1118 + $0xc0] sm:$0xff]
      %v1144 = vld [vmem:[%s1118 + $0xc8] sm:$0xff]
      %v1145 = vld [vmem:[%s1118 + $0xd0] sm:$0xff]
      %v1146 = vld [vmem:[%s1118 + $0xd8] sm:$0xff]
      %v1147 = vld [vmem:[%s1118 + $0xe0] sm:$0xff]
      %v1148 = vld [vmem:[%s1118 + $0xe8] sm:$0xff]
      %v1149 = vld [vmem:[%s1118 + $0xf0] sm:$0xff]
      %v1150 = vld [vmem:[%s1118 + $0xf8] sm:$0xff]
      %v1183 = vunpack.c.l.b16 %v1119
      %v1184 = vunpack.c.h.b16 %v1119
      %v1185 = vunpack.c.l.b16 %v1120
      %v1186 = vunpack.c.h.b16 %v1120
      %v1187 = vunpack.c.l.b16 %v1121
      %v1188 = vunpack.c.h.b16 %v1121
      %v1189 = vunpack.c.l.b16 %v1122
      %v1190 = vunpack.c.h.b16 %v1122
      %v1191 = vunpack.c.l.b16 %v1123
      %v1192 = vunpack.c.h.b16 %v1123
      %v1193 = vunpack.c.l.b16 %v1124
      %v1194 = vunpack.c.h.b16 %v1124
      %v1195 = vunpack.c.l.b16 %v1125
      %v1196 = vunpack.c.h.b16 %v1125
      %v1197 = vunpack.c.l.b16 %v1126
      %v1198 = vunpack.c.h.b16 %v1126
      %v1199 = vunpack.c.l.b16 %v1127
      %v1200 = vunpack.c.h.b16 %v1127
      %v1201 = vunpack.c.l.b16 %v1128
      %v1202 = vunpack.c.h.b16 %v1128
      %v1203 = vunpack.c.l.b16 %v1129
      %v1204 = vunpack.c.h.b16 %v1129
      %v1205 = vunpack.c.l.b16 %v1130
      %v1206 = vunpack.c.h.b16 %v1130
      %v1207 = vunpack.c.l.b16 %v1131
      %v1208 = vunpack.c.h.b16 %v1131
      %v1209 = vunpack.c.l.b16 %v1132
      %v1210 = vunpack.c.h.b16 %v1132
      %v1211 = vunpack.c.l.b16 %v1133
      %v1212 = vunpack.c.h.b16 %v1133
      %v1213 = vunpack.c.l.b16 %v1134
      %v1214 = vunpack.c.h.b16 %v1134
      %v1215 = vunpack.c.l.b16 %v1135
      %v1216 = vunpack.c.h.b16 %v1135
      %v1217 = vunpack.c.l.b16 %v1136
      %v1218 = vunpack.c.h.b16 %v1136
      %v1219 = vunpack.c.l.b16 %v1137
      %v1220 = vunpack.c.h.b16 %v1137
      %v1221 = vunpack.c.l.b16 %v1138
      %v1222 = vunpack.c.h.b16 %v1138
      %v1223 = vunpack.c.l.b16 %v1139
      %v1224 = vunpack.c.h.b16 %v1139
      %v1225 = vunpack.c.l.b16 %v1140
      %v1226 = vunpack.c.h.b16 %v1140
      %v1227 = vunpack.c.l.b16 %v1141
      %v1228 = vunpack.c.h.b16 %v1141
      %v1229 = vunpack.c.l.b16 %v1142
      %v1230 = vunpack.c.h.b16 %v1142
      %v1231 = vunpack.c.l.b16 %v1143
      %v1232 = vunpack.c.h.b16 %v1143
      %v1233 = vunpack.c.l.b16 %v1144
      %v1234 = vunpack.c.h.b16 %v1144
      %v1235 = vunpack.c.l.b16 %v1145
      %v1236 = vunpack.c.h.b16 %v1145
      %v1237 = vunpack.c.l.b16 %v1146
      %v1238 = vunpack.c.h.b16 %v1146
      %v1239 = vunpack.c.l.b16 %v1147
      %v1240 = vunpack.c.h.b16 %v1147
      %v1241 = vunpack.c.l.b16 %v1148
      %v1242 = vunpack.c.h.b16 %v1148
      %v1243 = vunpack.c.l.b16 %v1149
      %v1244 = vunpack.c.h.b16 %v1149
      %v1245 = vunpack.c.l.b16 %v1150
      %v1246 = vunpack.c.h.b16 %v1150
      %v1247 = vpack.c.b16 %v1185, %v1183
      %v1248 = vpack.c.b16 %v1186, %v1184
      %v1249 = vpack.c.b16 %v1189, %v1187
      %v1250 = vpack.c.b16 %v1190, %v1188
      %v1251 = vpack.c.b16 %v1193, %v1191
      %v1252 = vpack.c.b16 %v1194, %v1192
      %v1253 = vpack.c.b16 %v1197, %v1195
      %v1254 = vpack.c.b16 %v1198, %v1196
      %v1255 = vpack.c.b16 %v1201, %v1199
      %v1256 = vpack.c.b16 %v1202, %v1200
      %v1257 = vpack.c.b16 %v1205, %v1203
      %v1258 = vpack.c.b16 %v1206, %v1204
      %v1259 = vpack.c.b16 %v1209, %v1207
      %v1260 = vpack.c.b16 %v1210, %v1208
      %v1261 = vpack.c.b16 %v1213, %v1211
      %v1262 = vpack.c.b16 %v1214, %v1212
      %v1263 = vpack.c.b16 %v1217, %v1215
      %v1264 = vpack.c.b16 %v1218, %v1216
      %v1265 = vpack.c.b16 %v1221, %v1219
      %v1266 = vpack.c.b16 %v1222, %v1220
      %v1267 = vpack.c.b16 %v1225, %v1223
      %v1268 = vpack.c.b16 %v1226, %v1224
      %v1269 = vpack.c.b16 %v1229, %v1227
      %v1270 = vpack.c.b16 %v1230, %v1228
      %v1271 = vpack.c.b16 %v1233, %v1231
      %v1272 = vpack.c.b16 %v1234, %v1232
      %v1273 = vpack.c.b16 %v1237, %v1235
      %v1274 = vpack.c.b16 %v1238, %v1236
      %v1275 = vpack.c.b16 %v1241, %v1239
      %v1276 = vpack.c.b16 %v1242, %v1240
      %v1277 = vpack.c.b16 %v1245, %v1243
      %v1278 = vpack.c.b16 %v1246, %v1244
      %1311 = vmatprep.subr.bf16.mxu0 %v1248
      %1312 = vmatpush1.bf16.msra.mxu0 %v1247
      %1313 = vmatprep.subr.bf16.mxu0 %v1250
      %1314 = vmatpush1.bf16.msra.mxu0 %v1249
      %1315 = vmatprep.subr.bf16.mxu0 %v1252
      %1316 = vmatpush1.bf16.msra.mxu0 %v1251
      %1317 = vmatprep.subr.bf16.mxu0 %v1254
      %1318 = vmatpush1.bf16.msra.mxu0 %v1253
      %1319 = vmatprep.subr.bf16.mxu0 %v1256
      %1320 = vmatpush1.bf16.msra.mxu0 %v1255
      %1321 = vmatprep.subr.bf16.mxu0 %v1258
      %1322 = vmatpush1.bf16.msra.mxu0 %v1257
      %1323 = vmatprep.subr.bf16.mxu0 %v1260
      %1324 = vmatpush1.bf16.msra.mxu0 %v1259
      %1325 = vmatprep.subr.bf16.mxu0 %v1262
      %1326 = vmatpush1.bf16.msra.mxu0 %v1261
      %1327 = vmatprep.subr.bf16.mxu0 %v1264
      %1328 = vmatpush1.bf16.msra.mxu0 %v1263
      %1329 = vmatprep.subr.bf16.mxu0 %v1266
      %1330 = vmatpush1.bf16.msra.mxu0 %v1265
      %1331 = vmatprep.subr.bf16.mxu0 %v1268
      %1332 = vmatpush1.bf16.msra.mxu0 %v1267
      %1333 = vmatprep.subr.bf16.mxu0 %v1270
      %1334 = vmatpush1.bf16.msra.mxu0 %v1269
      %1335 = vmatprep.subr.bf16.mxu0 %v1272
      %1336 = vmatpush1.bf16.msra.mxu0 %v1271
      %1337 = vmatprep.subr.bf16.mxu0 %v1274
      %1338 = vmatpush1.bf16.msra.mxu0 %v1273
      %1339 = vmatprep.subr.bf16.mxu0 %v1276
      %1340 = vmatpush1.bf16.msra.mxu0 %v1275
      %1341 = vmatprep.subr.bf16.mxu0 %v1278
      %1342 = vmatpush1.bf16.msra.mxu0 %v1277
      %1343 = vmatprep.mubr.bf16.mxu0 %v900
      %1344 = vmatmul.mubr.bf16.gmra.mrb[0].mxu0 %v899
      %v1345 = vpop.f32.mrb[0].mxu0
      %v1346 = vadd.f32 0.0, %v1345
      %v1347 = vpop.f32.mrb[0].mxu0
      %v1348 = vadd.f32 0.0, %v1347
      %v1349 = vpop.f32.mrb[0].mxu0
      %v1350 = vadd.f32 0.0, %v1349
      %v1351 = vpop.f32.mrb[0].mxu0
      %v1352 = vadd.f32 0.0, %v1351
      %1353 = vdwg.mxu0
      %v1354 = vadd.f32 %v1114, %v1346
      %v1355 = vadd.f32 %v1115, %v1348
      %v1356 = vadd.f32 %v1116, %v1350
      %v1357 = vadd.f32 %v1117, %v1352
      %1358 = vst [vmem:[#allocation3] sm:$0xff] %v1354
      %1359 = vst [vmem:[#allocation3 + $0x8] sm:$0xff] %v1355
      %1360 = vst [vmem:[#allocation3 + $0x10] sm:$0xff] %v1356
      %1361 = vst [vmem:[#allocation3 + $0x18] sm:$0xff] %v1357
      %v1362 = vld [vmem:[%s335] sm:$0xf]
      %v1363 = vld [vmem:[%s335 + $0x8] sm:$0xf]
      %v1364 = vld [vmem:[%s335 + $0x10] sm:$0xf]
      %v1365 = vld [vmem:[#allocation2] sm:$0xf0]
      %v1366 = vld [vmem:[#allocation2 + $0x8] sm:$0xf0]
      %v1367 = vld [vmem:[#allocation2 + $0x10] sm:$0xff]
      %v1368 = vld [vmem:[#allocation2 + $0x18] sm:$0xff]
      %s1369 = scalar_lea.vmem %s2, 512
      %v1370 = vld [vmem:[%s1369] sm:$0xff]
      %v1371 = vld [vmem:[%s1369 + $0x8] sm:$0xff]
      %v1372 = vld [vmem:[%s1369 + $0x10] sm:$0xff]
      %v1373 = vld [vmem:[%s1369 + $0x18] sm:$0xff]
      %v1374 = vld [vmem:[%s1369 + $0x20] sm:$0xff]
      %v1375 = vld [vmem:[%s1369 + $0x28] sm:$0xff]
      %v1376 = vld [vmem:[%s1369 + $0x30] sm:$0xff]
      %v1377 = vld [vmem:[%s1369 + $0x38] sm:$0xff]
      %v1378 = vld [vmem:[%s1369 + $0x40] sm:$0xff]
      %v1379 = vld [vmem:[%s1369 + $0x48] sm:$0xff]
      %v1380 = vld [vmem:[%s1369 + $0x50] sm:$0xff]
      %v1381 = vld [vmem:[%s1369 + $0x58] sm:$0xff]
      %v1382 = vld [vmem:[%s1369 + $0x60] sm:$0xff]
      %v1383 = vld [vmem:[%s1369 + $0x68] sm:$0xff]
      %v1384 = vld [vmem:[%s1369 + $0x70] sm:$0xff]
      %v1385 = vld [vmem:[%s1369 + $0x78] sm:$0xff]
      %v1386 = vld [vmem:[%s1369 + $0x80] sm:$0xff]
      %v1387 = vld [vmem:[%s1369 + $0x88] sm:$0xff]
      %v1388 = vld [vmem:[%s1369 + $0x90] sm:$0xff]
      %v1389 = vld [vmem:[%s1369 + $0x98] sm:$0xff]
      %v1390 = vld [vmem:[%s1369 + $0xa0] sm:$0xff]
      %v1391 = vld [vmem:[%s1369 + $0xa8] sm:$0xff]
      %v1392 = vld [vmem:[%s1369 + $0xb0] sm:$0xff]
      %v1393 = vld [vmem:[%s1369 + $0xb8] sm:$0xff]
      %v1394 = vld [vmem:[%s1369 + $0xc0] sm:$0xff]
      %v1395 = vld [vmem:[%s1369 + $0xc8] sm:$0xff]
      %v1396 = vld [vmem:[%s1369 + $0xd0] sm:$0xff]
      %v1397 = vld [vmem:[%s1369 + $0xd8] sm:$0xff]
      %v1398 = vld [vmem:[%s1369 + $0xe0] sm:$0xff]
      %v1399 = vld [vmem:[%s1369 + $0xe8] sm:$0xff]
      %v1400 = vld [vmem:[%s1369 + $0xf0] sm:$0xff]
      %v1401 = vld [vmem:[%s1369 + $0xf8] sm:$0xff]
      %v1405 = vcombine.low %v1362, %v1363
      %v1407 = vunpack.c.l.s4 1983009808
      %v1408 = vunpack.c.0.s8 %v1407
      %v1409 = vlaneseq
      %v1410 = vshrl.u32 %v1409, 7
      %v1411 = vsub.s32 %v1408, %v1410
      %v1412 = vrot.slane %v1405, %v1411
      %v1414 = vunpack.c.l.s4 1983009808
      %v1415 = vunpack.c.0.s8 %v1414
      %v1416 = vlaneseq
      %v1417 = vshrl.u32 %v1416, 7
      %v1418 = vsub.s32 %v1415, %v1417
      %v1419 = vrot.slane %v1364, %v1418
      %v1420 = vcombine.low %v1412, %v1419
      %v1421 = vcombine.high %v1412, %v1419
      %v1456 = vunpack.c.l.b16 %v1370
      %v1457 = vunpack.c.h.b16 %v1370
      %v1458 = vunpack.c.l.b16 %v1371
      %v1459 = vunpack.c.h.b16 %v1371
      %v1460 = vunpack.c.l.b16 %v1372
      %v1461 = vunpack.c.h.b16 %v1372
      %v1462 = vunpack.c.l.b16 %v1373
      %v1463 = vunpack.c.h.b16 %v1373
      %v1464 = vunpack.c.l.b16 %v1374
      %v1465 = vunpack.c.h.b16 %v1374
      %v1466 = vunpack.c.l.b16 %v1375
      %v1467 = vunpack.c.h.b16 %v1375
      %v1468 = vunpack.c.l.b16 %v1376
      %v1469 = vunpack.c.h.b16 %v1376
      %v1470 = vunpack.c.l.b16 %v1377
      %v1471 = vunpack.c.h.b16 %v1377
      %v1472 = vunpack.c.l.b16 %v1378
      %v1473 = vunpack.c.h.b16 %v1378
      %v1474 = vunpack.c.l.b16 %v1379
      %v1475 = vunpack.c.h.b16 %v1379
      %v1476 = vunpack.c.l.b16 %v1380
      %v1477 = vunpack.c.h.b16 %v1380
      %v1478 = vunpack.c.l.b16 %v1381
      %v1479 = vunpack.c.h.b16 %v1381
      %v1480 = vunpack.c.l.b16 %v1382
      %v1481 = vunpack.c.h.b16 %v1382
      %v1482 = vunpack.c.l.b16 %v1383
      %v1483 = vunpack.c.h.b16 %v1383
      %v1484 = vunpack.c.l.b16 %v1384
      %v1485 = vunpack.c.h.b16 %v1384
      %v1486 = vunpack.c.l.b16 %v1385
      %v1487 = vunpack.c.h.b16 %v1385
      %v1488 = vunpack.c.l.b16 %v1386
      %v1489 = vunpack.c.h.b16 %v1386
      %v1490 = vunpack.c.l.b16 %v1387
      %v1491 = vunpack.c.h.b16 %v1387
      %v1492 = vunpack.c.l.b16 %v1388
      %v1493 = vunpack.c.h.b16 %v1388
      %v1494 = vunpack.c.l.b16 %v1389
      %v1495 = vunpack.c.h.b16 %v1389
      %v1496 = vunpack.c.l.b16 %v1390
      %v1497 = vunpack.c.h.b16 %v1390
      %v1498 = vunpack.c.l.b16 %v1391
      %v1499 = vunpack.c.h.b16 %v1391
      %v1500 = vunpack.c.l.b16 %v1392
      %v1501 = vunpack.c.h.b16 %v1392
      %v1502 = vunpack.c.l.b16 %v1393
      %v1503 = vunpack.c.h.b16 %v1393
      %v1504 = vunpack.c.l.b16 %v1394
      %v1505 = vunpack.c.h.b16 %v1394
      %v1506 = vunpack.c.l.b16 %v1395
      %v1507 = vunpack.c.h.b16 %v1395
      %v1508 = vunpack.c.l.b16 %v1396
      %v1509 = vunpack.c.h.b16 %v1396
      %v1510 = vunpack.c.l.b16 %v1397
      %v1511 = vunpack.c.h.b16 %v1397
      %v1512 = vunpack.c.l.b16 %v1398
      %v1513 = vunpack.c.h.b16 %v1398
      %v1514 = vunpack.c.l.b16 %v1399
      %v1515 = vunpack.c.h.b16 %v1399
      %v1516 = vunpack.c.l.b16 %v1400
      %v1517 = vunpack.c.h.b16 %v1400
      %v1518 = vunpack.c.l.b16 %v1401
      %v1519 = vunpack.c.h.b16 %v1401
      %v1520 = vpack.c.b16 %v1458, %v1456
      %v1521 = vpack.c.b16 %v1459, %v1457
      %v1522 = vpack.c.b16 %v1462, %v1460
      %v1523 = vpack.c.b16 %v1463, %v1461
      %v1524 = vpack.c.b16 %v1466, %v1464
      %v1525 = vpack.c.b16 %v1467, %v1465
      %v1526 = vpack.c.b16 %v1470, %v1468
      %v1527 = vpack.c.b16 %v1471, %v1469
      %v1528 = vpack.c.b16 %v1474, %v1472
      %v1529 = vpack.c.b16 %v1475, %v1473
      %v1530 = vpack.c.b16 %v1478, %v1476
      %v1531 = vpack.c.b16 %v1479, %v1477
      %v1532 = vpack.c.b16 %v1482, %v1480
      %v1533 = vpack.c.b16 %v1483, %v1481
      %v1534 = vpack.c.b16 %v1486, %v1484
      %v1535 = vpack.c.b16 %v1487, %v1485
      %v1536 = vpack.c.b16 %v1490, %v1488
      %v1537 = vpack.c.b16 %v1491, %v1489
      %v1538 = vpack.c.b16 %v1494, %v1492
      %v1539 = vpack.c.b16 %v1495, %v1493
      %v1540 = vpack.c.b16 %v1498, %v1496
      %v1541 = vpack.c.b16 %v1499, %v1497
      %v1542 = vpack.c.b16 %v1502, %v1500
      %v1543 = vpack.c.b16 %v1503, %v1501
      %v1544 = vpack.c.b16 %v1506, %v1504
      %v1545 = vpack.c.b16 %v1507, %v1505
      %v1546 = vpack.c.b16 %v1510, %v1508
      %v1547 = vpack.c.b16 %v1511, %v1509
      %v1548 = vpack.c.b16 %v1514, %v1512
      %v1549 = vpack.c.b16 %v1515, %v1513
      %v1550 = vpack.c.b16 %v1518, %v1516
      %v1551 = vpack.c.b16 %v1519, %v1517
      %1584 = vmatprep.subr.bf16.mxu0 %v1521
      %1585 = vmatpush1.bf16.msra.mxu0 %v1520
      %1586 = vmatprep.subr.bf16.mxu0 %v1523
      %1587 = vmatpush1.bf16.msra.mxu0 %v1522
      %1588 = vmatprep.subr.bf16.mxu0 %v1525
      %1589 = vmatpush1.bf16.msra.mxu0 %v1524
      %1590 = vmatprep.subr.bf16.mxu0 %v1527
      %1591 = vmatpush1.bf16.msra.mxu0 %v1526
      %1592 = vmatprep.subr.bf16.mxu0 %v1529
      %1593 = vmatpush1.bf16.msra.mxu0 %v1528
      %1594 = vmatprep.subr.bf16.mxu0 %v1531
      %1595 = vmatpush1.bf16.msra.mxu0 %v1530
      %1596 = vmatprep.subr.bf16.mxu0 %v1533
      %1597 = vmatpush1.bf16.msra.mxu0 %v1532
      %1598 = vmatprep.subr.bf16.mxu0 %v1535
      %1599 = vmatpush1.bf16.msra.mxu0 %v1534
      %1600 = vmatprep.subr.bf16.mxu0 %v1537
      %1601 = vmatpush1.bf16.msra.mxu0 %v1536
      %1602 = vmatprep.subr.bf16.mxu0 %v1539
      %1603 = vmatpush1.bf16.msra.mxu0 %v1538
      %1604 = vmatprep.subr.bf16.mxu0 %v1541
      %1605 = vmatpush1.bf16.msra.mxu0 %v1540
      %1606 = vmatprep.subr.bf16.mxu0 %v1543
      %1607 = vmatpush1.bf16.msra.mxu0 %v1542
      %1608 = vmatprep.subr.bf16.mxu0 %v1545
      %1609 = vmatpush1.bf16.msra.mxu0 %v1544
      %1610 = vmatprep.subr.bf16.mxu0 %v1547
      %1611 = vmatpush1.bf16.msra.mxu0 %v1546
      %1612 = vmatprep.subr.bf16.mxu0 %v1549
      %1613 = vmatpush1.bf16.msra.mxu0 %v1548
      %1614 = vmatprep.subr.bf16.mxu0 %v1551
      %1615 = vmatpush1.bf16.msra.mxu0 %v1550
      %1616 = vmatprep.mubr.bf16.mxu0 %v1421
      %1617 = vmatmul.mubr.bf16.gmra.mrb[0].mxu0 %v1420
      %v1618 = vpop.f32.mrb[0].mxu0
      %v1619 = vadd.f32 0.0, %v1618
      %v1620 = vpop.f32.mrb[0].mxu0
      %v1621 = vadd.f32 0.0, %v1620
      %v1622 = vpop.f32.mrb[0].mxu0
      %v1623 = vadd.f32 0.0, %v1622
      %v1624 = vpop.f32.mrb[0].mxu0
      %v1625 = vadd.f32 0.0, %v1624
      %1626 = vdwg.mxu0
      %vm1631 = vcmask 1043456
      %v1632 = vrot.slane %v1619, 4
      %v1633 = vrot.slane %v1621, 4
      %v1634 = vrot.slane %v1623, 4
      %v1635 = vsel %vm1631, %v1632, %v1634
      %v1636 = vrot.slane %v1625, 4
      %v1637 = vsel %vm1631, %v1633, %v1636
      %v1642 = vadd.f32 %v1365, %v1632
      %v1643 = vadd.f32 %v1366, %v1633
      %v1644 = vadd.f32 %v1367, %v1635
      %v1645 = vadd.f32 %v1368, %v1637
      %1646 = vst [vmem:[#allocation2] sm:$0xf0] %v1642
      %1647 = vst [vmem:[#allocation2 + $0x8] sm:$0xf0] %v1643
      %1648 = vst [vmem:[#allocation2 + $0x10] sm:$0xff] %v1644
      %1649 = vst [vmem:[#allocation2 + $0x18] sm:$0xff] %v1645
      %v1650 = vld [vmem:[#allocation3] sm:$0xf0]
      %v1651 = vld [vmem:[#allocation3 + $0x8] sm:$0xf0]
      %v1652 = vld [vmem:[#allocation3 + $0x10] sm:$0xff]
      %v1653 = vld [vmem:[#allocation3 + $0x18] sm:$0xff]
      %s1654 = scalar_lea.vmem %s3, 512
      %v1655 = vld [vmem:[%s1654] sm:$0xff]
      %v1656 = vld [vmem:[%s1654 + $0x8] sm:$0xff]
      %v1657 = vld [vmem:[%s1654 + $0x10] sm:$0xff]
      %v1658 = vld [vmem:[%s1654 + $0x18] sm:$0xff]
      %v1659 = vld [vmem:[%s1654 + $0x20] sm:$0xff]
      %v1660 = vld [vmem:[%s1654 + $0x28] sm:$0xff]
      %v1661 = vld [vmem:[%s1654 + $0x30] sm:$0xff]
      %v1662 = vld [vmem:[%s1654 + $0x38] sm:$0xff]
      %v1663 = vld [vmem:[%s1654 + $0x40] sm:$0xff]
      %v1664 = vld [vmem:[%s1654 + $0x48] sm:$0xff]
      %v1665 = vld [vmem:[%s1654 + $0x50] sm:$0xff]
      %v1666 = vld [vmem:[%s1654 + $0x58] sm:$0xff]
      %v1667 = vld [vmem:[%s1654 + $0x60] sm:$0xff]
      %v1668 = vld [vmem:[%s1654 + $0x68] sm:$0xff]
      %v1669 = vld [vmem:[%s1654 + $0x70] sm:$0xff]
      %v1670 = vld [vmem:[%s1654 + $0x78] sm:$0xff]
      %v1671 = vld [vmem:[%s1654 + $0x80] sm:$0xff]
      %v1672 = vld [vmem:[%s1654 + $0x88] sm:$0xff]
      %v1673 = vld [vmem:[%s1654 + $0x90] sm:$0xff]
      %v1674 = vld [vmem:[%s1654 + $0x98] sm:$0xff]
      %v1675 = vld [vmem:[%s1654 + $0xa0] sm:$0xff]
      %v1676 = vld [vmem:[%s1654 + $0xa8] sm:$0xff]
      %v1677 = vld [vmem:[%s1654 + $0xb0] sm:$0xff]
      %v1678 = vld [vmem:[%s1654 + $0xb8] sm:$0xff]
      %v1679 = vld [vmem:[%s1654 + $0xc0] sm:$0xff]
      %v1680 = vld [vmem:[%s1654 + $0xc8] sm:$0xff]
      %v1681 = vld [vmem:[%s1654 + $0xd0] sm:$0xff]
      %v1682 = vld [vmem:[%s1654 + $0xd8] sm:$0xff]
      %v1683 = vld [vmem:[%s1654 + $0xe0] sm:$0xff]
      %v1684 = vld [vmem:[%s1654 + $0xe8] sm:$0xff]
      %v1685 = vld [vmem:[%s1654 + $0xf0] sm:$0xff]
      %v1686 = vld [vmem:[%s1654 + $0xf8] sm:$0xff]
      %v1719 = vunpack.c.l.b16 %v1655
      %v1720 = vunpack.c.h.b16 %v1655
      %v1721 = vunpack.c.l.b16 %v1656
      %v1722 = vunpack.c.h.b16 %v1656
      %v1723 = vunpack.c.l.b16 %v1657
      %v1724 = vunpack.c.h.b16 %v1657
      %v1725 = vunpack.c.l.b16 %v1658
      %v1726 = vunpack.c.h.b16 %v1658
      %v1727 = vunpack.c.l.b16 %v1659
      %v1728 = vunpack.c.h.b16 %v1659
      %v1729 = vunpack.c.l.b16 %v1660
      %v1730 = vunpack.c.h.b16 %v1660
      %v1731 = vunpack.c.l.b16 %v1661
      %v1732 = vunpack.c.h.b16 %v1661
      %v1733 = vunpack.c.l.b16 %v1662
      %v1734 = vunpack.c.h.b16 %v1662
      %v1735 = vunpack.c.l.b16 %v1663
      %v1736 = vunpack.c.h.b16 %v1663
      %v1737 = vunpack.c.l.b16 %v1664
      %v1738 = vunpack.c.h.b16 %v1664
      %v1739 = vunpack.c.l.b16 %v1665
      %v1740 = vunpack.c.h.b16 %v1665
      %v1741 = vunpack.c.l.b16 %v1666
      %v1742 = vunpack.c.h.b16 %v1666
      %v1743 = vunpack.c.l.b16 %v1667
      %v1744 = vunpack.c.h.b16 %v1667
      %v1745 = vunpack.c.l.b16 %v1668
      %v1746 = vunpack.c.h.b16 %v1668
      %v1747 = vunpack.c.l.b16 %v1669
      %v1748 = vunpack.c.h.b16 %v1669
      %v1749 = vunpack.c.l.b16 %v1670
      %v1750 = vunpack.c.h.b16 %v1670
      %v1751 = vunpack.c.l.b16 %v1671
      %v1752 = vunpack.c.h.b16 %v1671
      %v1753 = vunpack.c.l.b16 %v1672
      %v1754 = vunpack.c.h.b16 %v1672
      %v1755 = vunpack.c.l.b16 %v1673
      %v1756 = vunpack.c.h.b16 %v1673
      %v1757 = vunpack.c.l.b16 %v1674
      %v1758 = vunpack.c.h.b16 %v1674
      %v1759 = vunpack.c.l.b16 %v1675
      %v1760 = vunpack.c.h.b16 %v1675
      %v1761 = vunpack.c.l.b16 %v1676
      %v1762 = vunpack.c.h.b16 %v1676
      %v1763 = vunpack.c.l.b16 %v1677
      %v1764 = vunpack.c.h.b16 %v1677
      %v1765 = vunpack.c.l.b16 %v1678
      %v1766 = vunpack.c.h.b16 %v1678
      %v1767 = vunpack.c.l.b16 %v1679
      %v1768 = vunpack.c.h.b16 %v1679
      %v1769 = vunpack.c.l.b16 %v1680
      %v1770 = vunpack.c.h.b16 %v1680
      %v1771 = vunpack.c.l.b16 %v1681
      %v1772 = vunpack.c.h.b16 %v1681
      %v1773 = vunpack.c.l.b16 %v1682
      %v1774 = vunpack.c.h.b16 %v1682
      %v1775 = vunpack.c.l.b16 %v1683
      %v1776 = vunpack.c.h.b16 %v1683
      %v1777 = vunpack.c.l.b16 %v1684
      %v1778 = vunpack.c.h.b16 %v1684
      %v1779 = vunpack.c.l.b16 %v1685
      %v1780 = vunpack.c.h.b16 %v1685
      %v1781 = vunpack.c.l.b16 %v1686
      %v1782 = vunpack.c.h.b16 %v1686
      %v1783 = vpack.c.b16 %v1721, %v1719
      %v1784 = vpack.c.b16 %v1722, %v1720
      %v1785 = vpack.c.b16 %v1725, %v1723
      %v1786 = vpack.c.b16 %v1726, %v1724
      %v1787 = vpack.c.b16 %v1729, %v1727
      %v1788 = vpack.c.b16 %v1730, %v1728
      %v1789 = vpack.c.b16 %v1733, %v1731
      %v1790 = vpack.c.b16 %v1734, %v1732
      %v1791 = vpack.c.b16 %v1737, %v1735
      %v1792 = vpack.c.b16 %v1738, %v1736
      %v1793 = vpack.c.b16 %v1741, %v1739
      %v1794 = vpack.c.b16 %v1742, %v1740
      %v1795 = vpack.c.b16 %v1745, %v1743
      %v1796 = vpack.c.b16 %v1746, %v1744
      %v1797 = vpack.c.b16 %v1749, %v1747
      %v1798 = vpack.c.b16 %v1750, %v1748
      %v1799 = vpack.c.b16 %v1753, %v1751
      %v1800 = vpack.c.b16 %v1754, %v1752
      %v1801 = vpack.c.b16 %v1757, %v1755
      %v1802 = vpack.c.b16 %v1758, %v1756
      %v1803 = vpack.c.b16 %v1761, %v1759
      %v1804 = vpack.c.b16 %v1762, %v1760
      %v1805 = vpack.c.b16 %v1765, %v1763
      %v1806 = vpack.c.b16 %v1766, %v1764
      %v1807 = vpack.c.b16 %v1769, %v1767
      %v1808 = vpack.c.b16 %v1770, %v1768
      %v1809 = vpack.c.b16 %v1773, %v1771
      %v1810 = vpack.c.b16 %v1774, %v1772
      %v1811 = vpack.c.b16 %v1777, %v1775
      %v1812 = vpack.c.b16 %v1778, %v1776
      %v1813 = vpack.c.b16 %v1781, %v1779
      %v1814 = vpack.c.b16 %v1782, %v1780
      %1847 = vmatprep.subr.bf16.mxu0 %v1784
      %1848 = vmatpush1.bf16.msra.mxu0 %v1783
      %1849 = vmatprep.subr.bf16.mxu0 %v1786
      %1850 = vmatpush1.bf16.msra.mxu0 %v1785
      %1851 = vmatprep.subr.bf16.mxu0 %v1788
      %1852 = vmatpush1.bf16.msra.mxu0 %v1787
      %1853 = vmatprep.subr.bf16.mxu0 %v1790
      %1854 = vmatpush1.bf16.msra.mxu0 %v1789
      %1855 = vmatprep.subr.bf16.mxu0 %v1792
      %1856 = vmatpush1.bf16.msra.mxu0 %v1791
      %1857 = vmatprep.subr.bf16.mxu0 %v1794
      %1858 = vmatpush1.bf16.msra.mxu0 %v1793
      %1859 = vmatprep.subr.bf16.mxu0 %v1796
      %1860 = vmatpush1.bf16.msra.mxu0 %v1795
      %1861 = vmatprep.subr.bf16.mxu0 %v1798
      %1862 = vmatpush1.bf16.msra.mxu0 %v1797
      %1863 = vmatprep.subr.bf16.mxu0 %v1800
      %1864 = vmatpush1.bf16.msra.mxu0 %v1799
      %1865 = vmatprep.subr.bf16.mxu0 %v1802
      %1866 = vmatpush1.bf16.msra.mxu0 %v1801
      %1867 = vmatprep.subr.bf16.mxu0 %v1804
      %1868 = vmatpush1.bf16.msra.mxu0 %v1803
      %1869 = vmatprep.subr.bf16.mxu0 %v1806
      %1870 = vmatpush1.bf16.msra.mxu0 %v1805
      %1871 = vmatprep.subr.bf16.mxu0 %v1808
      %1872 = vmatpush1.bf16.msra.mxu0 %v1807
      %1873 = vmatprep.subr.bf16.mxu0 %v1810
      %1874 = vmatpush1.bf16.msra.mxu0 %v1809
      %1875 = vmatprep.subr.bf16.mxu0 %v1812
      %1876 = vmatpush1.bf16.msra.mxu0 %v1811
      %1877 = vmatprep.subr.bf16.mxu0 %v1814
      %1878 = vmatpush1.bf16.msra.mxu0 %v1813
      %1879 = vmatprep.mubr.bf16.mxu0 %v1421
      %1880 = vmatmul.mubr.bf16.gmra.mrb[0].mxu0 %v1420
      %v1881 = vpop.f32.mrb[0].mxu0
      %v1882 = vadd.f32 0.0, %v1881
      %v1883 = vpop.f32.mrb[0].mxu0
      %v1884 = vadd.f32 0.0, %v1883
      %v1885 = vpop.f32.mrb[0].mxu0
      %v1886 = vadd.f32 0.0, %v1885
      %v1887 = vpop.f32.mrb[0].mxu0
      %v1888 = vadd.f32 0.0, %v1887
      %1889 = vdwg.mxu0
      %v1894 = vrot.slane %v1882, 4
      %v1895 = vrot.slane %v1884, 4
      %v1896 = vrot.slane %v1886, 4
      %v1897 = vsel %vm1631, %v1894, %v1896
      %v1898 = vrot.slane %v1888, 4
      %v1899 = vsel %vm1631, %v1895, %v1898
      %v1904 = vadd.f32 %v1650, %v1894
      %v1905 = vadd.f32 %v1651, %v1895
      %v1906 = vadd.f32 %v1652, %v1897
      %v1907 = vadd.f32 %v1653, %v1899
      %1908 = vst [vmem:[#allocation3] sm:$0xf0] %v1904
      %1909 = vst [vmem:[#allocation3 + $0x8] sm:$0xf0] %v1905
      %1910 = vst [vmem:[#allocation3 + $0x10] sm:$0xff] %v1906
      %1911 = vst [vmem:[#allocation3 + $0x18] sm:$0xff] %v1907
      %p1912 = scmp.gt.s32.totalorder %s21, 0
      // Predicated region
      $region41: #{spatial_path_forward.5} parent=39 // pred_check
        %p1913 = pneg %p1912
      $region42: #{spatial_path_forward.5} parent=39 // pred_check_branch
        %1915 = sbr.rel (%p1913) target = $region44
      $region43: #{spatial_path_forward.5} parent=39 // pred_region
        %s1916 = scalar_lea.vmem %s315, 4
        %v1917 = vld [vmem:[%s1916] sm:$0xf]
        %v1918 = vld [vmem:[#allocation2] sm:$0xf]
        %v1919 = vld [vmem:[#allocation2 + $0x8] sm:$0xf]
        %v1920 = vld [vmem:[%s1369] sm:$0xff]
        %v1921 = vld [vmem:[%s1369 + $0x8] sm:$0xff]
        %v1922 = vld [vmem:[%s1369 + $0x10] sm:$0xff]
        %v1923 = vld [vmem:[%s1369 + $0x18] sm:$0xff]
        %v1924 = vld [vmem:[%s1369 + $0x20] sm:$0xff]
        %v1925 = vld [vmem:[%s1369 + $0x28] sm:$0xff]
        %v1926 = vld [vmem:[%s1369 + $0x30] sm:$0xff]
        %v1927 = vld [vmem:[%s1369 + $0x38] sm:$0xff]
        %v1928 = vld [vmem:[%s1369 + $0x40] sm:$0xff]
        %v1929 = vld [vmem:[%s1369 + $0x48] sm:$0xff]
        %v1930 = vld [vmem:[%s1369 + $0x50] sm:$0xff]
        %v1931 = vld [vmem:[%s1369 + $0x58] sm:$0xff]
        %v1932 = vld [vmem:[%s1369 + $0x60] sm:$0xff]
        %v1933 = vld [vmem:[%s1369 + $0x68] sm:$0xff]
        %v1934 = vld [vmem:[%s1369 + $0x70] sm:$0xff]
        %v1935 = vld [vmem:[%s1369 + $0x78] sm:$0xff]
        %v1936 = vld [vmem:[%s1369 + $0x80] sm:$0xff]
        %v1937 = vld [vmem:[%s1369 + $0x88] sm:$0xff]
        %v1938 = vld [vmem:[%s1369 + $0x90] sm:$0xff]
        %v1939 = vld [vmem:[%s1369 + $0x98] sm:$0xff]
        %v1940 = vld [vmem:[%s1369 + $0xa0] sm:$0xff]
        %v1941 = vld [vmem:[%s1369 + $0xa8] sm:$0xff]
        %v1942 = vld [vmem:[%s1369 + $0xb0] sm:$0xff]
        %v1943 = vld [vmem:[%s1369 + $0xb8] sm:$0xff]
        %v1944 = vld [vmem:[%s1369 + $0xc0] sm:$0xff]
        %v1945 = vld [vmem:[%s1369 + $0xc8] sm:$0xff]
        %v1946 = vld [vmem:[%s1369 + $0xd0] sm:$0xff]
        %v1947 = vld [vmem:[%s1369 + $0xd8] sm:$0xff]
        %v1948 = vld [vmem:[%s1369 + $0xe0] sm:$0xff]
        %v1949 = vld [vmem:[%s1369 + $0xe8] sm:$0xff]
        %v1950 = vld [vmem:[%s1369 + $0xf0] sm:$0xff]
        %v1951 = vld [vmem:[%s1369 + $0xf8] sm:$0xff]
        %v1954 = vunpack.c.l.s4 1983009808
        %v1955 = vunpack.c.0.s8 %v1954
        %v1956 = vlaneseq
        %v1957 = vshrl.u32 %v1956, 7
        %v1958 = vsub.s32 %v1955, %v1957
        %v1959 = vrot.slane %v1917, %v1958
        %v1960 = vcombine.high %v1959, %v1959
        %v1995 = vunpack.c.l.b16 %v1920
        %v1996 = vunpack.c.h.b16 %v1920
        %v1997 = vunpack.c.l.b16 %v1921
        %v1998 = vunpack.c.h.b16 %v1921
        %v1999 = vunpack.c.l.b16 %v1922
        %v2000 = vunpack.c.h.b16 %v1922
        %v2001 = vunpack.c.l.b16 %v1923
        %v2002 = vunpack.c.h.b16 %v1923
        %v2003 = vunpack.c.l.b16 %v1924
        %v2004 = vunpack.c.h.b16 %v1924
        %v2005 = vunpack.c.l.b16 %v1925
        %v2006 = vunpack.c.h.b16 %v1925
        %v2007 = vunpack.c.l.b16 %v1926
        %v2008 = vunpack.c.h.b16 %v1926
        %v2009 = vunpack.c.l.b16 %v1927
        %v2010 = vunpack.c.h.b16 %v1927
        %v2011 = vunpack.c.l.b16 %v1928
        %v2012 = vunpack.c.h.b16 %v1928
        %v2013 = vunpack.c.l.b16 %v1929
        %v2014 = vunpack.c.h.b16 %v1929
        %v2015 = vunpack.c.l.b16 %v1930
        %v2016 = vunpack.c.h.b16 %v1930
        %v2017 = vunpack.c.l.b16 %v1931
        %v2018 = vunpack.c.h.b16 %v1931
        %v2019 = vunpack.c.l.b16 %v1932
        %v2020 = vunpack.c.h.b16 %v1932
        %v2021 = vunpack.c.l.b16 %v1933
        %v2022 = vunpack.c.h.b16 %v1933
        %v2023 = vunpack.c.l.b16 %v1934
        %v2024 = vunpack.c.h.b16 %v1934
        %v2025 = vunpack.c.l.b16 %v1935
        %v2026 = vunpack.c.h.b16 %v1935
        %v2027 = vunpack.c.l.b16 %v1936
        %v2028 = vunpack.c.h.b16 %v1936
        %v2029 = vunpack.c.l.b16 %v1937
        %v2030 = vunpack.c.h.b16 %v1937
        %v2031 = vunpack.c.l.b16 %v1938
        %v2032 = vunpack.c.h.b16 %v1938
        %v2033 = vunpack.c.l.b16 %v1939
        %v2034 = vunpack.c.h.b16 %v1939
        %v2035 = vunpack.c.l.b16 %v1940
        %v2036 = vunpack.c.h.b16 %v1940
        %v2037 = vunpack.c.l.b16 %v1941
        %v2038 = vunpack.c.h.b16 %v1941
        %v2039 = vunpack.c.l.b16 %v1942
        %v2040 = vunpack.c.h.b16 %v1942
        %v2041 = vunpack.c.l.b16 %v1943
        %v2042 = vunpack.c.h.b16 %v1943
        %v2043 = vunpack.c.l.b16 %v1944
        %v2044 = vunpack.c.h.b16 %v1944
        %v2045 = vunpack.c.l.b16 %v1945
        %v2046 = vunpack.c.h.b16 %v1945
        %v2047 = vunpack.c.l.b16 %v1946
        %v2048 = vunpack.c.h.b16 %v1946
        %v2049 = vunpack.c.l.b16 %v1947
        %v2050 = vunpack.c.h.b16 %v1947
        %v2051 = vunpack.c.l.b16 %v1948
        %v2052 = vunpack.c.h.b16 %v1948
        %v2053 = vunpack.c.l.b16 %v1949
        %v2054 = vunpack.c.h.b16 %v1949
        %v2055 = vunpack.c.l.b16 %v1950
        %v2056 = vunpack.c.h.b16 %v1950
        %v2057 = vunpack.c.l.b16 %v1951
        %v2058 = vunpack.c.h.b16 %v1951
        %v2059 = vpack.c.b16 %v1997, %v1995
        %v2060 = vpack.c.b16 %v1998, %v1996
        %v2061 = vpack.c.b16 %v2001, %v1999
        %v2062 = vpack.c.b16 %v2002, %v2000
        %v2063 = vpack.c.b16 %v2005, %v2003
        %v2064 = vpack.c.b16 %v2006, %v2004
        %v2065 = vpack.c.b16 %v2009, %v2007
        %v2066 = vpack.c.b16 %v2010, %v2008
        %v2067 = vpack.c.b16 %v2013, %v2011
        %v2068 = vpack.c.b16 %v2014, %v2012
        %v2069 = vpack.c.b16 %v2017, %v2015
        %v2070 = vpack.c.b16 %v2018, %v2016
        %v2071 = vpack.c.b16 %v2021, %v2019
        %v2072 = vpack.c.b16 %v2022, %v2020
        %v2073 = vpack.c.b16 %v2025, %v2023
        %v2074 = vpack.c.b16 %v2026, %v2024
        %v2075 = vpack.c.b16 %v2029, %v2027
        %v2076 = vpack.c.b16 %v2030, %v2028
        %v2077 = vpack.c.b16 %v2033, %v2031
        %v2078 = vpack.c.b16 %v2034, %v2032
        %v2079 = vpack.c.b16 %v2037, %v2035
        %v2080 = vpack.c.b16 %v2038, %v2036
        %v2081 = vpack.c.b16 %v2041, %v2039
        %v2082 = vpack.c.b16 %v2042, %v2040
        %v2083 = vpack.c.b16 %v2045, %v2043
        %v2084 = vpack.c.b16 %v2046, %v2044
        %v2085 = vpack.c.b16 %v2049, %v2047
        %v2086 = vpack.c.b16 %v2050, %v2048
        %v2087 = vpack.c.b16 %v2053, %v2051
        %v2088 = vpack.c.b16 %v2054, %v2052
        %v2089 = vpack.c.b16 %v2057, %v2055
        %v2090 = vpack.c.b16 %v2058, %v2056
        %2123 = vmatprep.subr.bf16.mxu0 %v2060
        %2124 = vmatpush1.bf16.msra.mxu0 %v2059
        %2125 = vmatprep.subr.bf16.mxu0 %v2062
        %2126 = vmatpush1.bf16.msra.mxu0 %v2061
        %2127 = vmatprep.subr.bf16.mxu0 %v2064
        %2128 = vmatpush1.bf16.msra.mxu0 %v2063
        %2129 = vmatprep.subr.bf16.mxu0 %v2066
        %2130 = vmatpush1.bf16.msra.mxu0 %v2065
        %2131 = vmatprep.subr.bf16.mxu0 %v2068
        %2132 = vmatpush1.bf16.msra.mxu0 %v2067
        %2133 = vmatprep.subr.bf16.mxu0 %v2070
        %2134 = vmatpush1.bf16.msra.mxu0 %v2069
        %2135 = vmatprep.subr.bf16.mxu0 %v2072
        %2136 = vmatpush1.bf16.msra.mxu0 %v2071
        %2137 = vmatprep.subr.bf16.mxu0 %v2074
        %2138 = vmatpush1.bf16.msra.mxu0 %v2073
        %2139 = vmatprep.subr.bf16.mxu0 %v2076
        %2140 = vmatpush1.bf16.msra.mxu0 %v2075
        %2141 = vmatprep.subr.bf16.mxu0 %v2078
        %2142 = vmatpush1.bf16.msra.mxu0 %v2077
        %2143 = vmatprep.subr.bf16.mxu0 %v2080
        %2144 = vmatpush1.bf16.msra.mxu0 %v2079
        %2145 = vmatprep.subr.bf16.mxu0 %v2082
        %2146 = vmatpush1.bf16.msra.mxu0 %v2081
        %2147 = vmatprep.subr.bf16.mxu0 %v2084
        %2148 = vmatpush1.bf16.msra.mxu0 %v2083
        %2149 = vmatprep.subr.bf16.mxu0 %v2086
        %2150 = vmatpush1.bf16.msra.mxu0 %v2085
        %2151 = vmatprep.subr.bf16.mxu0 %v2088
        %2152 = vmatpush1.bf16.msra.mxu0 %v2087
        %2153 = vmatprep.subr.bf16.mxu0 %v2090
        %2154 = vmatpush1.bf16.msra.mxu0 %v2089
        %2155 = vmatprep.mubr.bf16.mxu0 %v1960
        %2156 = vmatmul.mubr.bf16.gmra.mrb[0].mxu0 %v1959
        %v2157 = vpop.f32.mrb[0].mxu0
        %v2158 = vadd.f32 0.0, %v2157
        %v2159 = vpop.f32.mrb[0].mxu0
        %v2160 = vadd.f32 0.0, %v2159
        %v2161 = vpop.f32.mrb[0].mxu0
        %v2162 = vpop.f32.mrb[0].mxu0
        %2163 = vdwg.mxu0
        %v2164 = vadd.f32 %v1918, %v2158
        %v2165 = vadd.f32 %v1919, %v2160
        %2166 = vst [vmem:[#allocation2] sm:$0xf] %v2164
        %2167 = vst [vmem:[#allocation2 + $0x8] sm:$0xf] %v2165
        %v2168 = vld [vmem:[#allocation3] sm:$0xf]
        %v2169 = vld [vmem:[#allocation3 + $0x8] sm:$0xf]
        %v2170 = vld [vmem:[%s1654] sm:$0xff]
        %v2171 = vld [vmem:[%s1654 + $0x8] sm:$0xff]
        %v2172 = vld [vmem:[%s1654 + $0x10] sm:$0xff]
        %v2173 = vld [vmem:[%s1654 + $0x18] sm:$0xff]
        %v2174 = vld [vmem:[%s1654 + $0x20] sm:$0xff]
        %v2175 = vld [vmem:[%s1654 + $0x28] sm:$0xff]
        %v2176 = vld [vmem:[%s1654 + $0x30] sm:$0xff]
        %v2177 = vld [vmem:[%s1654 + $0x38] sm:$0xff]
        %v2178 = vld [vmem:[%s1654 + $0x40] sm:$0xff]
        %v2179 = vld [vmem:[%s1654 + $0x48] sm:$0xff]
        %v2180 = vld [vmem:[%s1654 + $0x50] sm:$0xff]
        %v2181 = vld [vmem:[%s1654 + $0x58] sm:$0xff]
        %v2182 = vld [vmem:[%s1654 + $0x60] sm:$0xff]
        %v2183 = vld [vmem:[%s1654 + $0x68] sm:$0xff]
        %v2184 = vld [vmem:[%s1654 + $0x70] sm:$0xff]
        %v2185 = vld [vmem:[%s1654 + $0x78] sm:$0xff]
        %v2186 = vld [vmem:[%s1654 + $0x80] sm:$0xff]
        %v2187 = vld [vmem:[%s1654 + $0x88] sm:$0xff]
        %v2188 = vld [vmem:[%s1654 + $0x90] sm:$0xff]
        %v2189 = vld [vmem:[%s1654 + $0x98] sm:$0xff]
        %v2190 = vld [vmem:[%s1654 + $0xa0] sm:$0xff]
        %v2191 = vld [vmem:[%s1654 + $0xa8] sm:$0xff]
        %v2192 = vld [vmem:[%s1654 + $0xb0] sm:$0xff]
        %v2193 = vld [vmem:[%s1654 + $0xb8] sm:$0xff]
        %v2194 = vld [vmem:[%s1654 + $0xc0] sm:$0xff]
        %v2195 = vld [vmem:[%s1654 + $0xc8] sm:$0xff]
        %v2196 = vld [vmem:[%s1654 + $0xd0] sm:$0xff]
        %v2197 = vld [vmem:[%s1654 + $0xd8] sm:$0xff]
        %v2198 = vld [vmem:[%s1654 + $0xe0] sm:$0xff]
        %v2199 = vld [vmem:[%s1654 + $0xe8] sm:$0xff]
        %v2200 = vld [vmem:[%s1654 + $0xf0] sm:$0xff]
        %v2201 = vld [vmem:[%s1654 + $0xf8] sm:$0xff]
        %v2234 = vunpack.c.l.b16 %v2170
        %v2235 = vunpack.c.h.b16 %v2170
        %v2236 = vunpack.c.l.b16 %v2171
        %v2237 = vunpack.c.h.b16 %v2171
        %v2238 = vunpack.c.l.b16 %v2172
        %v2239 = vunpack.c.h.b16 %v2172
        %v2240 = vunpack.c.l.b16 %v2173
        %v2241 = vunpack.c.h.b16 %v2173
        %v2242 = vunpack.c.l.b16 %v2174
        %v2243 = vunpack.c.h.b16 %v2174
        %v2244 = vunpack.c.l.b16 %v2175
        %v2245 = vunpack.c.h.b16 %v2175
        %v2246 = vunpack.c.l.b16 %v2176
        %v2247 = vunpack.c.h.b16 %v2176
        %v2248 = vunpack.c.l.b16 %v2177
        %v2249 = vunpack.c.h.b16 %v2177
        %v2250 = vunpack.c.l.b16 %v2178
        %v2251 = vunpack.c.h.b16 %v2178
        %v2252 = vunpack.c.l.b16 %v2179
        %v2253 = vunpack.c.h.b16 %v2179
        %v2254 = vunpack.c.l.b16 %v2180
        %v2255 = vunpack.c.h.b16 %v2180
        %v2256 = vunpack.c.l.b16 %v2181
        %v2257 = vunpack.c.h.b16 %v2181
        %v2258 = vunpack.c.l.b16 %v2182
        %v2259 = vunpack.c.h.b16 %v2182
        %v2260 = vunpack.c.l.b16 %v2183
        %v2261 = vunpack.c.h.b16 %v2183
        %v2262 = vunpack.c.l.b16 %v2184
        %v2263 = vunpack.c.h.b16 %v2184
        %v2264 = vunpack.c.l.b16 %v2185
        %v2265 = vunpack.c.h.b16 %v2185
        %v2266 = vunpack.c.l.b16 %v2186
        %v2267 = vunpack.c.h.b16 %v2186
        %v2268 = vunpack.c.l.b16 %v2187
        %v2269 = vunpack.c.h.b16 %v2187
        %v2270 = vunpack.c.l.b16 %v2188
        %v2271 = vunpack.c.h.b16 %v2188
        %v2272 = vunpack.c.l.b16 %v2189
        %v2273 = vunpack.c.h.b16 %v2189
        %v2274 = vunpack.c.l.b16 %v2190
        %v2275 = vunpack.c.h.b16 %v2190
        %v2276 = vunpack.c.l.b16 %v2191
        %v2277 = vunpack.c.h.b16 %v2191
        %v2278 = vunpack.c.l.b16 %v2192
        %v2279 = vunpack.c.h.b16 %v2192
        %v2280 = vunpack.c.l.b16 %v2193
        %v2281 = vunpack.c.h.b16 %v2193
        %v2282 = vunpack.c.l.b16 %v2194
        %v2283 = vunpack.c.h.b16 %v2194
        %v2284 = vunpack.c.l.b16 %v2195
        %v2285 = vunpack.c.h.b16 %v2195
        %v2286 = vunpack.c.l.b16 %v2196
        %v2287 = vunpack.c.h.b16 %v2196
        %v2288 = vunpack.c.l.b16 %v2197
        %v2289 = vunpack.c.h.b16 %v2197
        %v2290 = vunpack.c.l.b16 %v2198
        %v2291 = vunpack.c.h.b16 %v2198
        %v2292 = vunpack.c.l.b16 %v2199
        %v2293 = vunpack.c.h.b16 %v2199
        %v2294 = vunpack.c.l.b16 %v2200
        %v2295 = vunpack.c.h.b16 %v2200
        %v2296 = vunpack.c.l.b16 %v2201
        %v2297 = vunpack.c.h.b16 %v2201
        %v2298 = vpack.c.b16 %v2236, %v2234
        %v2299 = vpack.c.b16 %v2237, %v2235
        %v2300 = vpack.c.b16 %v2240, %v2238
        %v2301 = vpack.c.b16 %v2241, %v2239
        %v2302 = vpack.c.b16 %v2244, %v2242
        %v2303 = vpack.c.b16 %v2245, %v2243
        %v2304 = vpack.c.b16 %v2248, %v2246
        %v2305 = vpack.c.b16 %v2249, %v2247
        %v2306 = vpack.c.b16 %v2252, %v2250
        %v2307 = vpack.c.b16 %v2253, %v2251
        %v2308 = vpack.c.b16 %v2256, %v2254
        %v2309 = vpack.c.b16 %v2257, %v2255
        %v2310 = vpack.c.b16 %v2260, %v2258
        %v2311 = vpack.c.b16 %v2261, %v2259
        %v2312 = vpack.c.b16 %v2264, %v2262
        %v2313 = vpack.c.b16 %v2265, %v2263
        %v2314 = vpack.c.b16 %v2268, %v2266
        %v2315 = vpack.c.b16 %v2269, %v2267
        %v2316 = vpack.c.b16 %v2272, %v2270
        %v2317 = vpack.c.b16 %v2273, %v2271
        %v2318 = vpack.c.b16 %v2276, %v2274
        %v2319 = vpack.c.b16 %v2277, %v2275
        %v2320 = vpack.c.b16 %v2280, %v2278
        %v2321 = vpack.c.b16 %v2281, %v2279
        %v2322 = vpack.c.b16 %v2284, %v2282
        %v2323 = vpack.c.b16 %v2285, %v2283
        %v2324 = vpack.c.b16 %v2288, %v2286
        %v2325 = vpack.c.b16 %v2289, %v2287
        %v2326 = vpack.c.b16 %v2292, %v2290
        %v2327 = vpack.c.b16 %v2293, %v2291
        %v2328 = vpack.c.b16 %v2296, %v2294
        %v2329 = vpack.c.b16 %v2297, %v2295
        %2362 = vmatprep.subr.bf16.mxu0 %v2299
        %2363 = vmatpush1.bf16.msra.mxu0 %v2298
        %2364 = vmatprep.subr.bf16.mxu0 %v2301
        %2365 = vmatpush1.bf16.msra.mxu0 %v2300
        %2366 = vmatprep.subr.bf16.mxu0 %v2303
        %2367 = vmatpush1.bf16.msra.mxu0 %v2302
        %2368 = vmatprep.subr.bf16.mxu0 %v2305
        %2369 = vmatpush1.bf16.msra.mxu0 %v2304
        %2370 = vmatprep.subr.bf16.mxu0 %v2307
        %2371 = vmatpush1.bf16.msra.mxu0 %v2306
        %2372 = vmatprep.subr.bf16.mxu0 %v2309
        %2373 = vmatpush1.bf16.msra.mxu0 %v2308
        %2374 = vmatprep.subr.bf16.mxu0 %v2311
        %2375 = vmatpush1.bf16.msra.mxu0 %v2310
        %2376 = vmatprep.subr.bf16.mxu0 %v2313
        %2377 = vmatpush1.bf16.msra.mxu0 %v2312
        %2378 = vmatprep.subr.bf16.mxu0 %v2315
        %2379 = vmatpush1.bf16.msra.mxu0 %v2314
        %2380 = vmatprep.subr.bf16.mxu0 %v2317
        %2381 = vmatpush1.bf16.msra.mxu0 %v2316
        %2382 = vmatprep.subr.bf16.mxu0 %v2319
        %2383 = vmatpush1.bf16.msra.mxu0 %v2318
        %2384 = vmatprep.subr.bf16.mxu0 %v2321
        %2385 = vmatpush1.bf16.msra.mxu0 %v2320
        %2386 = vmatprep.subr.bf16.mxu0 %v2323
        %2387 = vmatpush1.bf16.msra.mxu0 %v2322
        %2388 = vmatprep.subr.bf16.mxu0 %v2325
        %2389 = vmatpush1.bf16.msra.mxu0 %v2324
        %2390 = vmatprep.subr.bf16.mxu0 %v2327
        %2391 = vmatpush1.bf16.msra.mxu0 %v2326
        %2392 = vmatprep.subr.bf16.mxu0 %v2329
        %2393 = vmatpush1.bf16.msra.mxu0 %v2328
        %2394 = vmatprep.mubr.bf16.mxu0 %v1960
        %2395 = vmatmul.mubr.bf16.gmra.mrb[0].mxu0 %v1959
        %v2396 = vpop.f32.mrb[0].mxu0
        %v2397 = vadd.f32 0.0, %v2396
        %v2398 = vpop.f32.mrb[0].mxu0
        %v2399 = vadd.f32 0.0, %v2398
        %v2400 = vpop.f32.mrb[0].mxu0
        %v2401 = vpop.f32.mrb[0].mxu0
        %2402 = vdwg.mxu0
        %v2403 = vadd.f32 %v2168, %v2397
        %v2404 = vadd.f32 %v2169, %v2399
        %2405 = vst [vmem:[#allocation3] sm:$0xf] %v2403
        %2406 = vst [vmem:[#allocation3 + $0x8] sm:$0xf] %v2404
      $region44: #{spatial_path_forward.5} parent=39 // pred_fallthru
        _
      %v2407 = vld [vmem:[#allocation2] sm:$0xff]
      %v2408 = vld [vmem:[#allocation2 + $0x8] sm:$0xff]
      %v2409 = vld [vmem:[#allocation2 + $0x10] sm:$0xff]
      %v2410 = vld [vmem:[#allocation2 + $0x18] sm:$0xff]
      %v2411 = vld [vmem:[#allocation3] sm:$0xff]
      %v2412 = vld [vmem:[#allocation3 + $0x8] sm:$0xff]
      %v2413 = vld [vmem:[#allocation3 + $0x10] sm:$0xff]
      %v2414 = vld [vmem:[#allocation3 + $0x18] sm:$0xff]
      %vm2419 = vcmask 1040384
      %v2420 = vrot.slane %v2411, 7
      %v2421 = vrot.slane %v2412, 7
      %v2422 = vrot.slane %v2413, 7
      %v2423 = vsel %vm2419, %v2420, %v2422
      %v2424 = vrot.slane %v2414, 7
      %v2425 = vsel %vm2419, %v2421, %v2424
      %v2430 = vsel %vm2419, 0.0, %v2420
      %v2431 = vsel %vm2419, 0.0, %v2421
      %v2432 = vlaneseq
      %v2433 = vshrl.u32 %v2432, 7
      %v2434 = vadd.s32 %v2433, 8
      %vm2435 = vcmp.lt.s32.totalorder %v2433, 0
      %v2436 = vsub.s32 0, %v2433
      %v2437 = vsel %vm2435, %v2436, %v2433
      %v2438 = vshrl.u32 %v2437, 2
      %v2439 = vand.u32 %v2437, 3
      %v2440 = vsub.s32 0, %v2439
      %v2441 = vsel %vm2435, %v2440, %v2439
      %vm2442 = vcmp.lt.s32.totalorder %v2434, 0
      %v2443 = vsub.s32 0, %v2434
      %v2444 = vsel %vm2442, %v2443, %v2434
      %v2445 = vshrl.u32 %v2444, 2
      %v2446 = vand.u32 %v2444, 3
      %v2447 = vsub.s32 0, %v2446
      %v2448 = vsel %vm2442, %v2447, %v2446
      %vm2449 = vcmp.ne.s32.totalorder %v2441, 0
      %vm2450 = vcmp.ne.s32.totalorder %v2448, 0
      %vm2451 = vcmp.lt.s32.totalorder %v2441, 0
      %vm2452 = vcmp.lt.s32.totalorder %v2448, 0
      %vm2453 = vmand %vm2451, %vm2449
      %vm2454 = vmand %vm2452, %vm2450
      %v2455 = vadd.s32 %v2441, 4
      %v2456 = vadd.s32 %v2448, 4
      %v2457 = vsel %vm2453, %v2455, %v2441
      %v2458 = vsel %vm2454, %v2456, %v2448
      %vm2459 = vcmp.eq.s32.totalorder %v2457, 0
      %vm2460 = vcmp.eq.s32.totalorder %v2458, 0
      %v2461 = vsel %vm2459, 0.0, %v2430
      %v2462 = vsel %vm2459, 0.0, %v2431
      %v2463 = vsel %vm2460, 0.0, %v2423
      %v2464 = vsel %vm2460, 0.0, %v2425
      %v2465 = vadd.f32 %v2407, %v2461
      %v2466 = vadd.f32 %v2408, %v2462
      %v2467 = vadd.f32 %v2409, %v2463
      %v2468 = vadd.f32 %v2410, %v2464
      %v2469 = vld [vmem:[%s4] ss:$2 sm:$0x3]
      %v2471 = vlaneseq
      %v2472 = vshrl.u32 %v2471, 7
      %v2473 = vsub.s32 0, %v2472
      %v2474 = vrot.slane %v2469, %v2473
      %v2475 = vlaneseq
      %v2476 = vshrl.u32 %v2475, 7
      %v2477 = vsub.s32 1, %v2476
      %v2478 = vrot.slane %v2469, %v2477
      %v2481 = vmul.f32 %v2465, %v2474
      %v2482 = vmul.f32 %v2466, %v2478
      %v2483 = vmul.f32 %v2467, %v2474
      %v2484 = vmul.f32 %v2468, %v2478
      %s2485 = scalar_lea.vmem %s4, 1
      %v2486 = vld [vmem:[%s2485] ss:$2 sm:$0x3]
      %v2488 = vlaneseq
      %v2489 = vshrl.u32 %v2488, 7
      %v2490 = vsub.s32 0, %v2489
      %v2491 = vrot.slane %v2486, %v2490
      %v2492 = vlaneseq
      %v2493 = vshrl.u32 %v2492, 7
      %v2494 = vsub.s32 1, %v2493
      %v2495 = vrot.slane %v2486, %v2494
      %v2498 = vadd.f32 %v2481, %v2491
      %v2499 = vadd.f32 %v2482, %v2495
      %v2500 = vadd.f32 %v2483, %v2491
      %v2501 = vadd.f32 %v2484, %v2495
      %v2502 = vmax.f32 %v2498, 0.0
      %v2503 = vmax.f32 %v2499, 0.0
      %v2504 = vmax.f32 %v2500, 0.0
      %v2505 = vmax.f32 %v2501, 0.0
      %v2506 = vpack.c.bf16 %v2504, %v2502
      %v2507 = vpack.c.bf16 %v2505, %v2503
      %v2510 = vunpack.c.l.b16 %v2506
      %v2511 = vunpack.c.l.b16 %v2507
      %v2512 = vunpack.c.h.b16 %v2506
      %v2513 = vunpack.c.h.b16 %v2507
      %v2514 = vpack.c.b16 %v2511, %v2510
      %v2515 = vpack.c.b16 %v2513, %v2512
      %2518 = vst [vmem:[%s329] sm:$0xff] %v2514
      %2519 = vst [vmem:[%s329 + $0x8] sm:$0xff] %v2515
      %s2520 = smul.u32 2, %s21
      %p2521 = scmp.lt.s32.totalorder %s20, 1
      %s2522 = scalar_select %p2521, %s20, 1
      %p2523 = scmp.lt.s32.totalorder %s2520, 1
      %s2524 = scalar_select %p2523, %s2520, 1
      %s2525 = smul.addr %s2524, 2
      %s2526 = smul.addr %s2522, 4
      %s2527 = sadd.s32 %s2525, %s2526
      %s2528 = smul.addr %s2527, 4
      %s2529 = scalar_lea.vmem %s5, %s2528
      // Predicated region
      $region45: #{spatial_path_forward.5} parent=39 // pred_check
        %p2530 = pneg %p175
      $region46: #{spatial_path_forward.5} parent=39 // pred_check_branch
        %2532 = sbr.rel (%p2530) target = $region48
      $region47: #{spatial_path_forward.5} parent=39 // pred_region
        %s2533 = smul.u32 2, %s21
      $region48: #{spatial_path_forward.5} parent=39 // pred_fallthru
        _
    $region40: #{spatial_path_forward.5} parent=5 // pred_fallthru
      _
    %p2534 = scmp.le.s32.totalorder 2, %s11
    // Predicated region
    $region49: #{spatial_path_forward.5} parent=5 // pred_check
      %p2535 = pneg %p2534
    $region50: #{spatial_path_forward.5} parent=5 // pred_check_branch
      %2537 = sbr.rel (%p2535) target = $region52
    $region51: #{spatial_path_forward.5} parent=5 // pred_region
      %s2538 = ssub.s32 %s11, 2
      // Predicated region
      $region53: #{spatial_path_forward.5} parent=51 // pred_check
        %p2539 = pneg %p181
      $region54: #{spatial_path_forward.5} parent=51 // pred_check_branch
        %2541 = sbr.rel (%p2539) target = $region56
      $region55: #{spatial_path_forward.5} parent=51 // pred_region
        %s2542 = smul.u32 2, %s23
        %p2543 = scmp.lt.s32.totalorder %s22, 1
        %s2544 = scalar_select %p2543, %s22, 1
        %p2545 = scmp.lt.s32.totalorder %s2542, 1
        %s2546 = scalar_select %p2545, %s2542, 1
        %s2547 = smul.addr %s2546, 2
        %s2548 = smul.addr %s2544, 4
        %s2549 = sadd.s32 %s2547, %s2548
        %s2550 = smul.addr %s2549, 4
        %s2551 = scalar_lea.vmem %s5, %s2550
      $region56: #{spatial_path_forward.5} parent=51 // pred_fallthru
        _
    $region52: #{spatial_path_forward.5} parent=5 // pred_fallthru
      _
  $region6: #{spatial_path_forward.5} parent=0 // loop_footer
    %s15 = sadd.s32 1, %s11
  $region7: #{spatial_path_forward.5} parent=0 // loop_footer_branch
    %10 = sbr.rel target = $region3
  $region8: #{spatial_path_forward.5} parent=0 // loop_exit
    _

</llo_original>
